<compile_context>
chip_gen: v6e
topology: v6e:2x2x1
jax: 0.10.0
libtpu: 0.0.40
codegen_flags: <defaults>
</compile_context>

<pallas_src>
import jax
import jax.numpy as jnp
from jax.experimental import pallas as pl
from jax.experimental.pallas import tpu as pltpu

LN_EPS = 1e-5
A_LRELU = 0.3


def _leaky(x, alpha=A_LRELU):
    return jnp.where(x > 0, x, alpha * x)


def _round_up(v, m):
    return (v + m - 1) // m * m


# ----------------------------------- kernel -----------------------------------

def make_kernel(*, c_in, c_pad, n_prefilt, n_point, K, residual, tb, n_bins,
                out_dim, c_last):
    P = K // 2
    TBN = tb * n_bins
    f32, bf16 = jnp.float32, jnp.bfloat16

    def kernel(x_ref, *refs):
        out_ref = refs[-1]
        it = iter(refs[:-1])
        ln_w = next(it)[...]                 # (c_pad, n_bins) f32 (zero-padded rows)
        ln_b = next(it)[...]                 # (c_pad, n_bins) f32
        c1_w = next(it)[...]                 # (n_ch0, K*c_pad) bf16
        c1_b = next(it)[...]                 # (n_ch0, 1) f32
        pre = [(next(it)[...], next(it)[...]) for _ in range(n_prefilt - 1)]
        pw = [(next(it)[...], next(it)[...]) for _ in range(n_point)]
        toep = next(it)[...]                 # (c_last*n_bins, out_dim) bf16, untiled

        # ---- index constants generated in-kernel (no HBM DMA for selectors) ----
        col = jax.lax.broadcasted_iota(jnp.int32, (tb, TBN), 1)
        row = jax.lax.broadcasted_iota(jnp.int32, (tb, TBN), 0)
        start = row * n_bins
        in_seg = (col >= start) & (col < start + n_bins)
        segT = jnp.where(in_seg, 1.0, 0.0).astype(bf16)          # (tb, TBN) one-hot rows
        seg_start = jnp.sum(jnp.where(in_seg, start.astype(f32), 0.0),
                            axis=0, keepdims=True)               # (1, TBN)
        pos = col[0:1, :].astype(f32) - seg_start                 # lane index within element
        masks = []
        for k in range(K):
            d = k - P
            if d == 0:
                masks.append(None)
            else:
                valid = (pos + d >= 0.0) & (pos + d < float(n_bins))
                masks.append(jnp.where(valid, 1.0, 0.0))          # (1, TBN) f32

        x = x_ref[...].astype(f32)                                # (c_pad, TBN)

        # ---- LayerNorm over (channels, freq) per batch element ----
        # Whole-sublane reductions (padded channel rows are exactly zero).
        ch_sum = jnp.sum(x, axis=0, keepdims=True)                # (1, TBN)
        ch_sq = jnp.sum(x * x, axis=0, keepdims=True)             # (1, TBN)
        stats = jnp.concatenate([ch_sum, ch_sq], axis=0)          # (2, TBN)
        # hi/lo split so the bf16 MXU dot keeps ~f32 accuracy at DEFAULT precision.
        hi = stats.astype(bf16).astype(f32)
        lo = stats - hi
        lhs4 = jnp.concatenate([hi, lo], axis=0).astype(bf16)     # (4, TBN)
        red4 = jax.lax.dot_general(lhs4, segT, (((1,), (1,)), ((), ())),
                                   preferred_element_type=f32)    # (4, tb)
        inv_cnt = 1.0 / float(c_in * n_bins)
        red = (red4[0:2, :] + red4[2:4, :]) * inv_cnt             # [mu; ex2] (2, tb)
        mu = red[0:1, :]
        ex2 = red[1:2, :]
        rstd = jax.lax.rsqrt(ex2 - mu * mu + LN_EPS)              # (1, tb)
        br = jnp.concatenate([mu, rstd], axis=0)                  # (2, tb)
        bhi = br.astype(bf16).astype(f32)
        blo = br - bhi
        bl4 = jnp.concatenate([bhi, blo], axis=0).astype(bf16)    # (4, tb)
        bc4 = jnp.dot(bl4, segT, preferred_element_type=f32)      # (4, TBN)
        mu_f = bc4[0:1, :] + bc4[2:3, :]
        rstd_f = bc4[1:2, :] + bc4[3:4, :]
        ln_w_t = jnp.concatenate([ln_w] * tb, axis=1)             # (c_pad, TBN)
        ln_b_t = jnp.concatenate([ln_b] * tb, axis=1)
        x = (x - mu_f) * rstd_f * ln_w_t + ln_b_t                 # padded rows stay 0

        # ---- K-tap "same" conv as one fused im2col matmul (taps via XLU roll) ----
        def conv_same(xf, w2d, b):
            parts = []
            for k in range(K):
                d = k - P
                if d == 0:
                    parts.append(xf)
                else:
                    rolled = pltpu.roll(xf, (TBN - d) % TBN, 1)   # rolled[:, i] = xf[:, i+d]
                    parts.append(rolled * masks[k])
            rhs = jnp.concatenate(parts, axis=0).astype(bf16)     # (K*C, TBN)
            return jnp.dot(w2d, rhs, preferred_element_type=f32) + b

        # TODO(synk): Dropout layers are inference-mode identities (p_dropout unused).
        x = _leaky(conv_same(x, c1_w, c1_b))
        for (w, b) in pre:
            x_new = _leaky(conv_same(x, w, b))
            x = x_new + x if residual else x_new

        # ---- 1x1 conv layers == channel matmuls over the wide lane axis ----
        for (w, b) in pw:
            x = _leaky(jnp.dot(w, x.astype(bf16),
                               preferred_element_type=f32) + b)

        # ---- flatten (channel-major per element) + ToeplitzLinear as ONE dot ----
        per_chan = []
        for c in range(c_last):
            rows = [x[c:c + 1, t * n_bins:(t + 1) * n_bins] for t in range(tb)]
            per_chan.append(jnp.concatenate(rows, axis=0))        # (tb, n_bins)
        slab = jnp.concatenate(per_chan, axis=1).astype(bf16)     # (tb, c_last*n_bins)
        logits = jnp.dot(slab, toep, preferred_element_type=f32)  # (tb, out_dim)

        # ---- softmax over output_dim (f32, exact normalization) ----
        m = jnp.max(logits, axis=-1, keepdims=True)
        e = jnp.exp(logits - m)
        s = jnp.sum(e, axis=-1, keepdims=True)
        out_ref[...] = (e / s).astype(out_ref.dtype)

    return kernel


# ------------------------------ wrapper (glue) ------------------------------

def resnet1d_forward(x, params, cfg, tb=8):
    """PESTO Resnet1d encoder forward. x: (B, C_in, N) -> (B, output_dim)."""
    B, C_in, N = x.shape
    assert B % tb == 0, "demo wrapper expects batch divisible by tb"
    out_dim = cfg["output_dim"]
    K = cfg["prefilt_kernel_size"]
    n_ch = cfg["n_chan_layers"]
    c_last = n_ch[-1]
    n_prefilt = cfg["n_prefilt_layers"]
    n_point = len(n_ch) - 1
    TBN = tb * N
    c_pad = _round_up(C_in, 8)      # keep in-kernel sublane concats tile-aligned
    assert n_ch[0] % 8 == 0, "demo wrapper expects n_chan_layers[0] % 8 == 0"
    assert N % 128 == 0, "demo wrapper expects n_bins_in to be lane aligned"

    f32, bf16 = jnp.float32, jnp.bfloat16

    def pack_conv(w, b, ci_pad):
        co, ci, k = w.shape
        w = jnp.pad(w, ((0, 0), (0, ci_pad - ci), (0, 0)))
        w2d = jnp.transpose(w, (0, 2, 1)).reshape(co, k * ci_pad)   # columns (k, c)
        return w2d.astype(bf16), b.astype(f32)

    # ---- packed weights (wrapper-side glue, outside the kernel) ----
    ln_w = jnp.pad(params["ln_w"].astype(f32), ((0, c_pad - C_in), (0, 0)))
    ln_b = jnp.pad(params["ln_b"].astype(f32), ((0, c_pad - C_in), (0, 0)))

    consts = [ln_w, ln_b]
    consts += list(pack_conv(params["conv1_w"], params["conv1_b"], c_pad))
    for w, b in params["prefilt"]:
        consts += list(pack_conv(w, b, w.shape[1]))
    for w, b in params["pointwise"]:
        consts += [w[:, :, 0].astype(bf16), b.astype(f32)]
    consts.append(params["toeplitz"].astype(bf16))     # (c_last*N, out_dim), untiled

    # input: channels on sublanes (padded to c_pad), batch folded into lanes
    x_flat = jnp.transpose(x, (1, 0, 2)).reshape(C_in, B * N).astype(f32)
    x_flat = jnp.pad(x_flat, ((0, c_pad - C_in), (0, 0)))

    in_specs = [pl.BlockSpec((c_pad, TBN), lambda i: (0, i))]
    for p in consts:
        in_specs.append(pl.BlockSpec(p.shape, lambda i, _nd=p.ndim: (0,) * _nd))
    out_spec = pl.BlockSpec((tb, out_dim), lambda i: (i, 0))

    kernel = make_kernel(c_in=C_in, c_pad=c_pad, n_prefilt=n_prefilt,
                         n_point=n_point, K=K, residual=cfg["residual"], tb=tb,
                         n_bins=N, out_dim=out_dim, c_last=c_last)

    return pl.pallas_call(
        kernel,
        out_shape=jax.ShapeDtypeStruct((B, out_dim), f32),
        grid_spec=pltpu.PrefetchScalarGridSpec(
            num_scalar_prefetch=0,
            grid=(B // tb,),
            in_specs=in_specs,
            out_specs=out_spec,
        ),
        compiler_params=pltpu.CompilerParams(
            dimension_semantics=("parallel",)),
    )(x_flat, *consts)


# ------------------------ parameter init + reference ------------------------

def init_params(key, cfg):
    n_in = cfg["n_chan_input"]
    n_ch = cfg["n_chan_layers"]
    K = cfg["prefilt_kernel_size"]
    N = cfg["n_bins_in"]
    out_dim = cfg["output_dim"]

    keys = jax.random.split(key, 32)
    ki = iter(keys)

    def rnd(shape, scale=0.25):
        return (scale * jax.random.normal(next(ki), shape)).astype(jnp.float32)

    params = {}
    params["ln_w"] = 1.0 + rnd((n_in, N))
    params["ln_b"] = rnd((n_in, N))
    params["conv1_w"] = rnd((n_ch[0], n_in, K))
    params["conv1_b"] = rnd((n_ch[0], 1))
    params["prefilt"] = [(rnd((n_ch[0], n_ch[0], K)), rnd((n_ch[0], 1)))
                         for _ in range(cfg["n_prefilt_layers"] - 1)]
    params["pointwise"] = [(rnd((n_ch[i + 1], n_ch[i], 1)), rnd((n_ch[i + 1], 1)))
                           for i in range(len(n_ch) - 1)]

    # ToeplitzLinear: Conv1d(1, 1, kernel=in+out-1, padding=out-1, bias=False),
    # expressed as a dense Toeplitz matrix.
    in_feat = N * n_ch[-1]
    w_full = rnd((in_feat + out_dim - 1,))
    idx = (jnp.arange(in_feat)[:, None] - jnp.arange(out_dim)[None, :]
           + (out_dim - 1))
    params["toeplitz"] = w_full[idx]            # (in_feat, out_dim)
    return params


def ref_forward(x, params, cfg):
    """Plain-JAX f32 reference mirroring the PyTorch Resnet1d forward (eval)."""
    K = cfg["prefilt_kernel_size"]
    P = K // 2

    mu = jnp.mean(x, axis=(1, 2), keepdims=True)
    var = jnp.mean((x - mu) ** 2, axis=(1, 2), keepdims=True)
    h = (x - mu) / jnp.sqrt(var + LN_EPS) * params["ln_w"] + params["ln_b"]

    def conv(h, w, b, pad):
        y = jax.lax.conv_general_dilated(
            h, w, window_strides=(1,), padding=[(pad, pad)],
            dimension_numbers=("NCH", "OIH", "NCH"))
        return y + b.reshape(1, -1, 1)

    h = _leaky(conv(h, params["conv1_w"], params["conv1_b"], P))
    for (w, b) in params["prefilt"]:
        h_new = _leaky(conv(h, w, b, P))
        h = h_new + h if cfg["residual"] else h_new
    for (w, b) in params["pointwise"]:
        h = _leaky(conv(h, w, b, 0))

    flat = h.reshape(h.shape[0], -1)
    logits = flat @ params["toeplitz"]
    return jax.nn.softmax(logits, axis=-1)


# ----------------------------------- main -----------------------------------

if __name__ == "__main__":
    n_chan_layers = [8, 8, 8, 4, 2]
    if len(n_chan_layers) < 5:
        n_chan_layers.append(1)                 # mirrors the PyTorch ctor
    cfg = dict(
        n_chan_input=2,
        n_chan_layers=n_chan_layers,
        n_prefilt_layers=2,
        prefilt_kernel_size=5,
        residual=True,
        n_bins_in=128,
        output_dim=128,
    )

    key = jax.random.PRNGKey(0)
    k_x, k_p = jax.random.split(key)
    B = 32          # grid = B // tb = 4 -> >= 2 pipelined steps per v7x TensorCore
    x = jax.random.normal(
        k_x, (B, cfg["n_chan_input"], cfg["n_bins_in"]), dtype=jnp.float32)
    params = init_params(k_p, cfg)

    y = resnet1d_forward(x, params, cfg, tb=8)
    y = jax.block_until_ready(y)

    y_ref = ref_forward(x, params, cfg)
    assert y.shape == (B, cfg["output_dim"])
    assert jnp.allclose(jnp.sum(y, axis=-1), 1.0, atol=1e-3)
    max_diff = jnp.max(jnp.abs(y - y_ref))
    # bf16 matmuls (conv / pointwise / toeplitz) => slightly loosened tolerances
    assert jnp.allclose(y, y_ref, atol=2e-3, rtol=2e-2), (
        f"max abs diff {max_diff}")

    print("KERNEL_OK")
</pallas_src>

<mosaic_0001>
module attributes {stable_mosaic.version = 11 : i64} {
  func.func @kernel(%arg0: i32, %arg1: memref<8x1024xf32, #tpu.memory_space<vmem>>, %arg2: memref<8x128xf32, #tpu.memory_space<vmem>>, %arg3: memref<8x128xf32, #tpu.memory_space<vmem>>, %arg4: memref<8x40xbf16, #tpu.memory_space<vmem>>, %arg5: memref<8x1xf32, #tpu.memory_space<vmem>>, %arg6: memref<8x40xbf16, #tpu.memory_space<vmem>>, %arg7: memref<8x1xf32, #tpu.memory_space<vmem>>, %arg8: memref<8x8xbf16, #tpu.memory_space<vmem>>, %arg9: memref<8x1xf32, #tpu.memory_space<vmem>>, %arg10: memref<8x8xbf16, #tpu.memory_space<vmem>>, %arg11: memref<8x1xf32, #tpu.memory_space<vmem>>, %arg12: memref<4x8xbf16, #tpu.memory_space<vmem>>, %arg13: memref<4x1xf32, #tpu.memory_space<vmem>>, %arg14: memref<2x4xbf16, #tpu.memory_space<vmem>>, %arg15: memref<2x1xf32, #tpu.memory_space<vmem>>, %arg16: memref<256x128xbf16, #tpu.memory_space<vmem>>, %arg17: memref<8x128xf32, #tpu.memory_space<vmem>>) attributes {dimension_semantics = [#tpu.dimension_semantics<parallel>], iteration_bounds = array<i64: 4>, scalar_prefetch = 0 : i64, scratch_operands = 0 : i64, tpu.core_type = #tpu.core_type<tc>, window_params = [{transform_indices = @transform_0, window_bounds = array<i64: 8, 1024>}, {pipeline_mode = #tpu.pipeline_mode<synchronous>, transform_indices = @transform_1, window_bounds = array<i64: 8, 128>}, {pipeline_mode = #tpu.pipeline_mode<synchronous>, transform_indices = @transform_2, window_bounds = array<i64: 8, 128>}, {pipeline_mode = #tpu.pipeline_mode<synchronous>, transform_indices = @transform_3, window_bounds = array<i64: 8, 40>}, {pipeline_mode = #tpu.pipeline_mode<synchronous>, transform_indices = @transform_4, window_bounds = array<i64: 8, 1>}, {pipeline_mode = #tpu.pipeline_mode<synchronous>, transform_indices = @transform_5, window_bounds = array<i64: 8, 40>}, {pipeline_mode = #tpu.pipeline_mode<synchronous>, transform_indices = @transform_6, window_bounds = array<i64: 8, 1>}, {pipeline_mode = #tpu.pipeline_mode<synchronous>, transform_indices = @transform_7, window_bounds = array<i64: 8, 8>}, {pipeline_mode = #tpu.pipeline_mode<synchronous>, transform_indices = @transform_8, window_bounds = array<i64: 8, 1>}, {pipeline_mode = #tpu.pipeline_mode<synchronous>, transform_indices = @transform_9, window_bounds = array<i64: 8, 8>}, {pipeline_mode = #tpu.pipeline_mode<synchronous>, transform_indices = @transform_10, window_bounds = array<i64: 8, 1>}, {pipeline_mode = #tpu.pipeline_mode<synchronous>, transform_indices = @transform_11, window_bounds = array<i64: 4, 8>}, {pipeline_mode = #tpu.pipeline_mode<synchronous>, transform_indices = @transform_12, window_bounds = array<i64: 4, 1>}, {pipeline_mode = #tpu.pipeline_mode<synchronous>, transform_indices = @transform_13, window_bounds = array<i64: 2, 4>}, {pipeline_mode = #tpu.pipeline_mode<synchronous>, transform_indices = @transform_14, window_bounds = array<i64: 2, 1>}, {pipeline_mode = #tpu.pipeline_mode<synchronous>, transform_indices = @transform_15, window_bounds = array<i64: 256, 128>}, {transform_indices = @transform_16, window_bounds = array<i64: 8, 128>}]} {
    %c0 = arith.constant 0 : index
    %c0_0 = arith.constant 0 : index
    %0 = vector.load %arg2[%c0, %c0_0] : memref<8x128xf32, #tpu.memory_space<vmem>>, vector<8x128xf32>
    %c0_1 = arith.constant 0 : index
    %c0_2 = arith.constant 0 : index
    %1 = vector.load %arg3[%c0_1, %c0_2] : memref<8x128xf32, #tpu.memory_space<vmem>>, vector<8x128xf32>
    %c0_3 = arith.constant 0 : index
    %c0_4 = arith.constant 0 : index
    %2 = vector.load %arg4[%c0_3, %c0_4] : memref<8x40xbf16, #tpu.memory_space<vmem>>, vector<8x40xbf16>
    %c0_5 = arith.constant 0 : index
    %c0_6 = arith.constant 0 : index
    %3 = vector.load %arg5[%c0_5, %c0_6] : memref<8x1xf32, #tpu.memory_space<vmem>>, vector<8x1xf32>
    %c0_7 = arith.constant 0 : index
    %c0_8 = arith.constant 0 : index
    %4 = vector.load %arg6[%c0_7, %c0_8] : memref<8x40xbf16, #tpu.memory_space<vmem>>, vector<8x40xbf16>
    %c0_9 = arith.constant 0 : index
    %c0_10 = arith.constant 0 : index
    %5 = vector.load %arg7[%c0_9, %c0_10] : memref<8x1xf32, #tpu.memory_space<vmem>>, vector<8x1xf32>
    %c0_11 = arith.constant 0 : index
    %c0_12 = arith.constant 0 : index
    %6 = vector.load %arg8[%c0_11, %c0_12] : memref<8x8xbf16, #tpu.memory_space<vmem>>, vector<8x8xbf16>
    %c0_13 = arith.constant 0 : index
    %c0_14 = arith.constant 0 : index
    %7 = vector.load %arg9[%c0_13, %c0_14] : memref<8x1xf32, #tpu.memory_space<vmem>>, vector<8x1xf32>
    %c0_15 = arith.constant 0 : index
    %c0_16 = arith.constant 0 : index
    %8 = vector.load %arg10[%c0_15, %c0_16] : memref<8x8xbf16, #tpu.memory_space<vmem>>, vector<8x8xbf16>
    %c0_17 = arith.constant 0 : index
    %c0_18 = arith.constant 0 : index
    %9 = vector.load %arg11[%c0_17, %c0_18] : memref<8x1xf32, #tpu.memory_space<vmem>>, vector<8x1xf32>
    %c0_19 = arith.constant 0 : index
    %c0_20 = arith.constant 0 : index
    %10 = vector.load %arg12[%c0_19, %c0_20] : memref<4x8xbf16, #tpu.memory_space<vmem>>, vector<4x8xbf16>
    %c0_21 = arith.constant 0 : index
    %c0_22 = arith.constant 0 : index
    %11 = vector.load %arg13[%c0_21, %c0_22] : memref<4x1xf32, #tpu.memory_space<vmem>>, vector<4x1xf32>
    %c0_23 = arith.constant 0 : index
    %c0_24 = arith.constant 0 : index
    %12 = vector.load %arg14[%c0_23, %c0_24] : memref<2x4xbf16, #tpu.memory_space<vmem>>, vector<2x4xbf16>
    %c0_25 = arith.constant 0 : index
    %c0_26 = arith.constant 0 : index
    %13 = vector.load %arg15[%c0_25, %c0_26] : memref<2x1xf32, #tpu.memory_space<vmem>>, vector<2x1xf32>
    %c0_27 = arith.constant 0 : index
    %c0_28 = arith.constant 0 : index
    %14 = vector.load %arg16[%c0_27, %c0_28] : memref<256x128xbf16, #tpu.memory_space<vmem>>, vector<256x128xbf16>
    %15 = tpu.iota {dimensions = array<i32: 1>} : vector<8x1024xi32>
    %16 = tpu.iota {dimensions = array<i32: 0>} : vector<8x1024xi32>
    %c128_i32 = arith.constant 128 : i32
    %17 = vector.broadcast %c128_i32 : i32 to vector<8x1024xi32>
    %18 = arith.muli %16, %17 : vector<8x1024xi32>
    %19 = arith.cmpi sge, %15, %18 : vector<8x1024xi32>
    %c128_i32_29 = arith.constant 128 : i32
    %20 = vector.broadcast %c128_i32_29 : i32 to vector<8x1024xi32>
    %21 = arith.addi %18, %20 : vector<8x1024xi32>
    %22 = arith.cmpi slt, %15, %21 : vector<8x1024xi32>
    %23 = arith.andi %19, %22 : vector<8x1024xi1>
    %cst = arith.constant 1.000000e+00 : f32
    %cst_30 = arith.constant 0.000000e+00 : f32
    %24 = vector.broadcast %cst : f32 to vector<8x1024xf32>
    %25 = vector.broadcast %cst_30 : f32 to vector<8x1024xf32>
    %26 = arith.select %23, %24, %25 : vector<8x1024xi1>, vector<8x1024xf32>
    %27 = arith.truncf %26 : vector<8x1024xf32> to vector<8x1024xbf16>
    %28 = arith.sitofp %18 : vector<8x1024xi32> to vector<8x1024xf32>
    %cst_31 = arith.constant 0.000000e+00 : f32
    %29 = vector.broadcast %cst_31 : f32 to vector<8x1024xf32>
    %30 = arith.select %23, %28, %29 : vector<8x1024xi1>, vector<8x1024xf32>
    %cst_32 = arith.constant dense<0.000000e+00> : vector<1024xf32>
    %31 = vector.multi_reduction <add>, %30, %cst_32 [0] : vector<8x1024xf32> to vector<1024xf32>
    %32 = vector.shape_cast %31 : vector<1024xf32> to vector<1x1024xf32>
    %33 = vector.extract_strided_slice %15 {offsets = [0, 0], sizes = [1, 1024], strides = [1, 1]} : vector<8x1024xi32> to vector<1x1024xi32>
    %34 = arith.sitofp %33 : vector<1x1024xi32> to vector<1x1024xf32>
    %35 = arith.subf %34, %32 : vector<1x1024xf32>
    %cst_33 = arith.constant -2.000000e+00 : f32
    %36 = vector.broadcast %cst_33 : f32 to vector<1x1024xf32>
    %37 = arith.addf %35, %36 : vector<1x1024xf32>
    %cst_34 = arith.constant 0.000000e+00 : f32
    %38 = vector.broadcast %cst_34 : f32 to vector<1x1024xf32>
    %39 = arith.cmpf oge, %37, %38 : vector<1x1024xf32>
    %cst_35 = arith.constant -2.000000e+00 : f32
    %40 = vector.broadcast %cst_35 : f32 to vector<1x1024xf32>
    %41 = arith.addf %35, %40 : vector<1x1024xf32>
    %cst_36 = arith.constant 1.280000e+02 : f32
    %42 = vector.broadcast %cst_36 : f32 to vector<1x1024xf32>
    %43 = arith.cmpf olt, %41, %42 : vector<1x1024xf32>
    %44 = arith.andi %39, %43 : vector<1x1024xi1>
    %cst_37 = arith.constant 1.000000e+00 : f32
    %cst_38 = arith.constant 0.000000e+00 : f32
    %45 = vector.broadcast %cst_37 : f32 to vector<1x1024xf32>
    %46 = vector.broadcast %cst_38 : f32 to vector<1x1024xf32>
    %47 = arith.select %44, %45, %46 : vector<1x1024xi1>, vector<1x1024xf32>
    %cst_39 = arith.constant -1.000000e+00 : f32
    %48 = vector.broadcast %cst_39 : f32 to vector<1x1024xf32>
    %49 = arith.addf %35, %48 : vector<1x1024xf32>
    %cst_40 = arith.constant 0.000000e+00 : f32
    %50 = vector.broadcast %cst_40 : f32 to vector<1x1024xf32>
    %51 = arith.cmpf oge, %49, %50 : vector<1x1024xf32>
    %cst_41 = arith.constant -1.000000e+00 : f32
    %52 = vector.broadcast %cst_41 : f32 to vector<1x1024xf32>
    %53 = arith.addf %35, %52 : vector<1x1024xf32>
    %cst_42 = arith.constant 1.280000e+02 : f32
    %54 = vector.broadcast %cst_42 : f32 to vector<1x1024xf32>
    %55 = arith.cmpf olt, %53, %54 : vector<1x1024xf32>
    %56 = arith.andi %51, %55 : vector<1x1024xi1>
    %cst_43 = arith.constant 1.000000e+00 : f32
    %cst_44 = arith.constant 0.000000e+00 : f32
    %57 = vector.broadcast %cst_43 : f32 to vector<1x1024xf32>
    %58 = vector.broadcast %cst_44 : f32 to vector<1x1024xf32>
    %59 = arith.select %56, %57, %58 : vector<1x1024xi1>, vector<1x1024xf32>
    %cst_45 = arith.constant 1.000000e+00 : f32
    %60 = vector.broadcast %cst_45 : f32 to vector<1x1024xf32>
    %61 = arith.addf %35, %60 : vector<1x1024xf32>
    %cst_46 = arith.constant 0.000000e+00 : f32
    %62 = vector.broadcast %cst_46 : f32 to vector<1x1024xf32>
    %63 = arith.cmpf oge, %61, %62 : vector<1x1024xf32>
    %cst_47 = arith.constant 1.000000e+00 : f32
    %64 = vector.broadcast %cst_47 : f32 to vector<1x1024xf32>
    %65 = arith.addf %35, %64 : vector<1x1024xf32>
    %cst_48 = arith.constant 1.280000e+02 : f32
    %66 = vector.broadcast %cst_48 : f32 to vector<1x1024xf32>
    %67 = arith.cmpf olt, %65, %66 : vector<1x1024xf32>
    %68 = arith.andi %63, %67 : vector<1x1024xi1>
    %cst_49 = arith.constant 1.000000e+00 : f32
    %cst_50 = arith.constant 0.000000e+00 : f32
    %69 = vector.broadcast %cst_49 : f32 to vector<1x1024xf32>
    %70 = vector.broadcast %cst_50 : f32 to vector<1x1024xf32>
    %71 = arith.select %68, %69, %70 : vector<1x1024xi1>, vector<1x1024xf32>
    %cst_51 = arith.constant 2.000000e+00 : f32
    %72 = vector.broadcast %cst_51 : f32 to vector<1x1024xf32>
    %73 = arith.addf %35, %72 : vector<1x1024xf32>
    %cst_52 = arith.constant 0.000000e+00 : f32
    %74 = vector.broadcast %cst_52 : f32 to vector<1x1024xf32>
    %75 = arith.cmpf oge, %73, %74 : vector<1x1024xf32>
    %cst_53 = arith.constant 2.000000e+00 : f32
    %76 = vector.broadcast %cst_53 : f32 to vector<1x1024xf32>
    %77 = arith.addf %35, %76 : vector<1x1024xf32>
    %cst_54 = arith.constant 1.280000e+02 : f32
    %78 = vector.broadcast %cst_54 : f32 to vector<1x1024xf32>
    %79 = arith.cmpf olt, %77, %78 : vector<1x1024xf32>
    %80 = arith.andi %75, %79 : vector<1x1024xi1>
    %cst_55 = arith.constant 1.000000e+00 : f32
    %cst_56 = arith.constant 0.000000e+00 : f32
    %81 = vector.broadcast %cst_55 : f32 to vector<1x1024xf32>
    %82 = vector.broadcast %cst_56 : f32 to vector<1x1024xf32>
    %83 = arith.select %80, %81, %82 : vector<1x1024xi1>, vector<1x1024xf32>
    %c0_57 = arith.constant 0 : index
    %c0_58 = arith.constant 0 : index
    %84 = vector.load %arg1[%c0_57, %c0_58] : memref<8x1024xf32, #tpu.memory_space<vmem>>, vector<8x1024xf32>
    %cst_59 = arith.constant dense<0.000000e+00> : vector<1024xf32>
    %85 = vector.multi_reduction <add>, %84, %cst_59 [0] : vector<8x1024xf32> to vector<1024xf32>
    %86 = vector.shape_cast %85 : vector<1024xf32> to vector<1x1024xf32>
    %87 = arith.mulf %84, %84 : vector<8x1024xf32>
    %cst_60 = arith.constant dense<0.000000e+00> : vector<1024xf32>
    %88 = vector.multi_reduction <add>, %87, %cst_60 [0] : vector<8x1024xf32> to vector<1024xf32>
    %89 = vector.shape_cast %88 : vector<1024xf32> to vector<1x1024xf32>
    %90 = tpu.concatenate %86, %89 in 0 : vector<1x1024xf32>, vector<1x1024xf32> -> vector<2x1024xf32>
    %91 = arith.truncf %90 : vector<2x1024xf32> to vector<2x1024xbf16>
    %92 = arith.extf %91 : vector<2x1024xbf16> to vector<2x1024xf32>
    %93 = arith.subf %90, %92 : vector<2x1024xf32>
    %94 = tpu.concatenate %92, %93 in 0 : vector<2x1024xf32>, vector<2x1024xf32> -> vector<4x1024xf32>
    %95 = arith.truncf %94 : vector<4x1024xf32> to vector<4x1024xbf16>
    %cst_61 = arith.constant dense<0.000000e+00> : vector<4x8xf32>
    %96 = tpu.matmul %95, %27, %cst_61 {dimension_numbers = #tpu.dot_dimension_numbers<[1], [1], [0], [0], [0, 0, 1, 0], [], []>} : vector<4x1024xbf16>, vector<8x1024xbf16>, vector<4x8xf32> -> vector<4x8xf32>
    %97 = vector.extract_strided_slice %96 {offsets = [0, 0], sizes = [2, 8], strides = [1, 1]} : vector<4x8xf32> to vector<2x8xf32>
    %98 = vector.extract_strided_slice %96 {offsets = [2, 0], sizes = [2, 8], strides = [1, 1]} : vector<4x8xf32> to vector<2x8xf32>
    %99 = arith.addf %97, %98 : vector<2x8xf32>
    %cst_62 = arith.constant 3.906250e-03 : f32
    %100 = vector.broadcast %cst_62 : f32 to vector<2x8xf32>
    %101 = arith.mulf %99, %100 : vector<2x8xf32>
    %102 = vector.extract_strided_slice %101 {offsets = [0, 0], sizes = [1, 8], strides = [1, 1]} : vector<2x8xf32> to vector<1x8xf32>
    %103 = vector.extract_strided_slice %101 {offsets = [1, 0], sizes = [1, 8], strides = [1, 1]} : vector<2x8xf32> to vector<1x8xf32>
    %104 = arith.mulf %102, %102 : vector<1x8xf32>
    %105 = arith.subf %103, %104 : vector<1x8xf32>
    %cst_63 = arith.constant 9.99999974E-6 : f32
    %106 = vector.broadcast %cst_63 : f32 to vector<1x8xf32>
    %107 = arith.addf %105, %106 : vector<1x8xf32>
    %108 = math.rsqrt %107 : vector<1x8xf32>
    %109 = tpu.concatenate %102, %108 in 0 : vector<1x8xf32>, vector<1x8xf32> -> vector<2x8xf32>
    %110 = arith.truncf %109 : vector<2x8xf32> to vector<2x8xbf16>
    %111 = arith.extf %110 : vector<2x8xbf16> to vector<2x8xf32>
    %112 = arith.subf %109, %111 : vector<2x8xf32>
    %113 = tpu.concatenate %111, %112 in 0 : vector<2x8xf32>, vector<2x8xf32> -> vector<4x8xf32>
    %114 = arith.truncf %113 : vector<4x8xf32> to vector<4x8xbf16>
    %cst_64 = arith.constant dense<0.000000e+00> : vector<4x1024xf32>
    %115 = tpu.matmul %114, %27, %cst_64 {dimension_numbers = #tpu.dot_dimension_numbers<[1], [0], [0], [1], [0, 0, 1, 1], [], []>} : vector<4x8xbf16>, vector<8x1024xbf16>, vector<4x1024xf32> -> vector<4x1024xf32>
    %116 = vector.extract_strided_slice %115 {offsets = [0, 0], sizes = [1, 1024], strides = [1, 1]} : vector<4x1024xf32> to vector<1x1024xf32>
    %117 = vector.extract_strided_slice %115 {offsets = [2, 0], sizes = [1, 1024], strides = [1, 1]} : vector<4x1024xf32> to vector<1x1024xf32>
    %118 = arith.addf %116, %117 : vector<1x1024xf32>
    %119 = vector.extract_strided_slice %115 {offsets = [1, 0], sizes = [1, 1024], strides = [1, 1]} : vector<4x1024xf32> to vector<1x1024xf32>
    %120 = vector.extract_strided_slice %115 {offsets = [3, 0], sizes = [1, 1024], strides = [1, 1]} : vector<4x1024xf32> to vector<1x1024xf32>
    %121 = arith.addf %119, %120 : vector<1x1024xf32>
    %122 = tpu.concatenate %0, %0, %0, %0, %0, %0, %0, %0 in 1 : vector<8x128xf32>, vector<8x128xf32>, vector<8x128xf32>, vector<8x128xf32>, vector<8x128xf32>, vector<8x128xf32>, vector<8x128xf32>, vector<8x128xf32> -> vector<8x1024xf32>
    %123 = tpu.concatenate %1, %1, %1, %1, %1, %1, %1, %1 in 1 : vector<8x128xf32>, vector<8x128xf32>, vector<8x128xf32>, vector<8x128xf32>, vector<8x128xf32>, vector<8x128xf32>, vector<8x128xf32>, vector<8x128xf32> -> vector<8x1024xf32>
    %124 = vector.broadcast %118 : vector<1x1024xf32> to vector<8x1024xf32>
    %125 = arith.subf %84, %124 : vector<8x1024xf32>
    %126 = vector.broadcast %121 : vector<1x1024xf32> to vector<8x1024xf32>
    %127 = arith.mulf %125, %126 : vector<8x1024xf32>
    %128 = arith.mulf %127, %122 : vector<8x1024xf32>
    %129 = arith.addf %128, %123 : vector<8x1024xf32>
    %c2_i32 = arith.constant 2 : i32
    %130 = tpu.dynamic_rotate %129 by %c2_i32 dim 1 : vector<8x1024xf32>, i32 -> vector<8x1024xf32>
    %131 = vector.broadcast %47 : vector<1x1024xf32> to vector<8x1024xf32>
    %132 = arith.mulf %130, %131 : vector<8x1024xf32>
    %c1_i32 = arith.constant 1 : i32
    %133 = tpu.dynamic_rotate %129 by %c1_i32 dim 1 : vector<8x1024xf32>, i32 -> vector<8x1024xf32>
    %134 = vector.broadcast %59 : vector<1x1024xf32> to vector<8x1024xf32>
    %135 = arith.mulf %133, %134 : vector<8x1024xf32>
    %c1023_i32 = arith.constant 1023 : i32
    %136 = tpu.dynamic_rotate %129 by %c1023_i32 dim 1 : vector<8x1024xf32>, i32 -> vector<8x1024xf32>
    %137 = vector.broadcast %71 : vector<1x1024xf32> to vector<8x1024xf32>
    %138 = arith.mulf %136, %137 : vector<8x1024xf32>
    %c1022_i32 = arith.constant 1022 : i32
    %139 = tpu.dynamic_rotate %129 by %c1022_i32 dim 1 : vector<8x1024xf32>, i32 -> vector<8x1024xf32>
    %140 = vector.broadcast %83 : vector<1x1024xf32> to vector<8x1024xf32>
    %141 = arith.mulf %139, %140 : vector<8x1024xf32>
    %142 = tpu.concatenate %132, %135, %129, %138, %141 in 0 : vector<8x1024xf32>, vector<8x1024xf32>, vector<8x1024xf32>, vector<8x1024xf32>, vector<8x1024xf32> -> vector<40x1024xf32>
    %143 = arith.truncf %142 : vector<40x1024xf32> to vector<40x1024xbf16>
    %cst_65 = arith.constant dense<0.000000e+00> : vector<8x1024xf32>
    %144 = tpu.matmul %2, %143, %cst_65 {dimension_numbers = #tpu.dot_dimension_numbers<[1], [0], [0], [1], [0, 0, 1, 1], [], []>} : vector<8x40xbf16>, vector<40x1024xbf16>, vector<8x1024xf32> -> vector<8x1024xf32>
    %145 = vector.broadcast %3 : vector<8x1xf32> to vector<8x1024xf32>
    %146 = arith.addf %144, %145 : vector<8x1024xf32>
    %cst_66 = arith.constant 0.000000e+00 : f32
    %147 = vector.broadcast %cst_66 : f32 to vector<8x1024xf32>
    %148 = arith.cmpf ogt, %146, %147 : vector<8x1024xf32>
    %cst_67 = arith.constant 3.000000e-01 : f32
    %149 = vector.broadcast %cst_67 : f32 to vector<8x1024xf32>
    %150 = arith.mulf %149, %146 : vector<8x1024xf32>
    %151 = arith.select %148, %146, %150 : vector<8x1024xi1>, vector<8x1024xf32>
    %c2_i32_68 = arith.constant 2 : i32
    %152 = tpu.dynamic_rotate %151 by %c2_i32_68 dim 1 : vector<8x1024xf32>, i32 -> vector<8x1024xf32>
    %153 = vector.broadcast %47 : vector<1x1024xf32> to vector<8x1024xf32>
    %154 = arith.mulf %152, %153 : vector<8x1024xf32>
    %c1_i32_69 = arith.constant 1 : i32
    %155 = tpu.dynamic_rotate %151 by %c1_i32_69 dim 1 : vector<8x1024xf32>, i32 -> vector<8x1024xf32>
    %156 = vector.broadcast %59 : vector<1x1024xf32> to vector<8x1024xf32>
    %157 = arith.mulf %155, %156 : vector<8x1024xf32>
    %c1023_i32_70 = arith.constant 1023 : i32
    %158 = tpu.dynamic_rotate %151 by %c1023_i32_70 dim 1 : vector<8x1024xf32>, i32 -> vector<8x1024xf32>
    %159 = vector.broadcast %71 : vector<1x1024xf32> to vector<8x1024xf32>
    %160 = arith.mulf %158, %159 : vector<8x1024xf32>
    %c1022_i32_71 = arith.constant 1022 : i32
    %161 = tpu.dynamic_rotate %151 by %c1022_i32_71 dim 1 : vector<8x1024xf32>, i32 -> vector<8x1024xf32>
    %162 = vector.broadcast %83 : vector<1x1024xf32> to vector<8x1024xf32>
    %163 = arith.mulf %161, %162 : vector<8x1024xf32>
    %164 = tpu.concatenate %154, %157, %151, %160, %163 in 0 : vector<8x1024xf32>, vector<8x1024xf32>, vector<8x1024xf32>, vector<8x1024xf32>, vector<8x1024xf32> -> vector<40x1024xf32>
    %165 = arith.truncf %164 : vector<40x1024xf32> to vector<40x1024xbf16>
    %cst_72 = arith.constant dense<0.000000e+00> : vector<8x1024xf32>
    %166 = tpu.matmul %4, %165, %cst_72 {dimension_numbers = #tpu.dot_dimension_numbers<[1], [0], [0], [1], [0, 0, 1, 1], [], []>} : vector<8x40xbf16>, vector<40x1024xbf16>, vector<8x1024xf32> -> vector<8x1024xf32>
    %167 = vector.broadcast %5 : vector<8x1xf32> to vector<8x1024xf32>
    %168 = arith.addf %166, %167 : vector<8x1024xf32>
    %cst_73 = arith.constant 0.000000e+00 : f32
    %169 = vector.broadcast %cst_73 : f32 to vector<8x1024xf32>
    %170 = arith.cmpf ogt, %168, %169 : vector<8x1024xf32>
    %cst_74 = arith.constant 3.000000e-01 : f32
    %171 = vector.broadcast %cst_74 : f32 to vector<8x1024xf32>
    %172 = arith.mulf %171, %168 : vector<8x1024xf32>
    %173 = arith.select %170, %168, %172 : vector<8x1024xi1>, vector<8x1024xf32>
    %174 = arith.addf %173, %151 : vector<8x1024xf32>
    %175 = arith.truncf %174 : vector<8x1024xf32> to vector<8x1024xbf16>
    %cst_75 = arith.constant dense<0.000000e+00> : vector<8x1024xf32>
    %176 = tpu.matmul %6, %175, %cst_75 {dimension_numbers = #tpu.dot_dimension_numbers<[1], [0], [0], [1], [0, 0, 1, 1], [], []>} : vector<8x8xbf16>, vector<8x1024xbf16>, vector<8x1024xf32> -> vector<8x1024xf32>
    %177 = vector.broadcast %7 : vector<8x1xf32> to vector<8x1024xf32>
    %178 = arith.addf %176, %177 : vector<8x1024xf32>
    %cst_76 = arith.constant 0.000000e+00 : f32
    %179 = vector.broadcast %cst_76 : f32 to vector<8x1024xf32>
    %180 = arith.cmpf ogt, %178, %179 : vector<8x1024xf32>
    %cst_77 = arith.constant 3.000000e-01 : f32
    %181 = vector.broadcast %cst_77 : f32 to vector<8x1024xf32>
    %182 = arith.mulf %181, %178 : vector<8x1024xf32>
    %183 = arith.select %180, %178, %182 : vector<8x1024xi1>, vector<8x1024xf32>
    %184 = arith.truncf %183 : vector<8x1024xf32> to vector<8x1024xbf16>
    %cst_78 = arith.constant dense<0.000000e+00> : vector<8x1024xf32>
    %185 = tpu.matmul %8, %184, %cst_78 {dimension_numbers = #tpu.dot_dimension_numbers<[1], [0], [0], [1], [0, 0, 1, 1], [], []>} : vector<8x8xbf16>, vector<8x1024xbf16>, vector<8x1024xf32> -> vector<8x1024xf32>
    %186 = vector.broadcast %9 : vector<8x1xf32> to vector<8x1024xf32>
    %187 = arith.addf %185, %186 : vector<8x1024xf32>
    %cst_79 = arith.constant 0.000000e+00 : f32
    %188 = vector.broadcast %cst_79 : f32 to vector<8x1024xf32>
    %189 = arith.cmpf ogt, %187, %188 : vector<8x1024xf32>
    %cst_80 = arith.constant 3.000000e-01 : f32
    %190 = vector.broadcast %cst_80 : f32 to vector<8x1024xf32>
    %191 = arith.mulf %190, %187 : vector<8x1024xf32>
    %192 = arith.select %189, %187, %191 : vector<8x1024xi1>, vector<8x1024xf32>
    %193 = arith.truncf %192 : vector<8x1024xf32> to vector<8x1024xbf16>
    %cst_81 = arith.constant dense<0.000000e+00> : vector<4x1024xf32>
    %194 = tpu.matmul %10, %193, %cst_81 {dimension_numbers = #tpu.dot_dimension_numbers<[1], [0], [0], [1], [0, 0, 1, 1], [], []>} : vector<4x8xbf16>, vector<8x1024xbf16>, vector<4x1024xf32> -> vector<4x1024xf32>
    %195 = vector.broadcast %11 : vector<4x1xf32> to vector<4x1024xf32>
    %196 = arith.addf %194, %195 : vector<4x1024xf32>
    %cst_82 = arith.constant 0.000000e+00 : f32
    %197 = vector.broadcast %cst_82 : f32 to vector<4x1024xf32>
    %198 = arith.cmpf ogt, %196, %197 : vector<4x1024xf32>
    %cst_83 = arith.constant 3.000000e-01 : f32
    %199 = vector.broadcast %cst_83 : f32 to vector<4x1024xf32>
    %200 = arith.mulf %199, %196 : vector<4x1024xf32>
    %201 = arith.select %198, %196, %200 : vector<4x1024xi1>, vector<4x1024xf32>
    %202 = arith.truncf %201 : vector<4x1024xf32> to vector<4x1024xbf16>
    %cst_84 = arith.constant dense<0.000000e+00> : vector<2x1024xf32>
    %203 = tpu.matmul %12, %202, %cst_84 {dimension_numbers = #tpu.dot_dimension_numbers<[1], [0], [0], [1], [0, 0, 1, 1], [], []>} : vector<2x4xbf16>, vector<4x1024xbf16>, vector<2x1024xf32> -> vector<2x1024xf32>
    %204 = vector.broadcast %13 : vector<2x1xf32> to vector<2x1024xf32>
    %205 = arith.addf %203, %204 : vector<2x1024xf32>
    %cst_85 = arith.constant 0.000000e+00 : f32
    %206 = vector.broadcast %cst_85 : f32 to vector<2x1024xf32>
    %207 = arith.cmpf ogt, %205, %206 : vector<2x1024xf32>
    %cst_86 = arith.constant 3.000000e-01 : f32
    %208 = vector.broadcast %cst_86 : f32 to vector<2x1024xf32>
    %209 = arith.mulf %208, %205 : vector<2x1024xf32>
    %210 = arith.select %207, %205, %209 : vector<2x1024xi1>, vector<2x1024xf32>
    %211 = vector.extract_strided_slice %210 {offsets = [0, 0], sizes = [1, 128], strides = [1, 1]} : vector<2x1024xf32> to vector<1x128xf32>
    %212 = vector.extract_strided_slice %210 {offsets = [0, 128], sizes = [1, 128], strides = [1, 1]} : vector<2x1024xf32> to vector<1x128xf32>
    %213 = vector.extract_strided_slice %210 {offsets = [0, 256], sizes = [1, 128], strides = [1, 1]} : vector<2x1024xf32> to vector<1x128xf32>
    %214 = vector.extract_strided_slice %210 {offsets = [0, 384], sizes = [1, 128], strides = [1, 1]} : vector<2x1024xf32> to vector<1x128xf32>
    %215 = vector.extract_strided_slice %210 {offsets = [0, 512], sizes = [1, 128], strides = [1, 1]} : vector<2x1024xf32> to vector<1x128xf32>
    %216 = vector.extract_strided_slice %210 {offsets = [0, 640], sizes = [1, 128], strides = [1, 1]} : vector<2x1024xf32> to vector<1x128xf32>
    %217 = vector.extract_strided_slice %210 {offsets = [0, 768], sizes = [1, 128], strides = [1, 1]} : vector<2x1024xf32> to vector<1x128xf32>
    %218 = vector.extract_strided_slice %210 {offsets = [0, 896], sizes = [1, 128], strides = [1, 1]} : vector<2x1024xf32> to vector<1x128xf32>
    %219 = tpu.concatenate %211, %212, %213, %214, %215, %216, %217, %218 in 0 : vector<1x128xf32>, vector<1x128xf32>, vector<1x128xf32>, vector<1x128xf32>, vector<1x128xf32>, vector<1x128xf32>, vector<1x128xf32>, vector<1x128xf32> -> vector<8x128xf32>
    %220 = vector.extract_strided_slice %210 {offsets = [1, 0], sizes = [1, 128], strides = [1, 1]} : vector<2x1024xf32> to vector<1x128xf32>
    %221 = vector.extract_strided_slice %210 {offsets = [1, 128], sizes = [1, 128], strides = [1, 1]} : vector<2x1024xf32> to vector<1x128xf32>
    %222 = vector.extract_strided_slice %210 {offsets = [1, 256], sizes = [1, 128], strides = [1, 1]} : vector<2x1024xf32> to vector<1x128xf32>
    %223 = vector.extract_strided_slice %210 {offsets = [1, 384], sizes = [1, 128], strides = [1, 1]} : vector<2x1024xf32> to vector<1x128xf32>
    %224 = vector.extract_strided_slice %210 {offsets = [1, 512], sizes = [1, 128], strides = [1, 1]} : vector<2x1024xf32> to vector<1x128xf32>
    %225 = vector.extract_strided_slice %210 {offsets = [1, 640], sizes = [1, 128], strides = [1, 1]} : vector<2x1024xf32> to vector<1x128xf32>
    %226 = vector.extract_strided_slice %210 {offsets = [1, 768], sizes = [1, 128], strides = [1, 1]} : vector<2x1024xf32> to vector<1x128xf32>
    %227 = vector.extract_strided_slice %210 {offsets = [1, 896], sizes = [1, 128], strides = [1, 1]} : vector<2x1024xf32> to vector<1x128xf32>
    %228 = tpu.concatenate %220, %221, %222, %223, %224, %225, %226, %227 in 0 : vector<1x128xf32>, vector<1x128xf32>, vector<1x128xf32>, vector<1x128xf32>, vector<1x128xf32>, vector<1x128xf32>, vector<1x128xf32>, vector<1x128xf32> -> vector<8x128xf32>
    %229 = tpu.concatenate %219, %228 in 1 : vector<8x128xf32>, vector<8x128xf32> -> vector<8x256xf32>
    %230 = arith.truncf %229 : vector<8x256xf32> to vector<8x256xbf16>
    %cst_87 = arith.constant dense<0.000000e+00> : vector<8x128xf32>
    %231 = tpu.matmul %230, %14, %cst_87 {dimension_numbers = #tpu.dot_dimension_numbers<[1], [0], [0], [1], [0, 0, 1, 1], [], []>} : vector<8x256xbf16>, vector<256x128xbf16>, vector<8x128xf32> -> vector<8x128xf32>
    %cst_88 = arith.constant dense<0xFF800000> : vector<8xf32>
    %232 = vector.multi_reduction <maximumf>, %231, %cst_88 [1] : vector<8x128xf32> to vector<8xf32>
    %233 = vector.shape_cast %232 : vector<8xf32> to vector<8x1xf32>
    %234 = vector.broadcast %233 : vector<8x1xf32> to vector<8x128xf32>
    %235 = arith.subf %231, %234 : vector<8x128xf32>
    %236 = math.exp %235 : vector<8x128xf32>
    %cst_89 = arith.constant dense<0.000000e+00> : vector<8xf32>
    %237 = vector.multi_reduction <add>, %236, %cst_89 [1] : vector<8x128xf32> to vector<8xf32>
    %238 = vector.shape_cast %237 : vector<8xf32> to vector<8x1xf32>
    %239 = vector.broadcast %238 : vector<8x1xf32> to vector<8x128xf32>
    %240 = arith.divf %236, %239 : vector<8x128xf32>
    %c0_90 = arith.constant 0 : index
    %c0_91 = arith.constant 0 : index
    %241 = vector.load %arg17[%c0_90, %c0_91] : memref<8x128xf32, #tpu.memory_space<vmem>>, vector<8x128xf32>
    tpu.vector_store %arg17[%c0_90, %c0_91], %240 {strides = array<i32>} : memref<8x128xf32, #tpu.memory_space<vmem>>, vector<8x128xf32>,
    return
  }
  func.func @transform_0(%arg0: i32) -> (i32, i32) {
    %c0_i32 = arith.constant 0 : i32
    %c0_i32_0 = arith.constant 0 : i32
    return %c0_i32, %arg0 : i32, i32
  }
  func.func @transform_1(%arg0: i32) -> (i32, i32) {
    %c0_i32 = arith.constant 0 : i32
    %c0_i32_0 = arith.constant 0 : i32
    %c0_i32_1 = arith.constant 0 : i32
    return %c0_i32, %c0_i32_0 : i32, i32
  }
  func.func @transform_2(%arg0: i32) -> (i32, i32) {
    %c0_i32 = arith.constant 0 : i32
    %c0_i32_0 = arith.constant 0 : i32
    %c0_i32_1 = arith.constant 0 : i32
    return %c0_i32, %c0_i32_0 : i32, i32
  }
  func.func @transform_3(%arg0: i32) -> (i32, i32) {
    %c0_i32 = arith.constant 0 : i32
    %c0_i32_0 = arith.constant 0 : i32
    %c0_i32_1 = arith.constant 0 : i32
    return %c0_i32, %c0_i32_0 : i32, i32
  }
  func.func @transform_4(%arg0: i32) -> (i32, i32) {
    %c0_i32 = arith.constant 0 : i32
    %c0_i32_0 = arith.constant 0 : i32
    %c0_i32_1 = arith.constant 0 : i32
    return %c0_i32, %c0_i32_0 : i32, i32
  }
  func.func @transform_5(%arg0: i32) -> (i32, i32) {
    %c0_i32 = arith.constant 0 : i32
    %c0_i32_0 = arith.constant 0 : i32
    %c0_i32_1 = arith.constant 0 : i32
    return %c0_i32, %c0_i32_0 : i32, i32
  }
  func.func @transform_6(%arg0: i32) -> (i32, i32) {
    %c0_i32 = arith.constant 0 : i32
    %c0_i32_0 = arith.constant 0 : i32
    %c0_i32_1 = arith.constant 0 : i32
    return %c0_i32, %c0_i32_0 : i32, i32
  }
  func.func @transform_7(%arg0: i32) -> (i32, i32) {
    %c0_i32 = arith.constant 0 : i32
    %c0_i32_0 = arith.constant 0 : i32
    %c0_i32_1 = arith.constant 0 : i32
    return %c0_i32, %c0_i32_0 : i32, i32
  }
  func.func @transform_8(%arg0: i32) -> (i32, i32) {
    %c0_i32 = arith.constant 0 : i32
    %c0_i32_0 = arith.constant 0 : i32
    %c0_i32_1 = arith.constant 0 : i32
    return %c0_i32, %c0_i32_0 : i32, i32
  }
  func.func @transform_9(%arg0: i32) -> (i32, i32) {
    %c0_i32 = arith.constant 0 : i32
    %c0_i32_0 = arith.constant 0 : i32
    %c0_i32_1 = arith.constant 0 : i32
    return %c0_i32, %c0_i32_0 : i32, i32
  }
  func.func @transform_10(%arg0: i32) -> (i32, i32) {
    %c0_i32 = arith.constant 0 : i32
    %c0_i32_0 = arith.constant 0 : i32
    %c0_i32_1 = arith.constant 0 : i32
    return %c0_i32, %c0_i32_0 : i32, i32
  }
  func.func @transform_11(%arg0: i32) -> (i32, i32) {
    %c0_i32 = arith.constant 0 : i32
    %c0_i32_0 = arith.constant 0 : i32
    %c0_i32_1 = arith.constant 0 : i32
    return %c0_i32, %c0_i32_0 : i32, i32
  }
  func.func @transform_12(%arg0: i32) -> (i32, i32) {
    %c0_i32 = arith.constant 0 : i32
    %c0_i32_0 = arith.constant 0 : i32
    %c0_i32_1 = arith.constant 0 : i32
    return %c0_i32, %c0_i32_0 : i32, i32
  }
  func.func @transform_13(%arg0: i32) -> (i32, i32) {
    %c0_i32 = arith.constant 0 : i32
    %c0_i32_0 = arith.constant 0 : i32
    %c0_i32_1 = arith.constant 0 : i32
    return %c0_i32, %c0_i32_0 : i32, i32
  }
  func.func @transform_14(%arg0: i32) -> (i32, i32) {
    %c0_i32 = arith.constant 0 : i32
    %c0_i32_0 = arith.constant 0 : i32
    %c0_i32_1 = arith.constant 0 : i32
    return %c0_i32, %c0_i32_0 : i32, i32
  }
  func.func @transform_15(%arg0: i32) -> (i32, i32) {
    %c0_i32 = arith.constant 0 : i32
    %c0_i32_0 = arith.constant 0 : i32
    %c0_i32_1 = arith.constant 0 : i32
    return %c0_i32, %c0_i32_0 : i32, i32
  }
  func.func @transform_16(%arg0: i32) -> (i32, i32) {
    %c0_i32 = arith.constant 0 : i32
    %c0_i32_0 = arith.constant 0 : i32
    return %arg0, %c0_i32 : i32, i32
  }
}

</mosaic_0001>

<llo_original>
// kernel: tpu_custom_call.1
$region0: #{tpu_custom_call.1}
  #allocation0 [shape = 'u32[]', space=smem, size = 0x4, offset = 0x4, fixed_abs, tag = 'smem constant byte address 0x4 - core index']
  #allocation1 [shape = 'u32[144,128]{1,0:T(1,128)}', space=vmem, size = 0x12000, scoped, tag = 'internal scratch']
  %s0 = inlined_call_operand.hbm [shape: f32[8,4096], index: 0, kind: input, shape index: {}]
  %s1 = inlined_call_operand.vmem [shape: f32[8,128], index: 1, kind: input, shape index: {}]
  %s2 = inlined_call_operand.vmem [shape: f32[8,128], index: 2, kind: input, shape index: {}]
  %s3 = inlined_call_operand.vmem [shape: bf16[8,40], index: 3, kind: input, shape index: {}]
  %s4 = inlined_call_operand.vmem [shape: f32[8,1], index: 4, kind: input, shape index: {}]
  %s5 = inlined_call_operand.vmem [shape: bf16[8,40], index: 5, kind: input, shape index: {}]
  %s6 = inlined_call_operand.vmem [shape: f32[8,1], index: 6, kind: input, shape index: {}]
  %s7 = inlined_call_operand.vmem [shape: bf16[8,8], index: 7, kind: input, shape index: {}]
  %s8 = inlined_call_operand.vmem [shape: f32[8,1], index: 8, kind: input, shape index: {}]
  %s9 = inlined_call_operand.vmem [shape: bf16[8,8], index: 9, kind: input, shape index: {}]
  %s10 = inlined_call_operand.vmem [shape: f32[8,1], index: 10, kind: input, shape index: {}]
  %s11 = inlined_call_operand.vmem [shape: bf16[4,8], index: 11, kind: input, shape index: {}]
  %s12 = inlined_call_operand.vmem [shape: f32[4,1], index: 12, kind: input, shape index: {}]
  %s13 = inlined_call_operand.vmem [shape: bf16[2,4], index: 13, kind: input, shape index: {}]
  %s14 = inlined_call_operand.vmem [shape: f32[2,1], index: 14, kind: input, shape index: {}]
  %s15 = inlined_call_operand.hbm [shape: bf16[256,128], index: 15, kind: input, shape index: {}]
  %s16 = inlined_call_operand.hbm [shape: f32[32,128], index: 16, kind: output, shape index: {}]
  %s17 = sld [smem:[#allocation0]]
  $region105: #{tpu_custom_call.1} parent=0
    _
  %s19 = ssub.s32 1, %s17
  %s20 = scalar_select 0, %s19, %s17
  $region1: #{tpu_custom_call.1} parent=0
    #allocation2 [shape = 'u8[65536]{0}', space=vmem, size = 0x10000, scoped, tag = 'input window, operand 0']
    #allocation3 [shape = 's32[2]{0}', space=sflag, size = 0x8, scoped, tag = 'scoped memory for tpu_custom_call.1']
    #allocation4 [shape = 's32[2]{0}', space=sflag, size = 0x8, scoped, tag = 'scoped memory for tpu_custom_call.1']
    #allocation5 [shape = 'u8[65536]{0}', space=vmem, size = 0x10000, scoped, tag = 'input window, operand 15, single buffered']
    #allocation6 [shape = 's32[1]{0}', space=sflag, size = 0x4, scoped, tag = 'scoped memory for tpu_custom_call.1']
    #allocation7 [shape = 'u8[8192]{0}', space=vmem, size = 0x2000, scoped, tag = 'output window, operand 0']
    %21 = vsyncpa [#allocation3], 0
    %s22 = scalar_lea.sflag [#allocation3], 1
    %23 = vsyncpa %s22, 0
    %24 = vsyncpa [#allocation6], 0
    %25 = vsyncpa [#allocation4], 0
    %s26 = scalar_lea.sflag [#allocation4], 1
    %27 = vsyncpa %s26, 0
    loop: start=0, step=1, limit=6
    $region2: #{tpu_custom_call.1} parent=1 // loop_pre_header
      _
    $region3: #{tpu_custom_call.1} parent=1 // loop_header
      %s29 = sphi 0, %s33
      %p30 = scmp.ge.s32.totalorder %s29, 6
      %s39 = sphi 0, %s41
      %s42 = sphi 0, %s39
      %s43 = sphi 0, %s42
      %s59 = sphi 0, %s43
      %s63 = sphi 0, %s63
      %s65 = sphi 0, %s63
      %s66 = sphi 0, %s65
      %s80 = sphi 0, %s66
      %s84 = sphi 0, %s84
      %s86 = sphi 0, %s84
      %s87 = sphi 0, %s86
      %s101 = sphi 0, %s87
      %s105 = sphi 0, %s105
      %s107 = sphi 0, %s105
      %s108 = sphi 0, %s107
      %s122 = sphi 0, %s108
      %s126 = sphi 0, %s126
      %s128 = sphi 0, %s126
      %s129 = sphi 0, %s128
      %s143 = sphi 0, %s129
      %s147 = sphi 0, %s147
      %s149 = sphi 0, %s147
      %s150 = sphi 0, %s149
      %s164 = sphi 0, %s150
      %s168 = sphi 0, %s168
      %s170 = sphi 0, %s168
      %s171 = sphi 0, %s170
      %s185 = sphi 0, %s171
      %s189 = sphi 0, %s189
      %s191 = sphi 0, %s189
      %s192 = sphi 0, %s191
      %s206 = sphi 0, %s192
      %s210 = sphi 0, %s210
      %s212 = sphi 0, %s210
      %s213 = sphi 0, %s212
      %s227 = sphi 0, %s213
      %s231 = sphi 0, %s231
      %s233 = sphi 0, %s231
      %s234 = sphi 0, %s233
      %s248 = sphi 0, %s234
      %s252 = sphi 0, %s252
      %s254 = sphi 0, %s252
      %s255 = sphi 0, %s254
      %s269 = sphi 0, %s255
      %s273 = sphi 0, %s273
      %s275 = sphi 0, %s273
      %s276 = sphi 0, %s275
      %s290 = sphi 0, %s276
      %s294 = sphi 0, %s294
      %s296 = sphi 0, %s294
      %s297 = sphi 0, %s296
      %s311 = sphi 0, %s297
      %s315 = sphi 0, %s315
      %s317 = sphi 0, %s315
      %s318 = sphi 0, %s317
      %s332 = sphi 0, %s318
      %s336 = sphi 0, %s336
      %s338 = sphi 0, %s336
      %s339 = sphi 0, %s338
      %s353 = sphi 0, %s339
      %s357 = sphi 0, %s357
      %s359 = sphi 0, %s357
      %s360 = sphi 0, %s359
      %s374 = sphi 0, %s360
      %s380 = sphi 0, %s382
      %s383 = sphi 0, %s380
      %s384 = sphi 0, %s383
      %s400 = sphi 0, %s384
    $region4: #{tpu_custom_call.1} parent=1 // loop_header_branch
      %32 = sbr.rel (%p30) target = $region8
    $region5: #{tpu_custom_call.1} parent=1 // loop_body
      %s34 = ssub.s32 %s29, 1
      %s35 = ssub.s32 %s29, 2
      %s36 = sadd.s32 %s29, 1
      %s37 = ssub.s32 %s29, %s36
      %p38 = scmp.eq.s32.totalorder %s37, 0
      %s40 = sadd.s32 %s39, 1
      %s41 = scalar_select %p38, %s39, %s40
      %p44 = pneg %p38
      %p45 = scmp.eq.s32.totalorder %s29, 3
      %p46 = por %p44, %p45
      %p47 = scmp.ne.s32.totalorder %s39, %s42
      %p48 = scmp.eq.s32.totalorder %s29, 0
      %p49 = por %p47, %p48
      %p50 = scmp.ne.s32.totalorder %s39, %s42
      %p51 = scmp.eq.s32.totalorder %s34, 3
      %p52 = por %p50, %p51
      %p53 = scmp.ne.s32.totalorder %s42, %s43
      %p54 = scmp.eq.s32.totalorder %s34, 0
      %p55 = por %p53, %p54
      %p56 = scmp.ne.s32.totalorder %s42, %s43
      %p57 = scmp.eq.s32.totalorder %s35, 3
      %p58 = por %p56, %p57
      %p60 = scmp.ne.s32.totalorder %s43, %s59
      %p61 = scmp.eq.s32.totalorder %s35, 0
      %p62 = por %p60, %p61
      %s64 = sadd.s32 %s63, 1
      %p67 = scmp.eq.s32.totalorder %s29, 3
      %p68 = scmp.ne.s32.totalorder %s63, %s65
      %p69 = scmp.eq.s32.totalorder %s29, 0
      %p70 = por %p68, %p69
      %p71 = scmp.ne.s32.totalorder %s63, %s65
      %p72 = scmp.eq.s32.totalorder %s34, 3
      %p73 = por %p71, %p72
      %p74 = scmp.ne.s32.totalorder %s65, %s66
      %p75 = scmp.eq.s32.totalorder %s34, 0
      %p76 = por %p74, %p75
      %p77 = scmp.ne.s32.totalorder %s65, %s66
      %p78 = scmp.eq.s32.totalorder %s35, 3
      %p79 = por %p77, %p78
      %p81 = scmp.ne.s32.totalorder %s66, %s80
      %p82 = scmp.eq.s32.totalorder %s35, 0
      %p83 = por %p81, %p82
      %s85 = sadd.s32 %s84, 1
      %p88 = scmp.eq.s32.totalorder %s29, 3
      %p89 = scmp.ne.s32.totalorder %s84, %s86
      %p90 = scmp.eq.s32.totalorder %s29, 0
      %p91 = por %p89, %p90
      %p92 = scmp.ne.s32.totalorder %s84, %s86
      %p93 = scmp.eq.s32.totalorder %s34, 3
      %p94 = por %p92, %p93
      %p95 = scmp.ne.s32.totalorder %s86, %s87
      %p96 = scmp.eq.s32.totalorder %s34, 0
      %p97 = por %p95, %p96
      %p98 = scmp.ne.s32.totalorder %s86, %s87
      %p99 = scmp.eq.s32.totalorder %s35, 3
      %p100 = por %p98, %p99
      %p102 = scmp.ne.s32.totalorder %s87, %s101
      %p103 = scmp.eq.s32.totalorder %s35, 0
      %p104 = por %p102, %p103
      %s106 = sadd.s32 %s105, 1
      %p109 = scmp.eq.s32.totalorder %s29, 3
      %p110 = scmp.ne.s32.totalorder %s105, %s107
      %p111 = scmp.eq.s32.totalorder %s29, 0
      %p112 = por %p110, %p111
      %p113 = scmp.ne.s32.totalorder %s105, %s107
      %p114 = scmp.eq.s32.totalorder %s34, 3
      %p115 = por %p113, %p114
      %p116 = scmp.ne.s32.totalorder %s107, %s108
      %p117 = scmp.eq.s32.totalorder %s34, 0
      %p118 = por %p116, %p117
      %p119 = scmp.ne.s32.totalorder %s107, %s108
      %p120 = scmp.eq.s32.totalorder %s35, 3
      %p121 = por %p119, %p120
      %p123 = scmp.ne.s32.totalorder %s108, %s122
      %p124 = scmp.eq.s32.totalorder %s35, 0
      %p125 = por %p123, %p124
      %s127 = sadd.s32 %s126, 1
      %p130 = scmp.eq.s32.totalorder %s29, 3
      %p131 = scmp.ne.s32.totalorder %s126, %s128
      %p132 = scmp.eq.s32.totalorder %s29, 0
      %p133 = por %p131, %p132
      %p134 = scmp.ne.s32.totalorder %s126, %s128
      %p135 = scmp.eq.s32.totalorder %s34, 3
      %p136 = por %p134, %p135
      %p137 = scmp.ne.s32.totalorder %s128, %s129
      %p138 = scmp.eq.s32.totalorder %s34, 0
      %p139 = por %p137, %p138
      %p140 = scmp.ne.s32.totalorder %s128, %s129
      %p141 = scmp.eq.s32.totalorder %s35, 3
      %p142 = por %p140, %p141
      %p144 = scmp.ne.s32.totalorder %s129, %s143
      %p145 = scmp.eq.s32.totalorder %s35, 0
      %p146 = por %p144, %p145
      %s148 = sadd.s32 %s147, 1
      %p151 = scmp.eq.s32.totalorder %s29, 3
      %p152 = scmp.ne.s32.totalorder %s147, %s149
      %p153 = scmp.eq.s32.totalorder %s29, 0
      %p154 = por %p152, %p153
      %p155 = scmp.ne.s32.totalorder %s147, %s149
      %p156 = scmp.eq.s32.totalorder %s34, 3
      %p157 = por %p155, %p156
      %p158 = scmp.ne.s32.totalorder %s149, %s150
      %p159 = scmp.eq.s32.totalorder %s34, 0
      %p160 = por %p158, %p159
      %p161 = scmp.ne.s32.totalorder %s149, %s150
      %p162 = scmp.eq.s32.totalorder %s35, 3
      %p163 = por %p161, %p162
      %p165 = scmp.ne.s32.totalorder %s150, %s164
      %p166 = scmp.eq.s32.totalorder %s35, 0
      %p167 = por %p165, %p166
      %s169 = sadd.s32 %s168, 1
      %p172 = scmp.eq.s32.totalorder %s29, 3
      %p173 = scmp.ne.s32.totalorder %s168, %s170
      %p174 = scmp.eq.s32.totalorder %s29, 0
      %p175 = por %p173, %p174
      %p176 = scmp.ne.s32.totalorder %s168, %s170
      %p177 = scmp.eq.s32.totalorder %s34, 3
      %p178 = por %p176, %p177
      %p179 = scmp.ne.s32.totalorder %s170, %s171
      %p180 = scmp.eq.s32.totalorder %s34, 0
      %p181 = por %p179, %p180
      %p182 = scmp.ne.s32.totalorder %s170, %s171
      %p183 = scmp.eq.s32.totalorder %s35, 3
      %p184 = por %p182, %p183
      %p186 = scmp.ne.s32.totalorder %s171, %s185
      %p187 = scmp.eq.s32.totalorder %s35, 0
      %p188 = por %p186, %p187
      %s190 = sadd.s32 %s189, 1
      %p193 = scmp.eq.s32.totalorder %s29, 3
      %p194 = scmp.ne.s32.totalorder %s189, %s191
      %p195 = scmp.eq.s32.totalorder %s29, 0
      %p196 = por %p194, %p195
      %p197 = scmp.ne.s32.totalorder %s189, %s191
      %p198 = scmp.eq.s32.totalorder %s34, 3
      %p199 = por %p197, %p198
      %p200 = scmp.ne.s32.totalorder %s191, %s192
      %p201 = scmp.eq.s32.totalorder %s34, 0
      %p202 = por %p200, %p201
      %p203 = scmp.ne.s32.totalorder %s191, %s192
      %p204 = scmp.eq.s32.totalorder %s35, 3
      %p205 = por %p203, %p204
      %p207 = scmp.ne.s32.totalorder %s192, %s206
      %p208 = scmp.eq.s32.totalorder %s35, 0
      %p209 = por %p207, %p208
      %s211 = sadd.s32 %s210, 1
      %p214 = scmp.eq.s32.totalorder %s29, 3
      %p215 = scmp.ne.s32.totalorder %s210, %s212
      %p216 = scmp.eq.s32.totalorder %s29, 0
      %p217 = por %p215, %p216
      %p218 = scmp.ne.s32.totalorder %s210, %s212
      %p219 = scmp.eq.s32.totalorder %s34, 3
      %p220 = por %p218, %p219
      %p221 = scmp.ne.s32.totalorder %s212, %s213
      %p222 = scmp.eq.s32.totalorder %s34, 0
      %p223 = por %p221, %p222
      %p224 = scmp.ne.s32.totalorder %s212, %s213
      %p225 = scmp.eq.s32.totalorder %s35, 3
      %p226 = por %p224, %p225
      %p228 = scmp.ne.s32.totalorder %s213, %s227
      %p229 = scmp.eq.s32.totalorder %s35, 0
      %p230 = por %p228, %p229
      %s232 = sadd.s32 %s231, 1
      %p235 = scmp.eq.s32.totalorder %s29, 3
      %p236 = scmp.ne.s32.totalorder %s231, %s233
      %p237 = scmp.eq.s32.totalorder %s29, 0
      %p238 = por %p236, %p237
      %p239 = scmp.ne.s32.totalorder %s231, %s233
      %p240 = scmp.eq.s32.totalorder %s34, 3
      %p241 = por %p239, %p240
      %p242 = scmp.ne.s32.totalorder %s233, %s234
      %p243 = scmp.eq.s32.totalorder %s34, 0
      %p244 = por %p242, %p243
      %p245 = scmp.ne.s32.totalorder %s233, %s234
      %p246 = scmp.eq.s32.totalorder %s35, 3
      %p247 = por %p245, %p246
      %p249 = scmp.ne.s32.totalorder %s234, %s248
      %p250 = scmp.eq.s32.totalorder %s35, 0
      %p251 = por %p249, %p250
      %s253 = sadd.s32 %s252, 1
      %p256 = scmp.eq.s32.totalorder %s29, 3
      %p257 = scmp.ne.s32.totalorder %s252, %s254
      %p258 = scmp.eq.s32.totalorder %s29, 0
      %p259 = por %p257, %p258
      %p260 = scmp.ne.s32.totalorder %s252, %s254
      %p261 = scmp.eq.s32.totalorder %s34, 3
      %p262 = por %p260, %p261
      %p263 = scmp.ne.s32.totalorder %s254, %s255
      %p264 = scmp.eq.s32.totalorder %s34, 0
      %p265 = por %p263, %p264
      %p266 = scmp.ne.s32.totalorder %s254, %s255
      %p267 = scmp.eq.s32.totalorder %s35, 3
      %p268 = por %p266, %p267
      %p270 = scmp.ne.s32.totalorder %s255, %s269
      %p271 = scmp.eq.s32.totalorder %s35, 0
      %p272 = por %p270, %p271
      %s274 = sadd.s32 %s273, 1
      %p277 = scmp.eq.s32.totalorder %s29, 3
      %p278 = scmp.ne.s32.totalorder %s273, %s275
      %p279 = scmp.eq.s32.totalorder %s29, 0
      %p280 = por %p278, %p279
      %p281 = scmp.ne.s32.totalorder %s273, %s275
      %p282 = scmp.eq.s32.totalorder %s34, 3
      %p283 = por %p281, %p282
      %p284 = scmp.ne.s32.totalorder %s275, %s276
      %p285 = scmp.eq.s32.totalorder %s34, 0
      %p286 = por %p284, %p285
      %p287 = scmp.ne.s32.totalorder %s275, %s276
      %p288 = scmp.eq.s32.totalorder %s35, 3
      %p289 = por %p287, %p288
      %p291 = scmp.ne.s32.totalorder %s276, %s290
      %p292 = scmp.eq.s32.totalorder %s35, 0
      %p293 = por %p291, %p292
      %s295 = sadd.s32 %s294, 1
      %p298 = scmp.eq.s32.totalorder %s29, 3
      %p299 = scmp.ne.s32.totalorder %s294, %s296
      %p300 = scmp.eq.s32.totalorder %s29, 0
      %p301 = por %p299, %p300
      %p302 = scmp.ne.s32.totalorder %s294, %s296
      %p303 = scmp.eq.s32.totalorder %s34, 3
      %p304 = por %p302, %p303
      %p305 = scmp.ne.s32.totalorder %s296, %s297
      %p306 = scmp.eq.s32.totalorder %s34, 0
      %p307 = por %p305, %p306
      %p308 = scmp.ne.s32.totalorder %s296, %s297
      %p309 = scmp.eq.s32.totalorder %s35, 3
      %p310 = por %p308, %p309
      %p312 = scmp.ne.s32.totalorder %s297, %s311
      %p313 = scmp.eq.s32.totalorder %s35, 0
      %p314 = por %p312, %p313
      %s316 = sadd.s32 %s315, 1
      %p319 = scmp.eq.s32.totalorder %s29, 3
      %p320 = scmp.ne.s32.totalorder %s315, %s317
      %p321 = scmp.eq.s32.totalorder %s29, 0
      %p322 = por %p320, %p321
      %p323 = scmp.ne.s32.totalorder %s315, %s317
      %p324 = scmp.eq.s32.totalorder %s34, 3
      %p325 = por %p323, %p324
      %p326 = scmp.ne.s32.totalorder %s317, %s318
      %p327 = scmp.eq.s32.totalorder %s34, 0
      %p328 = por %p326, %p327
      %p329 = scmp.ne.s32.totalorder %s317, %s318
      %p330 = scmp.eq.s32.totalorder %s35, 3
      %p331 = por %p329, %p330
      %p333 = scmp.ne.s32.totalorder %s318, %s332
      %p334 = scmp.eq.s32.totalorder %s35, 0
      %p335 = por %p333, %p334
      %s337 = sadd.s32 %s336, 1
      %p340 = scmp.eq.s32.totalorder %s29, 3
      %p341 = scmp.ne.s32.totalorder %s336, %s338
      %p342 = scmp.eq.s32.totalorder %s29, 0
      %p343 = por %p341, %p342
      %p344 = scmp.ne.s32.totalorder %s336, %s338
      %p345 = scmp.eq.s32.totalorder %s34, 3
      %p346 = por %p344, %p345
      %p347 = scmp.ne.s32.totalorder %s338, %s339
      %p348 = scmp.eq.s32.totalorder %s34, 0
      %p349 = por %p347, %p348
      %p350 = scmp.ne.s32.totalorder %s338, %s339
      %p351 = scmp.eq.s32.totalorder %s35, 3
      %p352 = por %p350, %p351
      %p354 = scmp.ne.s32.totalorder %s339, %s353
      %p355 = scmp.eq.s32.totalorder %s35, 0
      %p356 = por %p354, %p355
      %s358 = sadd.s32 %s357, 1
      %p361 = scmp.eq.s32.totalorder %s29, 3
      %p362 = scmp.ne.s32.totalorder %s357, %s359
      %p363 = scmp.eq.s32.totalorder %s29, 0
      %p364 = por %p362, %p363
      %p365 = scmp.ne.s32.totalorder %s357, %s359
      %p366 = scmp.eq.s32.totalorder %s34, 3
      %p367 = por %p365, %p366
      %p368 = scmp.ne.s32.totalorder %s359, %s360
      %p369 = scmp.eq.s32.totalorder %s34, 0
      %p370 = por %p368, %p369
      %p371 = scmp.ne.s32.totalorder %s359, %s360
      %p372 = scmp.eq.s32.totalorder %s35, 3
      %p373 = por %p371, %p372
      %p375 = scmp.ne.s32.totalorder %s360, %s374
      %p376 = scmp.eq.s32.totalorder %s35, 0
      %p377 = por %p375, %p376
      %s378 = ssub.s32 %s29, %s36
      %p379 = scmp.eq.s32.totalorder %s378, 0
      %s381 = sadd.s32 %s380, 1
      %s382 = scalar_select %p379, %s380, %s381
      %p385 = pneg %p379
      %p386 = scmp.eq.s32.totalorder %s29, 3
      %p387 = por %p385, %p386
      %p388 = scmp.ne.s32.totalorder %s380, %s383
      %p389 = scmp.eq.s32.totalorder %s29, 0
      %p390 = por %p388, %p389
      %p391 = scmp.ne.s32.totalorder %s380, %s383
      %p392 = scmp.eq.s32.totalorder %s34, 3
      %p393 = por %p391, %p392
      %p394 = scmp.ne.s32.totalorder %s383, %s384
      %p395 = scmp.eq.s32.totalorder %s34, 0
      %p396 = por %p394, %p395
      %p397 = scmp.ne.s32.totalorder %s383, %s384
      %p398 = scmp.eq.s32.totalorder %s35, 3
      %p399 = por %p397, %p398
      %p401 = scmp.ne.s32.totalorder %s384, %s400
      %p402 = scmp.eq.s32.totalorder %s35, 0
      %p403 = por %p401, %p402
      %p404 = scmp.le.s32.totalorder 1, %s29
      %p405 = scmp.lt.s32.totalorder %s29, 5
      %p406 = pnand %p404, %p405
      %p407 = pneg %p406
      // Predicated region
      $region9: #{tpu_custom_call.1} parent=5 // pred_check
        _
      $region10: #{tpu_custom_call.1} parent=5 // pred_check_branch
        %409 = sbr.rel (%p406) target = $region12
      $region11: #{tpu_custom_call.1} parent=5 // pred_region
        %s410 = ssub.s32 %s29, 1
        // Predicated region
        $region13: #{tpu_custom_call.1} parent=11 // pred_check
          %p411 = pneg %p76
        $region14: #{tpu_custom_call.1} parent=11 // pred_check_branch
          %413 = sbr.rel (%p411) target = $region16
        $region15: #{tpu_custom_call.1} parent=11 // pred_region
          _
        $region16: #{tpu_custom_call.1} parent=11 // pred_fallthru
          _
        // Predicated region
        $region17: #{tpu_custom_call.1} parent=11 // pred_check
          %p414 = pneg %p97
        $region18: #{tpu_custom_call.1} parent=11 // pred_check_branch
          %416 = sbr.rel (%p414) target = $region20
        $region19: #{tpu_custom_call.1} parent=11 // pred_region
          _
        $region20: #{tpu_custom_call.1} parent=11 // pred_fallthru
          _
        // Predicated region
        $region21: #{tpu_custom_call.1} parent=11 // pred_check
          %p417 = pneg %p118
        $region22: #{tpu_custom_call.1} parent=11 // pred_check_branch
          %419 = sbr.rel (%p417) target = $region24
        $region23: #{tpu_custom_call.1} parent=11 // pred_region
          _
        $region24: #{tpu_custom_call.1} parent=11 // pred_fallthru
          _
        // Predicated region
        $region25: #{tpu_custom_call.1} parent=11 // pred_check
          %p420 = pneg %p139
        $region26: #{tpu_custom_call.1} parent=11 // pred_check_branch
          %422 = sbr.rel (%p420) target = $region28
        $region27: #{tpu_custom_call.1} parent=11 // pred_region
          _
        $region28: #{tpu_custom_call.1} parent=11 // pred_fallthru
          _
        // Predicated region
        $region29: #{tpu_custom_call.1} parent=11 // pred_check
          %p423 = pneg %p160
        $region30: #{tpu_custom_call.1} parent=11 // pred_check_branch
          %425 = sbr.rel (%p423) target = $region32
        $region31: #{tpu_custom_call.1} parent=11 // pred_region
          _
        $region32: #{tpu_custom_call.1} parent=11 // pred_fallthru
          _
        // Predicated region
        $region33: #{tpu_custom_call.1} parent=11 // pred_check
          %p426 = pneg %p181
        $region34: #{tpu_custom_call.1} parent=11 // pred_check_branch
          %428 = sbr.rel (%p426) target = $region36
        $region35: #{tpu_custom_call.1} parent=11 // pred_region
          _
        $region36: #{tpu_custom_call.1} parent=11 // pred_fallthru
          _
        // Predicated region
        $region37: #{tpu_custom_call.1} parent=11 // pred_check
          %p429 = pneg %p202
        $region38: #{tpu_custom_call.1} parent=11 // pred_check_branch
          %431 = sbr.rel (%p429) target = $region40
        $region39: #{tpu_custom_call.1} parent=11 // pred_region
          _
        $region40: #{tpu_custom_call.1} parent=11 // pred_fallthru
          _
        // Predicated region
        $region41: #{tpu_custom_call.1} parent=11 // pred_check
          %p432 = pneg %p223
        $region42: #{tpu_custom_call.1} parent=11 // pred_check_branch
          %434 = sbr.rel (%p432) target = $region44
        $region43: #{tpu_custom_call.1} parent=11 // pred_region
          _
        $region44: #{tpu_custom_call.1} parent=11 // pred_fallthru
          _
        // Predicated region
        $region45: #{tpu_custom_call.1} parent=11 // pred_check
          %p435 = pneg %p244
        $region46: #{tpu_custom_call.1} parent=11 // pred_check_branch
          %437 = sbr.rel (%p435) target = $region48
        $region47: #{tpu_custom_call.1} parent=11 // pred_region
          _
        $region48: #{tpu_custom_call.1} parent=11 // pred_fallthru
          _
        // Predicated region
        $region49: #{tpu_custom_call.1} parent=11 // pred_check
          %p438 = pneg %p265
        $region50: #{tpu_custom_call.1} parent=11 // pred_check_branch
          %440 = sbr.rel (%p438) target = $region52
        $region51: #{tpu_custom_call.1} parent=11 // pred_region
          _
        $region52: #{tpu_custom_call.1} parent=11 // pred_fallthru
          _
        // Predicated region
        $region53: #{tpu_custom_call.1} parent=11 // pred_check
          %p441 = pneg %p286
        $region54: #{tpu_custom_call.1} parent=11 // pred_check_branch
          %443 = sbr.rel (%p441) target = $region56
        $region55: #{tpu_custom_call.1} parent=11 // pred_region
          _
        $region56: #{tpu_custom_call.1} parent=11 // pred_fallthru
          _
        // Predicated region
        $region57: #{tpu_custom_call.1} parent=11 // pred_check
          %p444 = pneg %p307
        $region58: #{tpu_custom_call.1} parent=11 // pred_check_branch
          %446 = sbr.rel (%p444) target = $region60
        $region59: #{tpu_custom_call.1} parent=11 // pred_region
          _
        $region60: #{tpu_custom_call.1} parent=11 // pred_fallthru
          _
        // Predicated region
        $region61: #{tpu_custom_call.1} parent=11 // pred_check
          %p447 = pneg %p328
        $region62: #{tpu_custom_call.1} parent=11 // pred_check_branch
          %449 = sbr.rel (%p447) target = $region64
        $region63: #{tpu_custom_call.1} parent=11 // pred_region
          _
        $region64: #{tpu_custom_call.1} parent=11 // pred_fallthru
          _
        // Predicated region
        $region65: #{tpu_custom_call.1} parent=11 // pred_check
          %p450 = pneg %p349
        $region66: #{tpu_custom_call.1} parent=11 // pred_check_branch
          %452 = sbr.rel (%p450) target = $region68
        $region67: #{tpu_custom_call.1} parent=11 // pred_region
          _
        $region68: #{tpu_custom_call.1} parent=11 // pred_fallthru
          _
        // Predicated region
        $region69: #{tpu_custom_call.1} parent=11 // pred_check
          %p453 = pneg %p370
        $region70: #{tpu_custom_call.1} parent=11 // pred_check_branch
          %455 = sbr.rel (%p453) target = $region72
        $region71: #{tpu_custom_call.1} parent=11 // pred_region
          %s457 = ssub.s32 2048, 2048
          %458 = vsyncadd [#allocation6], %s457
          %s459 = sshll.u32 [#allocation5], 4
          %s460 = int_to_ptr.vmem [resolvable:$true] %s459
          %465 = dma.hbm_to_vmem [thread:$0]  %s15, 2048, %s460, [#allocation6], 64, 64, 4
        $region72: #{tpu_custom_call.1} parent=11 // pred_fallthru
          _
      $region12: #{tpu_custom_call.1} parent=5 // pred_fallthru
        _
      %p466 = scmp.lt.s32.totalorder %s29, 4
      // Predicated region
      $region73: #{tpu_custom_call.1} parent=5 // pred_check
        %p467 = pneg %p466
      $region74: #{tpu_custom_call.1} parent=5 // pred_check_branch
        %469 = sbr.rel (%p467) target = $region76
      $region75: #{tpu_custom_call.1} parent=5 // pred_region
        // Predicated region
        $region77: #{tpu_custom_call.1} parent=75 // pred_check
          %p470 = pneg %p49
        $region78: #{tpu_custom_call.1} parent=75 // pred_check_branch
          %472 = sbr.rel (%p470) target = $region80
        $region79: #{tpu_custom_call.1} parent=75 // pred_region
          %s473 = sand.u32 %s39, 1
          %s474 = scalar_lea.sflag [#allocation3], %s473
          %s475 = sand.u32 %s39, 1
          %s476 = smul.addr %s475, 64
          %s477 = scalar_lea.vmem [#allocation2], %s476
          %s478 = smul.u32 8, %s29
          %s480 = ssub.s32 1024, 1024
          %481 = vsyncadd %s474, %s480
          %s482 = smul.addr %s478, 128
          %s483 = scalar_lea.hbm %s0, %s482
          %s485 = sshll.u32 %s477, 4
          %s486 = int_to_ptr.vmem [resolvable:$true] %s485
          %488 = dma.hbm_to_vmem [thread:$0]  %s483, 1024, %s486, %s474
        $region80: #{tpu_custom_call.1} parent=75 // pred_fallthru
          _
      $region76: #{tpu_custom_call.1} parent=5 // pred_fallthru
        _
      %p489 = scmp.le.s32.totalorder 1, %s29
      %p490 = scmp.lt.s32.totalorder %s29, 5
      %p491 = pnand %p489, %p490
      %p492 = pneg %p491
      // Predicated region
      $region81: #{tpu_custom_call.1} parent=5 // pred_check
        _
      $region82: #{tpu_custom_call.1} parent=5 // pred_check_branch
        %494 = sbr.rel (%p491) target = $region84
      $region83: #{tpu_custom_call.1} parent=5 // pred_region
        %s495 = ssub.s32 %s29, 1
        %s496 = sand.u32 %s42, 1
        %s497 = scalar_lea.sflag [#allocation3], %s496
        %s498 = sand.u32 %s42, 1
        %s499 = smul.addr %s498, 64
        %s500 = scalar_lea.vmem [#allocation2], %s499
        // Predicated region
        $region85: #{tpu_custom_call.1} parent=83 // pred_check
          %p501 = pneg %p55
        $region86: #{tpu_custom_call.1} parent=83 // pred_check_branch
          %503 = sbr.rel (%p501) target = $region88
        $region87: #{tpu_custom_call.1} parent=83 // pred_region
          %504 = dma.done %s497, 1024
        $region88: #{tpu_custom_call.1} parent=83 // pred_fallthru
          _
        // Predicated region
        $region89: #{tpu_custom_call.1} parent=83 // pred_check
          %p505 = pneg %p370
        $region90: #{tpu_custom_call.1} parent=83 // pred_check_branch
          %507 = sbr.rel (%p505) target = $region92
        $region91: #{tpu_custom_call.1} parent=83 // pred_region
          %508 = dma.done [#allocation6], 2048
        $region92: #{tpu_custom_call.1} parent=83 // pred_fallthru
          _
        %s509 = sand.u32 %s42, 1
        %s510 = scalar_lea.sflag [#allocation3], %s509
        %s511 = sand.u32 %s42, 1
        %s512 = smul.addr %s511, 64
        %s513 = scalar_lea.vmem [#allocation2], %s512
        %p514 = pneg %p55
        %p515 = pneg %p52
        %p516 = pneg %p76
        %p517 = pneg %p73
        %p518 = pneg %p97
        %p519 = pneg %p94
        %p520 = pneg %p118
        %p521 = pneg %p115
        %p522 = pneg %p139
        %p523 = pneg %p136
        %p524 = pneg %p160
        %p525 = pneg %p157
        %p526 = pneg %p181
        %p527 = pneg %p178
        %p528 = pneg %p202
        %p529 = pneg %p199
        %p530 = pneg %p223
        %p531 = pneg %p220
        %p532 = pneg %p244
        %p533 = pneg %p241
        %p534 = pneg %p265
        %p535 = pneg %p262
        %p536 = pneg %p286
        %p537 = pneg %p283
        %p538 = pneg %p307
        %p539 = pneg %p304
        %p540 = pneg %p328
        %p541 = pneg %p325
        %p542 = pneg %p349
        %p543 = pneg %p346
        %p544 = pneg %p370
        %p545 = pneg %p367
        %p546 = pneg %p396
        %p547 = pneg %p393
        %s548 = sand.u32 %s383, 1
        %s549 = scalar_lea.sflag [#allocation4], %s548
        %s550 = sand.u32 %s383, 1
        %s551 = smul.addr %s550, 8
        %s552 = scalar_lea.vmem [#allocation7], %s551
        %s553 = smul.u32 8, %s34
        %v555 = vld [vmem:[%s1] sm:$0xff]
        %v556 = vld [vmem:[%s2] sm:$0xff]
        %v557 = vld [vmem:[%s3] sm:$0xf]
        %v558 = vld [vmem:[%s4] sm:$0xff]
        %v559 = vld [vmem:[%s5] sm:$0xf]
        %v560 = vld [vmem:[%s6] sm:$0xff]
        %v561 = vld [vmem:[%s7] sm:$0xf]
        %v562 = vld [vmem:[%s8] sm:$0xff]
        %v563 = vld [vmem:[%s9] sm:$0xf]
        %v564 = vld [vmem:[%s10] sm:$0xff]
        %v565 = vld [vmem:[%s11] sm:$0x3]
        %v566 = vld [vmem:[%s12] sm:$0xf]
        %v567 = vld [vmem:[%s13] sm:$0x1]
        %v568 = vld [vmem:[%s14] sm:$0x3]
        %v569 = vld [vmem:[#allocation5] sm:$0xf]
        %v570 = vld [vmem:[#allocation5 + $0x4] sm:$0xf]
        %v571 = vld [vmem:[#allocation5 + $0x8] sm:$0xf]
        %v572 = vld [vmem:[#allocation5 + $0xc] sm:$0xf]
        %v573 = vld [vmem:[#allocation5 + $0x10] sm:$0xf]
        %v574 = vld [vmem:[#allocation5 + $0x14] sm:$0xf]
        %v575 = vld [vmem:[#allocation5 + $0x18] sm:$0xf]
        %v576 = vld [vmem:[#allocation5 + $0x1c] sm:$0xf]
        %v577 = vld [vmem:[#allocation5 + $0x20] sm:$0xf]
        %v578 = vld [vmem:[#allocation5 + $0x24] sm:$0xf]
        %v579 = vld [vmem:[#allocation5 + $0x28] sm:$0xf]
        %v580 = vld [vmem:[#allocation5 + $0x2c] sm:$0xf]
        %v581 = vld [vmem:[#allocation5 + $0x30] sm:$0xf]
        %v582 = vld [vmem:[#allocation5 + $0x34] sm:$0xf]
        %v583 = vld [vmem:[#allocation5 + $0x38] sm:$0xf]
        %v584 = vld [vmem:[#allocation5 + $0x3c] sm:$0xf]
        %v585 = vld [vmem:[#allocation5 + $0x40] sm:$0xf]
        %v586 = vld [vmem:[#allocation5 + $0x44] sm:$0xf]
        %v587 = vld [vmem:[#allocation5 + $0x48] sm:$0xf]
        %v588 = vld [vmem:[#allocation5 + $0x4c] sm:$0xf]
        %v589 = vld [vmem:[#allocation5 + $0x50] sm:$0xf]
        %v590 = vld [vmem:[#allocation5 + $0x54] sm:$0xf]
        %v591 = vld [vmem:[#allocation5 + $0x58] sm:$0xf]
        %v592 = vld [vmem:[#allocation5 + $0x5c] sm:$0xf]
        %v593 = vld [vmem:[#allocation5 + $0x60] sm:$0xf]
        %v594 = vld [vmem:[#allocation5 + $0x64] sm:$0xf]
        %v595 = vld [vmem:[#allocation5 + $0x68] sm:$0xf]
        %v596 = vld [vmem:[#allocation5 + $0x6c] sm:$0xf]
        %v597 = vld [vmem:[#allocation5 + $0x70] sm:$0xf]
        %v598 = vld [vmem:[#allocation5 + $0x74] sm:$0xf]
        %v599 = vld [vmem:[#allocation5 + $0x78] sm:$0xf]
        %v600 = vld [vmem:[#allocation5 + $0x7c] sm:$0xf]
        %v601 = vlaneseq
        %v602 = vand.u32 %v601, 127
        %v603 = vadd.s32 %v602, 128
        %v604 = vadd.s32 %v602, 256
        %v605 = vadd.s32 %v602, 384
        %v606 = vadd.s32 %v602, 512
        %v607 = vadd.s32 %v602, 640
        %v608 = vadd.s32 %v602, 768
        %v609 = vadd.s32 %v602, 896
        %v610 = vlaneseq
        %v611 = vshrl.u32 %v610, 7
        %v612 = vmul.u32 %v611, 128
        %vm613 = vcmp.ge.s32.totalorder %v602, %v612
        %vm614 = vcmp.ge.s32.totalorder %v603, %v612
        %vm615 = vcmp.ge.s32.totalorder %v604, %v612
        %vm616 = vcmp.ge.s32.totalorder %v605, %v612
        %vm617 = vcmp.ge.s32.totalorder %v606, %v612
        %vm618 = vcmp.ge.s32.totalorder %v607, %v612
        %vm619 = vcmp.ge.s32.totalorder %v608, %v612
        %vm620 = vcmp.ge.s32.totalorder %v609, %v612
        %v621 = vadd.s32 %v612, 128
        %vm622 = vcmp.lt.s32.totalorder %v602, %v621
        %vm623 = vcmp.lt.s32.totalorder %v603, %v621
        %vm624 = vcmp.lt.s32.totalorder %v604, %v621
        %vm625 = vcmp.lt.s32.totalorder %v605, %v621
        %vm626 = vcmp.lt.s32.totalorder %v606, %v621
        %vm627 = vcmp.lt.s32.totalorder %v607, %v621
        %vm628 = vcmp.lt.s32.totalorder %v608, %v621
        %vm629 = vcmp.lt.s32.totalorder %v609, %v621
        %vm630 = vmand %vm613, %vm622
        %vm631 = vmand %vm614, %vm623
        %vm632 = vmand %vm615, %vm624
        %vm633 = vmand %vm616, %vm625
        %vm634 = vmand %vm617, %vm626
        %vm635 = vmand %vm618, %vm627
        %vm636 = vmand %vm619, %vm628
        %vm637 = vmand %vm620, %vm629
        %v638 = vsel %vm630, 1.0, 0.0
        %v639 = vsel %vm631, 1.0, 0.0
        %v640 = vsel %vm632, 1.0, 0.0
        %v641 = vsel %vm633, 1.0, 0.0
        %v642 = vsel %vm634, 1.0, 0.0
        %v643 = vsel %vm635, 1.0, 0.0
        %v644 = vsel %vm636, 1.0, 0.0
        %v645 = vsel %vm637, 1.0, 0.0
        %v646 = vpack.c.bf16 %v638, %v638
        %v647 = vpack.c.bf16 %v639, %v639
        %v648 = vpack.c.bf16 %v640, %v640
        %v649 = vpack.c.bf16 %v641, %v641
        %v650 = vpack.c.bf16 %v642, %v642
        %v651 = vpack.c.bf16 %v643, %v643
        %v652 = vpack.c.bf16 %v644, %v644
        %v653 = vpack.c.bf16 %v645, %v645
        %v654 = vcvt.s32.f32 %v612
        %v655 = vsel %vm630, %v654, 0.0
        %v656 = vsel %vm631, %v654, 0.0
        %v657 = vsel %vm632, %v654, 0.0
        %v658 = vsel %vm633, %v654, 0.0
        %v659 = vsel %vm634, %v654, 0.0
        %v660 = vsel %vm635, %v654, 0.0
        %v661 = vsel %vm636, %v654, 0.0
        %v662 = vsel %vm637, %v654, 0.0
        %v663 = vrot.slane %v655, 4
        %v664 = vadd.f32 %v655, %v663
        %v665 = vrot.slane %v664, 2
        %v666 = vadd.f32 %v664, %v665
        %v667 = vrot.slane %v666, 1
        %v668 = vadd.f32 %v666, %v667
        %v669 = vrot.slane %v656, 4
        %v670 = vadd.f32 %v656, %v669
        %v671 = vrot.slane %v670, 2
        %v672 = vadd.f32 %v670, %v671
        %v673 = vrot.slane %v672, 1
        %v674 = vadd.f32 %v672, %v673
        %v675 = vrot.slane %v657, 4
        %v676 = vadd.f32 %v657, %v675
        %v677 = vrot.slane %v676, 2
        %v678 = vadd.f32 %v676, %v677
        %v679 = vrot.slane %v678, 1
        %v680 = vadd.f32 %v678, %v679
        %v681 = vrot.slane %v658, 4
        %v682 = vadd.f32 %v658, %v681
        %v683 = vrot.slane %v682, 2
        %v684 = vadd.f32 %v682, %v683
        %v685 = vrot.slane %v684, 1
        %v686 = vadd.f32 %v684, %v685
        %v687 = vrot.slane %v659, 4
        %v688 = vadd.f32 %v659, %v687
        %v689 = vrot.slane %v688, 2
        %v690 = vadd.f32 %v688, %v689
        %v691 = vrot.slane %v690, 1
        %v692 = vadd.f32 %v690, %v691
        %v693 = vrot.slane %v660, 4
        %v694 = vadd.f32 %v660, %v693
        %v695 = vrot.slane %v694, 2
        %v696 = vadd.f32 %v694, %v695
        %v697 = vrot.slane %v696, 1
        %v698 = vadd.f32 %v696, %v697
        %v699 = vrot.slane %v661, 4
        %v700 = vadd.f32 %v661, %v699
        %v701 = vrot.slane %v700, 2
        %v702 = vadd.f32 %v700, %v701
        %v703 = vrot.slane %v702, 1
        %v704 = vadd.f32 %v702, %v703
        %v705 = vrot.slane %v662, 4
        %v706 = vadd.f32 %v662, %v705
        %v707 = vrot.slane %v706, 2
        %v708 = vadd.f32 %v706, %v707
        %v709 = vrot.slane %v708, 1
        %v710 = vadd.f32 %v708, %v709
        %v711 = vcvt.s32.f32 %v602
        %v712 = vcvt.s32.f32 %v603
        %v713 = vcvt.s32.f32 %v604
        %v714 = vcvt.s32.f32 %v605
        %v715 = vcvt.s32.f32 %v606
        %v716 = vcvt.s32.f32 %v607
        %v717 = vcvt.s32.f32 %v608
        %v718 = vcvt.s32.f32 %v609
        %v719 = vsub.f32 %v711, %v668
        %v720 = vsub.f32 %v712, %v674
        %v721 = vsub.f32 %v713, %v680
        %v722 = vsub.f32 %v714, %v686
        %v723 = vsub.f32 %v715, %v692
        %v724 = vsub.f32 %v716, %v698
        %v725 = vsub.f32 %v717, %v704
        %v726 = vsub.f32 %v718, %v710
        %v727 = vadd.f32 %v719, -2.0
        %v728 = vadd.f32 %v720, -2.0
        %v729 = vadd.f32 %v721, -2.0
        %v730 = vadd.f32 %v722, -2.0
        %v731 = vadd.f32 %v723, -2.0
        %v732 = vadd.f32 %v724, -2.0
        %v733 = vadd.f32 %v725, -2.0
        %v734 = vadd.f32 %v726, -2.0
        %vm735 = vcmp.ge.f32.partialorder %v727, 0.0
        %vm736 = vcmp.ge.f32.partialorder %v728, 0.0
        %vm737 = vcmp.ge.f32.partialorder %v729, 0.0
        %vm738 = vcmp.ge.f32.partialorder %v730, 0.0
        %vm739 = vcmp.ge.f32.partialorder %v731, 0.0
        %vm740 = vcmp.ge.f32.partialorder %v732, 0.0
        %vm741 = vcmp.ge.f32.partialorder %v733, 0.0
        %vm742 = vcmp.ge.f32.partialorder %v734, 0.0
        %vm743 = vcmp.lt.f32.partialorder %v727, 128.0
        %vm744 = vcmp.lt.f32.partialorder %v728, 128.0
        %vm745 = vcmp.lt.f32.partialorder %v729, 128.0
        %vm746 = vcmp.lt.f32.partialorder %v730, 128.0
        %vm747 = vcmp.lt.f32.partialorder %v731, 128.0
        %vm748 = vcmp.lt.f32.partialorder %v732, 128.0
        %vm749 = vcmp.lt.f32.partialorder %v733, 128.0
        %vm750 = vcmp.lt.f32.partialorder %v734, 128.0
        %vm751 = vmand %vm735, %vm743
        %vm752 = vmand %vm736, %vm744
        %vm753 = vmand %vm737, %vm745
        %vm754 = vmand %vm738, %vm746
        %vm755 = vmand %vm739, %vm747
        %vm756 = vmand %vm740, %vm748
        %vm757 = vmand %vm741, %vm749
        %vm758 = vmand %vm742, %vm750
        %v759 = vsel %vm751, 1.0, 0.0
        %v760 = vsel %vm752, 1.0, 0.0
        %v761 = vsel %vm753, 1.0, 0.0
        %v762 = vsel %vm754, 1.0, 0.0
        %v763 = vsel %vm755, 1.0, 0.0
        %v764 = vsel %vm756, 1.0, 0.0
        %v765 = vsel %vm757, 1.0, 0.0
        %v766 = vsel %vm758, 1.0, 0.0
        %v767 = vadd.f32 %v719, -1.0
        %v768 = vadd.f32 %v720, -1.0
        %v769 = vadd.f32 %v721, -1.0
        %v770 = vadd.f32 %v722, -1.0
        %v771 = vadd.f32 %v723, -1.0
        %v772 = vadd.f32 %v724, -1.0
        %v773 = vadd.f32 %v725, -1.0
        %v774 = vadd.f32 %v726, -1.0
        %vm775 = vcmp.ge.f32.partialorder %v767, 0.0
        %vm776 = vcmp.ge.f32.partialorder %v768, 0.0
        %vm777 = vcmp.ge.f32.partialorder %v769, 0.0
        %vm778 = vcmp.ge.f32.partialorder %v770, 0.0
        %vm779 = vcmp.ge.f32.partialorder %v771, 0.0
        %vm780 = vcmp.ge.f32.partialorder %v772, 0.0
        %vm781 = vcmp.ge.f32.partialorder %v773, 0.0
        %vm782 = vcmp.ge.f32.partialorder %v774, 0.0
        %vm783 = vcmp.lt.f32.partialorder %v767, 128.0
        %vm784 = vcmp.lt.f32.partialorder %v768, 128.0
        %vm785 = vcmp.lt.f32.partialorder %v769, 128.0
        %vm786 = vcmp.lt.f32.partialorder %v770, 128.0
        %vm787 = vcmp.lt.f32.partialorder %v771, 128.0
        %vm788 = vcmp.lt.f32.partialorder %v772, 128.0
        %vm789 = vcmp.lt.f32.partialorder %v773, 128.0
        %vm790 = vcmp.lt.f32.partialorder %v774, 128.0
        %vm791 = vmand %vm775, %vm783
        %vm792 = vmand %vm776, %vm784
        %vm793 = vmand %vm777, %vm785
        %vm794 = vmand %vm778, %vm786
        %vm795 = vmand %vm779, %vm787
        %vm796 = vmand %vm780, %vm788
        %vm797 = vmand %vm781, %vm789
        %vm798 = vmand %vm782, %vm790
        %v799 = vsel %vm791, 1.0, 0.0
        %v800 = vsel %vm792, 1.0, 0.0
        %v801 = vsel %vm793, 1.0, 0.0
        %v802 = vsel %vm794, 1.0, 0.0
        %v803 = vsel %vm795, 1.0, 0.0
        %v804 = vsel %vm796, 1.0, 0.0
        %v805 = vsel %vm797, 1.0, 0.0
        %v806 = vsel %vm798, 1.0, 0.0
        %v807 = vadd.f32 %v719, 1.0
        %v808 = vadd.f32 %v720, 1.0
        %v809 = vadd.f32 %v721, 1.0
        %v810 = vadd.f32 %v722, 1.0
        %v811 = vadd.f32 %v723, 1.0
        %v812 = vadd.f32 %v724, 1.0
        %v813 = vadd.f32 %v725, 1.0
        %v814 = vadd.f32 %v726, 1.0
        %vm815 = vcmp.ge.f32.partialorder %v807, 0.0
        %vm816 = vcmp.ge.f32.partialorder %v808, 0.0
        %vm817 = vcmp.ge.f32.partialorder %v809, 0.0
        %vm818 = vcmp.ge.f32.partialorder %v810, 0.0
        %vm819 = vcmp.ge.f32.partialorder %v811, 0.0
        %vm820 = vcmp.ge.f32.partialorder %v812, 0.0
        %vm821 = vcmp.ge.f32.partialorder %v813, 0.0
        %vm822 = vcmp.ge.f32.partialorder %v814, 0.0
        %vm823 = vcmp.lt.f32.partialorder %v807, 128.0
        %vm824 = vcmp.lt.f32.partialorder %v808, 128.0
        %vm825 = vcmp.lt.f32.partialorder %v809, 128.0
        %vm826 = vcmp.lt.f32.partialorder %v810, 128.0
        %vm827 = vcmp.lt.f32.partialorder %v811, 128.0
        %vm828 = vcmp.lt.f32.partialorder %v812, 128.0
        %vm829 = vcmp.lt.f32.partialorder %v813, 128.0
        %vm830 = vcmp.lt.f32.partialorder %v814, 128.0
        %vm831 = vmand %vm815, %vm823
        %vm832 = vmand %vm816, %vm824
        %vm833 = vmand %vm817, %vm825
        %vm834 = vmand %vm818, %vm826
        %vm835 = vmand %vm819, %vm827
        %vm836 = vmand %vm820, %vm828
        %vm837 = vmand %vm821, %vm829
        %vm838 = vmand %vm822, %vm830
        %v839 = vsel %vm831, 1.0, 0.0
        %v840 = vsel %vm832, 1.0, 0.0
        %v841 = vsel %vm833, 1.0, 0.0
        %v842 = vsel %vm834, 1.0, 0.0
        %v843 = vsel %vm835, 1.0, 0.0
        %v844 = vsel %vm836, 1.0, 0.0
        %v845 = vsel %vm837, 1.0, 0.0
        %v846 = vsel %vm838, 1.0, 0.0
        %v847 = vadd.f32 %v719, 2.0
        %v848 = vadd.f32 %v720, 2.0
        %v849 = vadd.f32 %v721, 2.0
        %v850 = vadd.f32 %v722, 2.0
        %v851 = vadd.f32 %v723, 2.0
        %v852 = vadd.f32 %v724, 2.0
        %v853 = vadd.f32 %v725, 2.0
        %v854 = vadd.f32 %v726, 2.0
        %vm855 = vcmp.ge.f32.partialorder %v847, 0.0
        %vm856 = vcmp.ge.f32.partialorder %v848, 0.0
        %vm857 = vcmp.ge.f32.partialorder %v849, 0.0
        %vm858 = vcmp.ge.f32.partialorder %v850, 0.0
        %vm859 = vcmp.ge.f32.partialorder %v851, 0.0
        %vm860 = vcmp.ge.f32.partialorder %v852, 0.0
        %vm861 = vcmp.ge.f32.partialorder %v853, 0.0
        %vm862 = vcmp.ge.f32.partialorder %v854, 0.0
        %vm863 = vcmp.lt.f32.partialorder %v847, 128.0
        %vm864 = vcmp.lt.f32.partialorder %v848, 128.0
        %vm865 = vcmp.lt.f32.partialorder %v849, 128.0
        %vm866 = vcmp.lt.f32.partialorder %v850, 128.0
        %vm867 = vcmp.lt.f32.partialorder %v851, 128.0
        %vm868 = vcmp.lt.f32.partialorder %v852, 128.0
        %vm869 = vcmp.lt.f32.partialorder %v853, 128.0
        %vm870 = vcmp.lt.f32.partialorder %v854, 128.0
        %vm871 = vmand %vm855, %vm863
        %vm872 = vmand %vm856, %vm864
        %vm873 = vmand %vm857, %vm865
        %vm874 = vmand %vm858, %vm866
        %vm875 = vmand %vm859, %vm867
        %vm876 = vmand %vm860, %vm868
        %vm877 = vmand %vm861, %vm869
        %vm878 = vmand %vm862, %vm870
        %v879 = vsel %vm871, 1.0, 0.0
        %v880 = vsel %vm872, 1.0, 0.0
        %v881 = vsel %vm873, 1.0, 0.0
        %v882 = vsel %vm874, 1.0, 0.0
        %v883 = vsel %vm875, 1.0, 0.0
        %v884 = vsel %vm876, 1.0, 0.0
        %v885 = vsel %vm877, 1.0, 0.0
        %v886 = vsel %vm878, 1.0, 0.0
        %v887 = vld [vmem:[%s500] sm:$0xff]
        %v888 = vld [vmem:[%s500 + $0x8] sm:$0xff]
        %v889 = vld [vmem:[%s500 + $0x10] sm:$0xff]
        %v890 = vld [vmem:[%s500 + $0x18] sm:$0xff]
        %v891 = vld [vmem:[%s500 + $0x20] sm:$0xff]
        %v892 = vld [vmem:[%s500 + $0x28] sm:$0xff]
        %v893 = vld [vmem:[%s500 + $0x30] sm:$0xff]
        %v894 = vld [vmem:[%s500 + $0x38] sm:$0xff]
        %v895 = vrot.slane %v887, 4
        %v896 = vadd.f32 %v887, %v895
        %v897 = vrot.slane %v896, 2
        %v898 = vadd.f32 %v896, %v897
        %v899 = vrot.slane %v898, 1
        %v900 = vadd.f32 %v898, %v899
        %v901 = vrot.slane %v888, 4
        %v902 = vadd.f32 %v888, %v901
        %v903 = vrot.slane %v902, 2
        %v904 = vadd.f32 %v902, %v903
        %v905 = vrot.slane %v904, 1
        %v906 = vadd.f32 %v904, %v905
        %v907 = vrot.slane %v889, 4
        %v908 = vadd.f32 %v889, %v907
        %v909 = vrot.slane %v908, 2
        %v910 = vadd.f32 %v908, %v909
        %v911 = vrot.slane %v910, 1
        %v912 = vadd.f32 %v910, %v911
        %v913 = vrot.slane %v890, 4
        %v914 = vadd.f32 %v890, %v913
        %v915 = vrot.slane %v914, 2
        %v916 = vadd.f32 %v914, %v915
        %v917 = vrot.slane %v916, 1
        %v918 = vadd.f32 %v916, %v917
        %v919 = vrot.slane %v891, 4
        %v920 = vadd.f32 %v891, %v919
        %v921 = vrot.slane %v920, 2
        %v922 = vadd.f32 %v920, %v921
        %v923 = vrot.slane %v922, 1
        %v924 = vadd.f32 %v922, %v923
        %v925 = vrot.slane %v892, 4
        %v926 = vadd.f32 %v892, %v925
        %v927 = vrot.slane %v926, 2
        %v928 = vadd.f32 %v926, %v927
        %v929 = vrot.slane %v928, 1
        %v930 = vadd.f32 %v928, %v929
        %v931 = vrot.slane %v893, 4
        %v932 = vadd.f32 %v893, %v931
        %v933 = vrot.slane %v932, 2
        %v934 = vadd.f32 %v932, %v933
        %v935 = vrot.slane %v934, 1
        %v936 = vadd.f32 %v934, %v935
        %v937 = vrot.slane %v894, 4
        %v938 = vadd.f32 %v894, %v937
        %v939 = vrot.slane %v938, 2
        %v940 = vadd.f32 %v938, %v939
        %v941 = vrot.slane %v940, 1
        %v942 = vadd.f32 %v940, %v941
        %v943 = vmul.f32 %v887, %v887
        %v944 = vmul.f32 %v888, %v888
        %v945 = vmul.f32 %v889, %v889
        %v946 = vmul.f32 %v890, %v890
        %v947 = vmul.f32 %v891, %v891
        %v948 = vmul.f32 %v892, %v892
        %v949 = vmul.f32 %v893, %v893
        %v950 = vmul.f32 %v894, %v894
        %v951 = vrot.slane %v943, 4
        %v952 = vadd.f32 %v943, %v951
        %v953 = vrot.slane %v952, 2
        %v954 = vadd.f32 %v952, %v953
        %v955 = vrot.slane %v954, 1
        %v956 = vadd.f32 %v954, %v955
        %v957 = vrot.slane %v944, 4
        %v958 = vadd.f32 %v944, %v957
        %v959 = vrot.slane %v958, 2
        %v960 = vadd.f32 %v958, %v959
        %v961 = vrot.slane %v960, 1
        %v962 = vadd.f32 %v960, %v961
        %v963 = vrot.slane %v945, 4
        %v964 = vadd.f32 %v945, %v963
        %v965 = vrot.slane %v964, 2
        %v966 = vadd.f32 %v964, %v965
        %v967 = vrot.slane %v966, 1
        %v968 = vadd.f32 %v966, %v967
        %v969 = vrot.slane %v946, 4
        %v970 = vadd.f32 %v946, %v969
        %v971 = vrot.slane %v970, 2
        %v972 = vadd.f32 %v970, %v971
        %v973 = vrot.slane %v972, 1
        %v974 = vadd.f32 %v972, %v973
        %v975 = vrot.slane %v947, 4
        %v976 = vadd.f32 %v947, %v975
        %v977 = vrot.slane %v976, 2
        %v978 = vadd.f32 %v976, %v977
        %v979 = vrot.slane %v978, 1
        %v980 = vadd.f32 %v978, %v979
        %v981 = vrot.slane %v948, 4
        %v982 = vadd.f32 %v948, %v981
        %v983 = vrot.slane %v982, 2
        %v984 = vadd.f32 %v982, %v983
        %v985 = vrot.slane %v984, 1
        %v986 = vadd.f32 %v984, %v985
        %v987 = vrot.slane %v949, 4
        %v988 = vadd.f32 %v949, %v987
        %v989 = vrot.slane %v988, 2
        %v990 = vadd.f32 %v988, %v989
        %v991 = vrot.slane %v990, 1
        %v992 = vadd.f32 %v990, %v991
        %v993 = vrot.slane %v950, 4
        %v994 = vadd.f32 %v950, %v993
        %v995 = vrot.slane %v994, 2
        %v996 = vadd.f32 %v994, %v995
        %v997 = vrot.slane %v996, 1
        %v998 = vadd.f32 %v996, %v997
        %vm999 = vcmask 1040384
        %v1000 = vsel %vm999, %v900, %v956
        %v1001 = vsel %vm999, %v906, %v962
        %v1002 = vsel %vm999, %v912, %v968
        %v1003 = vsel %vm999, %v918, %v974
        %v1004 = vsel %vm999, %v924, %v980
        %v1005 = vsel %vm999, %v930, %v986
        %v1006 = vsel %vm999, %v936, %v992
        %v1007 = vsel %vm999, %v942, %v998
        %v1008 = vpack.c.bf16 %v1000, %v1000
        %v1009 = vpack.c.bf16 %v1001, %v1001
        %v1010 = vpack.c.bf16 %v1002, %v1002
        %v1011 = vpack.c.bf16 %v1003, %v1003
        %v1012 = vpack.c.bf16 %v1004, %v1004
        %v1013 = vpack.c.bf16 %v1005, %v1005
        %v1014 = vpack.c.bf16 %v1006, %v1006
        %v1015 = vpack.c.bf16 %v1007, %v1007
        %v1016 = vunpack.c.l.bf16 %v1008
        %v1017 = vunpack.c.l.bf16 %v1009
        %v1018 = vunpack.c.l.bf16 %v1010
        %v1019 = vunpack.c.l.bf16 %v1011
        %v1020 = vunpack.c.l.bf16 %v1012
        %v1021 = vunpack.c.l.bf16 %v1013
        %v1022 = vunpack.c.l.bf16 %v1014
        %v1023 = vunpack.c.l.bf16 %v1015
        %v1024 = vsub.f32 %v1000, %v1016
        %v1025 = vsub.f32 %v1001, %v1017
        %v1026 = vsub.f32 %v1002, %v1018
        %v1027 = vsub.f32 %v1003, %v1019
        %v1028 = vsub.f32 %v1004, %v1020
        %v1029 = vsub.f32 %v1005, %v1021
        %v1030 = vsub.f32 %v1006, %v1022
        %v1031 = vsub.f32 %v1007, %v1023
        %v1040 = vrot.slane %v1024, 6
        %v1041 = vrot.slane %v1025, 6
        %v1042 = vrot.slane %v1026, 6
        %v1043 = vrot.slane %v1027, 6
        %v1044 = vrot.slane %v1028, 6
        %v1045 = vrot.slane %v1029, 6
        %v1046 = vrot.slane %v1030, 6
        %v1047 = vrot.slane %v1031, 6
        %vm1056 = vcmask 1041408
        %v1057 = vsel %vm1056, %v1016, %v1040
        %v1058 = vsel %vm1056, %v1017, %v1041
        %v1059 = vsel %vm1056, %v1018, %v1042
        %v1060 = vsel %vm1056, %v1019, %v1043
        %v1061 = vsel %vm1056, %v1020, %v1044
        %v1062 = vsel %vm1056, %v1021, %v1045
        %v1063 = vsel %vm1056, %v1022, %v1046
        %v1064 = vsel %vm1056, %v1023, %v1047
        %v1065 = vpack.c.bf16 %v1057, %v1057
        %v1066 = vpack.c.bf16 %v1058, %v1058
        %v1067 = vpack.c.bf16 %v1059, %v1059
        %v1068 = vpack.c.bf16 %v1060, %v1060
        %v1069 = vpack.c.bf16 %v1061, %v1061
        %v1070 = vpack.c.bf16 %v1062, %v1062
        %v1071 = vpack.c.bf16 %v1063, %v1063
        %v1072 = vpack.c.bf16 %v1064, %v1064
        %1073 = vmatprep.subr.bf16.mxu0 0
        %1074 = vmatpush1.bf16.xpose.msra.mxu0 0
        %1075 = vmatprep.subr.bf16.mxu0 0
        %1076 = vmatpush1.bf16.xpose.msra.mxu0 0
        %1077 = vmatprep.subr.bf16.mxu0 0
        %1078 = vmatpush1.bf16.xpose.msra.mxu0 0
        %1079 = vmatprep.subr.bf16.mxu0 0
        %1080 = vmatpush1.bf16.xpose.msra.mxu0 0
        %1081 = vmatprep.subr.bf16.mxu0 0
        %1082 = vmatpush1.bf16.xpose.msra.mxu0 0
        %1083 = vmatprep.subr.bf16.mxu0 0
        %1084 = vmatpush1.bf16.xpose.msra.mxu0 0
        %1085 = vmatprep.subr.bf16.mxu0 0
        %1086 = vmatpush1.bf16.xpose.msra.mxu0 0
        %1087 = vmatprep.subr.bf16.mxu0 %v647
        %1088 = vmatpush1.bf16.xpose.msra.mxu0 %v646
        %1089 = vmatprep.subr.bf16.mxu0 0
        %1090 = vmatpush2.bf16.xpose.msra.mxu0 0
        %1091 = vmatprep.subr.bf16.mxu0 0
        %1092 = vmatpush2.bf16.xpose.msra.mxu0 0
        %1093 = vmatprep.subr.bf16.mxu0 0
        %1094 = vmatpush2.bf16.xpose.msra.mxu0 0
        %1095 = vmatprep.subr.bf16.mxu0 0
        %1096 = vmatpush2.bf16.xpose.msra.mxu0 0
        %1097 = vmatprep.subr.bf16.mxu0 0
        %1098 = vmatpush2.bf16.xpose.msra.mxu0 0
        %1099 = vmatprep.subr.bf16.mxu0 0
        %1100 = vmatpush2.bf16.xpose.msra.mxu0 0
        %1101 = vmatprep.subr.bf16.mxu0 0
        %1102 = vmatpush2.bf16.xpose.msra.mxu0 0
        %1103 = vmatprep.subr.bf16.mxu0 0
        %1104 = vmatpush2.bf16.xpose.msra.mxu0 0
        %1105 = vmatprep.mubr.bf16.mxu0 %v1066
        %1106 = vmatmul.mubr.bf16.gmra.mxu0 %v1065
        %v1107 = vpop.f32.mrf.mxu0
        %v1108 = vadd.f32 0.0, %v1107
        %v1109 = vpop.f32.mrf.mxu0
        %v1110 = vpop.f32.mrf.mxu0
        %v1111 = vpop.f32.mrf.mxu0
        %1112 = vdwg.mxu0
        %1113 = vmatprep.subr.bf16.mxu0 0
        %1114 = vmatpush1.bf16.xpose.msra.mxu0 0
        %1115 = vmatprep.subr.bf16.mxu0 0
        %1116 = vmatpush1.bf16.xpose.msra.mxu0 0
        %1117 = vmatprep.subr.bf16.mxu0 0
        %1118 = vmatpush1.bf16.xpose.msra.mxu0 0
        %1119 = vmatprep.subr.bf16.mxu0 0
        %1120 = vmatpush1.bf16.xpose.msra.mxu0 0
        %1121 = vmatprep.subr.bf16.mxu0 0
        %1122 = vmatpush1.bf16.xpose.msra.mxu0 0
        %1123 = vmatprep.subr.bf16.mxu0 0
        %1124 = vmatpush1.bf16.xpose.msra.mxu0 0
        %1125 = vmatprep.subr.bf16.mxu0 0
        %1126 = vmatpush1.bf16.xpose.msra.mxu0 0
        %1127 = vmatprep.subr.bf16.mxu0 %v649
        %1128 = vmatpush1.bf16.xpose.msra.mxu0 %v648
        %1129 = vmatprep.subr.bf16.mxu0 0
        %1130 = vmatpush2.bf16.xpose.msra.mxu0 0
        %1131 = vmatprep.subr.bf16.mxu0 0
        %1132 = vmatpush2.bf16.xpose.msra.mxu0 0
        %1133 = vmatprep.subr.bf16.mxu0 0
        %1134 = vmatpush2.bf16.xpose.msra.mxu0 0
        %1135 = vmatprep.subr.bf16.mxu0 0
        %1136 = vmatpush2.bf16.xpose.msra.mxu0 0
        %1137 = vmatprep.subr.bf16.mxu0 0
        %1138 = vmatpush2.bf16.xpose.msra.mxu0 0
        %1139 = vmatprep.subr.bf16.mxu0 0
        %1140 = vmatpush2.bf16.xpose.msra.mxu0 0
        %1141 = vmatprep.subr.bf16.mxu0 0
        %1142 = vmatpush2.bf16.xpose.msra.mxu0 0
        %1143 = vmatprep.subr.bf16.mxu0 0
        %1144 = vmatpush2.bf16.xpose.msra.mxu0 0
        %1145 = vmatprep.mubr.bf16.mxu0 %v1068
        %1146 = vmatmul.mubr.bf16.gmra.mxu0 %v1067
        %v1147 = vpop.f32.mrf.mxu0
        %v1148 = vadd.f32 %v1108, %v1147
        %v1149 = vpop.f32.mrf.mxu0
        %v1150 = vpop.f32.mrf.mxu0
        %v1151 = vpop.f32.mrf.mxu0
        %1152 = vdwg.mxu0
        %1153 = vmatprep.subr.bf16.mxu0 0
        %1154 = vmatpush1.bf16.xpose.msra.mxu0 0
        %1155 = vmatprep.subr.bf16.mxu0 0
        %1156 = vmatpush1.bf16.xpose.msra.mxu0 0
        %1157 = vmatprep.subr.bf16.mxu0 0
        %1158 = vmatpush1.bf16.xpose.msra.mxu0 0
        %1159 = vmatprep.subr.bf16.mxu0 0
        %1160 = vmatpush1.bf16.xpose.msra.mxu0 0
        %1161 = vmatprep.subr.bf16.mxu0 0
        %1162 = vmatpush1.bf16.xpose.msra.mxu0 0
        %1163 = vmatprep.subr.bf16.mxu0 0
        %1164 = vmatpush1.bf16.xpose.msra.mxu0 0
        %1165 = vmatprep.subr.bf16.mxu0 0
        %1166 = vmatpush1.bf16.xpose.msra.mxu0 0
        %1167 = vmatprep.subr.bf16.mxu0 %v651
        %1168 = vmatpush1.bf16.xpose.msra.mxu0 %v650
        %1169 = vmatprep.subr.bf16.mxu0 0
        %1170 = vmatpush2.bf16.xpose.msra.mxu0 0
        %1171 = vmatprep.subr.bf16.mxu0 0
        %1172 = vmatpush2.bf16.xpose.msra.mxu0 0
        %1173 = vmatprep.subr.bf16.mxu0 0
        %1174 = vmatpush2.bf16.xpose.msra.mxu0 0
        %1175 = vmatprep.subr.bf16.mxu0 0
        %1176 = vmatpush2.bf16.xpose.msra.mxu0 0
        %1177 = vmatprep.subr.bf16.mxu0 0
        %1178 = vmatpush2.bf16.xpose.msra.mxu0 0
        %1179 = vmatprep.subr.bf16.mxu0 0
        %1180 = vmatpush2.bf16.xpose.msra.mxu0 0
        %1181 = vmatprep.subr.bf16.mxu0 0
        %1182 = vmatpush2.bf16.xpose.msra.mxu0 0
        %1183 = vmatprep.subr.bf16.mxu0 0
        %1184 = vmatpush2.bf16.xpose.msra.mxu0 0
        %1185 = vmatprep.mubr.bf16.mxu0 %v1070
        %1186 = vmatmul.mubr.bf16.gmra.mxu0 %v1069
        %v1187 = vpop.f32.mrf.mxu0
        %v1188 = vadd.f32 %v1148, %v1187
        %v1189 = vpop.f32.mrf.mxu0
        %v1190 = vpop.f32.mrf.mxu0
        %v1191 = vpop.f32.mrf.mxu0
        %1192 = vdwg.mxu0
        %1193 = vmatprep.subr.bf16.mxu0 0
        %1194 = vmatpush1.bf16.xpose.msra.mxu0 0
        %1195 = vmatprep.subr.bf16.mxu0 0
        %1196 = vmatpush1.bf16.xpose.msra.mxu0 0
        %1197 = vmatprep.subr.bf16.mxu0 0
        %1198 = vmatpush1.bf16.xpose.msra.mxu0 0
        %1199 = vmatprep.subr.bf16.mxu0 0
        %1200 = vmatpush1.bf16.xpose.msra.mxu0 0
        %1201 = vmatprep.subr.bf16.mxu0 0
        %1202 = vmatpush1.bf16.xpose.msra.mxu0 0
        %1203 = vmatprep.subr.bf16.mxu0 0
        %1204 = vmatpush1.bf16.xpose.msra.mxu0 0
        %1205 = vmatprep.subr.bf16.mxu0 0
        %1206 = vmatpush1.bf16.xpose.msra.mxu0 0
        %1207 = vmatprep.subr.bf16.mxu0 %v653
        %1208 = vmatpush1.bf16.xpose.msra.mxu0 %v652
        %1209 = vmatprep.subr.bf16.mxu0 0
        %1210 = vmatpush2.bf16.xpose.msra.mxu0 0
        %1211 = vmatprep.subr.bf16.mxu0 0
        %1212 = vmatpush2.bf16.xpose.msra.mxu0 0
        %1213 = vmatprep.subr.bf16.mxu0 0
        %1214 = vmatpush2.bf16.xpose.msra.mxu0 0
        %1215 = vmatprep.subr.bf16.mxu0 0
        %1216 = vmatpush2.bf16.xpose.msra.mxu0 0
        %1217 = vmatprep.subr.bf16.mxu0 0
        %1218 = vmatpush2.bf16.xpose.msra.mxu0 0
        %1219 = vmatprep.subr.bf16.mxu0 0
        %1220 = vmatpush2.bf16.xpose.msra.mxu0 0
        %1221 = vmatprep.subr.bf16.mxu0 0
        %1222 = vmatpush2.bf16.xpose.msra.mxu0 0
        %1223 = vmatprep.subr.bf16.mxu0 0
        %1224 = vmatpush2.bf16.xpose.msra.mxu0 0
        %1225 = vmatprep.mubr.bf16.mxu0 %v1072
        %1226 = vmatmul.mubr.bf16.gmra.mxu0 %v1071
        %v1227 = vpop.f32.mrf.mxu0
        %v1228 = vadd.f32 %v1188, %v1227
        %v1229 = vpop.f32.mrf.mxu0
        %v1230 = vpop.f32.mrf.mxu0
        %v1231 = vpop.f32.mrf.mxu0
        %1232 = vdwg.mxu0
        %v1234 = vrot.slane %v1228, 2
        %v1236 = vadd.f32 %v1228, %v1234
        %v1237 = vmul.f32 %v1236, 0.00390625
        %v1238 = vmul.f32 %v1237, %v1237
        %v1240 = vrot.slane %v1238, 7
        %v1242 = vsub.f32 %v1237, %v1240
        %v1243 = vadd.f32 %v1242, 1e-05
        %v1244 = vrsqrt.pop %v1243
        %v1245 = vsel %vm999, %v1237, %v1244
        %v1246 = vpack.c.bf16 %v1245, %v1245
        %v1247 = vunpack.c.l.bf16 %v1246
        %v1248 = vsub.f32 %v1245, %v1247
        %v1250 = vrot.slane %v1248, 6
        %v1252 = vsel %vm1056, %v1247, %v1250
        %v1253 = vpack.c.bf16 %v1252, %v1252
        %vm1254 = vcmask 64512
        %v1256 = vsel %vm1254, %v1253, 0
        %vm1258 = vcmask 1043456
        %v1260 = vsel %vm1258, %v646, 0
        %v1263 = vsel %vm1258, %v647, 0
        %v1266 = vsel %vm1258, %v648, 0
        %v1269 = vsel %vm1258, %v649, 0
        %v1272 = vsel %vm1258, %v650, 0
        %v1275 = vsel %vm1258, %v651, 0
        %v1278 = vsel %vm1258, %v652, 0
        %v1281 = vsel %vm1258, %v653, 0
        %1283 = vmatprep.subr.bf16.mxu0 0
        %1284 = vmatpush1.bf16.msra.mxu0 0
        %1285 = vmatprep.subr.bf16.mxu0 0
        %1286 = vmatpush1.bf16.msra.mxu0 0
        %1287 = vmatprep.subr.bf16.mxu0 0
        %1288 = vmatpush1.bf16.msra.mxu0 0
        %1289 = vmatprep.subr.bf16.mxu0 0
        %1290 = vmatpush1.bf16.msra.mxu0 0
        %1291 = vmatprep.subr.bf16.mxu0 0
        %1292 = vmatpush1.bf16.msra.mxu0 0
        %1293 = vmatprep.subr.bf16.mxu0 0
        %1294 = vmatpush1.bf16.msra.mxu0 0
        %1295 = vmatprep.subr.bf16.mxu0 0
        %1296 = vmatpush1.bf16.msra.mxu0 0
        %1297 = vmatprep.subr.bf16.mxu0 %v1263
        %1298 = vmatpush1.bf16.msra.mxu0 %v1260
        %1299 = vmatprep.subr.bf16.mxu0 0
        %1300 = vmatpush2.bf16.msra.mxu0 0
        %1301 = vmatprep.subr.bf16.mxu0 0
        %1302 = vmatpush2.bf16.msra.mxu0 0
        %1303 = vmatprep.subr.bf16.mxu0 0
        %1304 = vmatpush2.bf16.msra.mxu0 0
        %1305 = vmatprep.subr.bf16.mxu0 0
        %1306 = vmatpush2.bf16.msra.mxu0 0
        %1307 = vmatprep.subr.bf16.mxu0 0
        %1308 = vmatpush2.bf16.msra.mxu0 0
        %1309 = vmatprep.subr.bf16.mxu0 0
        %1310 = vmatpush2.bf16.msra.mxu0 0
        %1311 = vmatprep.subr.bf16.mxu0 0
        %1312 = vmatpush2.bf16.msra.mxu0 0
        %1313 = vmatprep.subr.bf16.mxu0 0
        %1314 = vmatpush2.bf16.msra.mxu0 0
        %1315 = vmatprep.mubr.bf16.mxu0 0
        %1316 = vmatmul.mubr.bf16.gmra.mxu0 %v1256
        %v1317 = vpop.f32.mrf.mxu0
        %v1318 = vadd.f32 0.0, %v1317
        %v1319 = vpop.f32.mrf.mxu0
        %v1320 = vadd.f32 0.0, %v1319
        %v1321 = vpop.f32.mrf.mxu0
        %v1322 = vpop.f32.mrf.mxu0
        %1323 = vdwg.mxu0
        %1324 = vmatprep.subr.bf16.mxu0 0
        %1325 = vmatpush1.bf16.msra.mxu0 0
        %1326 = vmatprep.subr.bf16.mxu0 0
        %1327 = vmatpush1.bf16.msra.mxu0 0
        %1328 = vmatprep.subr.bf16.mxu0 0
        %1329 = vmatpush1.bf16.msra.mxu0 0
        %1330 = vmatprep.subr.bf16.mxu0 0
        %1331 = vmatpush1.bf16.msra.mxu0 0
        %1332 = vmatprep.subr.bf16.mxu0 0
        %1333 = vmatpush1.bf16.msra.mxu0 0
        %1334 = vmatprep.subr.bf16.mxu0 0
        %1335 = vmatpush1.bf16.msra.mxu0 0
        %1336 = vmatprep.subr.bf16.mxu0 0
        %1337 = vmatpush1.bf16.msra.mxu0 0
        %1338 = vmatprep.subr.bf16.mxu0 %v1269
        %1339 = vmatpush1.bf16.msra.mxu0 %v1266
        %1340 = vmatprep.subr.bf16.mxu0 0
        %1341 = vmatpush2.bf16.msra.mxu0 0
        %1342 = vmatprep.subr.bf16.mxu0 0
        %1343 = vmatpush2.bf16.msra.mxu0 0
        %1344 = vmatprep.subr.bf16.mxu0 0
        %1345 = vmatpush2.bf16.msra.mxu0 0
        %1346 = vmatprep.subr.bf16.mxu0 0
        %1347 = vmatpush2.bf16.msra.mxu0 0
        %1348 = vmatprep.subr.bf16.mxu0 0
        %1349 = vmatpush2.bf16.msra.mxu0 0
        %1350 = vmatprep.subr.bf16.mxu0 0
        %1351 = vmatpush2.bf16.msra.mxu0 0
        %1352 = vmatprep.subr.bf16.mxu0 0
        %1353 = vmatpush2.bf16.msra.mxu0 0
        %1354 = vmatprep.subr.bf16.mxu0 0
        %1355 = vmatpush2.bf16.msra.mxu0 0
        %1356 = vmatprep.mubr.bf16.mxu0 0
        %1357 = vmatmul.mubr.bf16.gmra.mxu0 %v1256
        %v1358 = vpop.f32.mrf.mxu0
        %v1359 = vadd.f32 0.0, %v1358
        %v1360 = vpop.f32.mrf.mxu0
        %v1361 = vadd.f32 0.0, %v1360
        %v1362 = vpop.f32.mrf.mxu0
        %v1363 = vpop.f32.mrf.mxu0
        %1364 = vdwg.mxu0
        %1365 = vmatprep.subr.bf16.mxu0 0
        %1366 = vmatpush1.bf16.msra.mxu0 0
        %1367 = vmatprep.subr.bf16.mxu0 0
        %1368 = vmatpush1.bf16.msra.mxu0 0
        %1369 = vmatprep.subr.bf16.mxu0 0
        %1370 = vmatpush1.bf16.msra.mxu0 0
        %1371 = vmatprep.subr.bf16.mxu0 0
        %1372 = vmatpush1.bf16.msra.mxu0 0
        %1373 = vmatprep.subr.bf16.mxu0 0
        %1374 = vmatpush1.bf16.msra.mxu0 0
        %1375 = vmatprep.subr.bf16.mxu0 0
        %1376 = vmatpush1.bf16.msra.mxu0 0
        %1377 = vmatprep.subr.bf16.mxu0 0
        %1378 = vmatpush1.bf16.msra.mxu0 0
        %1379 = vmatprep.subr.bf16.mxu0 %v1275
        %1380 = vmatpush1.bf16.msra.mxu0 %v1272
        %1381 = vmatprep.subr.bf16.mxu0 0
        %1382 = vmatpush2.bf16.msra.mxu0 0
        %1383 = vmatprep.subr.bf16.mxu0 0
        %1384 = vmatpush2.bf16.msra.mxu0 0
        %1385 = vmatprep.subr.bf16.mxu0 0
        %1386 = vmatpush2.bf16.msra.mxu0 0
        %1387 = vmatprep.subr.bf16.mxu0 0
        %1388 = vmatpush2.bf16.msra.mxu0 0
        %1389 = vmatprep.subr.bf16.mxu0 0
        %1390 = vmatpush2.bf16.msra.mxu0 0
        %1391 = vmatprep.subr.bf16.mxu0 0
        %1392 = vmatpush2.bf16.msra.mxu0 0
        %1393 = vmatprep.subr.bf16.mxu0 0
        %1394 = vmatpush2.bf16.msra.mxu0 0
        %1395 = vmatprep.subr.bf16.mxu0 0
        %1396 = vmatpush2.bf16.msra.mxu0 0
        %1397 = vmatprep.mubr.bf16.mxu0 0
        %1398 = vmatmul.mubr.bf16.gmra.mxu0 %v1256
        %v1399 = vpop.f32.mrf.mxu0
        %v1400 = vadd.f32 0.0, %v1399
        %v1401 = vpop.f32.mrf.mxu0
        %v1402 = vadd.f32 0.0, %v1401
        %v1403 = vpop.f32.mrf.mxu0
        %v1404 = vpop.f32.mrf.mxu0
        %1405 = vdwg.mxu0
        %1406 = vmatprep.subr.bf16.mxu0 0
        %1407 = vmatpush1.bf16.msra.mxu0 0
        %1408 = vmatprep.subr.bf16.mxu0 0
        %1409 = vmatpush1.bf16.msra.mxu0 0
        %1410 = vmatprep.subr.bf16.mxu0 0
        %1411 = vmatpush1.bf16.msra.mxu0 0
        %1412 = vmatprep.subr.bf16.mxu0 0
        %1413 = vmatpush1.bf16.msra.mxu0 0
        %1414 = vmatprep.subr.bf16.mxu0 0
        %1415 = vmatpush1.bf16.msra.mxu0 0
        %1416 = vmatprep.subr.bf16.mxu0 0
        %1417 = vmatpush1.bf16.msra.mxu0 0
        %1418 = vmatprep.subr.bf16.mxu0 0
        %1419 = vmatpush1.bf16.msra.mxu0 0
        %1420 = vmatprep.subr.bf16.mxu0 %v1281
        %1421 = vmatpush1.bf16.msra.mxu0 %v1278
        %1422 = vmatprep.subr.bf16.mxu0 0
        %1423 = vmatpush2.bf16.msra.mxu0 0
        %1424 = vmatprep.subr.bf16.mxu0 0
        %1425 = vmatpush2.bf16.msra.mxu0 0
        %1426 = vmatprep.subr.bf16.mxu0 0
        %1427 = vmatpush2.bf16.msra.mxu0 0
        %1428 = vmatprep.subr.bf16.mxu0 0
        %1429 = vmatpush2.bf16.msra.mxu0 0
        %1430 = vmatprep.subr.bf16.mxu0 0
        %1431 = vmatpush2.bf16.msra.mxu0 0
        %1432 = vmatprep.subr.bf16.mxu0 0
        %1433 = vmatpush2.bf16.msra.mxu0 0
        %1434 = vmatprep.subr.bf16.mxu0 0
        %1435 = vmatpush2.bf16.msra.mxu0 0
        %1436 = vmatprep.subr.bf16.mxu0 0
        %1437 = vmatpush2.bf16.msra.mxu0 0
        %1438 = vmatprep.mubr.bf16.mxu0 0
        %1439 = vmatmul.mubr.bf16.gmra.mxu0 %v1256
        %v1440 = vpop.f32.mrf.mxu0
        %v1441 = vadd.f32 0.0, %v1440
        %v1442 = vpop.f32.mrf.mxu0
        %v1443 = vadd.f32 0.0, %v1442
        %v1444 = vpop.f32.mrf.mxu0
        %v1445 = vpop.f32.mrf.mxu0
        %1446 = vdwg.mxu0
        %v1455 = vrot.slane %v1318, 2
        %v1456 = vrot.slane %v1320, 2
        %v1457 = vrot.slane %v1359, 2
        %v1458 = vrot.slane %v1361, 2
        %v1459 = vrot.slane %v1400, 2
        %v1460 = vrot.slane %v1402, 2
        %v1461 = vrot.slane %v1441, 2
        %v1462 = vrot.slane %v1443, 2
        %v1471 = vadd.f32 %v1318, %v1455
        %v1472 = vadd.f32 %v1320, %v1456
        %v1473 = vadd.f32 %v1359, %v1457
        %v1474 = vadd.f32 %v1361, %v1458
        %v1475 = vadd.f32 %v1400, %v1459
        %v1476 = vadd.f32 %v1402, %v1460
        %v1477 = vadd.f32 %v1441, %v1461
        %v1478 = vadd.f32 %v1443, %v1462
        %v1479 = vlaneseq
        %v1480 = vshrl.u32 %v1479, 7
        %v1481 = vsub.s32 0, %v1480
        %v1482 = vrot.slane %v1471, %v1481
        %v1483 = vlaneseq
        %v1484 = vshrl.u32 %v1483, 7
        %v1485 = vsub.s32 0, %v1484
        %v1486 = vrot.slane %v1472, %v1485
        %v1487 = vlaneseq
        %v1488 = vshrl.u32 %v1487, 7
        %v1489 = vsub.s32 0, %v1488
        %v1490 = vrot.slane %v1473, %v1489
        %v1491 = vlaneseq
        %v1492 = vshrl.u32 %v1491, 7
        %v1493 = vsub.s32 0, %v1492
        %v1494 = vrot.slane %v1474, %v1493
        %v1495 = vlaneseq
        %v1496 = vshrl.u32 %v1495, 7
        %v1497 = vsub.s32 0, %v1496
        %v1498 = vrot.slane %v1475, %v1497
        %v1499 = vlaneseq
        %v1500 = vshrl.u32 %v1499, 7
        %v1501 = vsub.s32 0, %v1500
        %v1502 = vrot.slane %v1476, %v1501
        %v1503 = vlaneseq
        %v1504 = vshrl.u32 %v1503, 7
        %v1505 = vsub.s32 0, %v1504
        %v1506 = vrot.slane %v1477, %v1505
        %v1507 = vlaneseq
        %v1508 = vshrl.u32 %v1507, 7
        %v1509 = vsub.s32 0, %v1508
        %v1510 = vrot.slane %v1478, %v1509
        %v1511 = vsub.f32 %v887, %v1482
        %v1512 = vsub.f32 %v888, %v1486
        %v1513 = vsub.f32 %v889, %v1490
        %v1514 = vsub.f32 %v890, %v1494
        %v1515 = vsub.f32 %v891, %v1498
        %v1516 = vsub.f32 %v892, %v1502
        %v1517 = vsub.f32 %v893, %v1506
        %v1518 = vsub.f32 %v894, %v1510
        %v1519 = vlaneseq
        %v1520 = vshrl.u32 %v1519, 7
        %v1521 = vsub.s32 1, %v1520
        %v1522 = vrot.slane %v1471, %v1521
        %v1523 = vlaneseq
        %v1524 = vshrl.u32 %v1523, 7
        %v1525 = vsub.s32 1, %v1524
        %v1526 = vrot.slane %v1472, %v1525
        %v1527 = vlaneseq
        %v1528 = vshrl.u32 %v1527, 7
        %v1529 = vsub.s32 1, %v1528
        %v1530 = vrot.slane %v1473, %v1529
        %v1531 = vlaneseq
        %v1532 = vshrl.u32 %v1531, 7
        %v1533 = vsub.s32 1, %v1532
        %v1534 = vrot.slane %v1474, %v1533
        %v1535 = vlaneseq
        %v1536 = vshrl.u32 %v1535, 7
        %v1537 = vsub.s32 1, %v1536
        %v1538 = vrot.slane %v1475, %v1537
        %v1539 = vlaneseq
        %v1540 = vshrl.u32 %v1539, 7
        %v1541 = vsub.s32 1, %v1540
        %v1542 = vrot.slane %v1476, %v1541
        %v1543 = vlaneseq
        %v1544 = vshrl.u32 %v1543, 7
        %v1545 = vsub.s32 1, %v1544
        %v1546 = vrot.slane %v1477, %v1545
        %v1547 = vlaneseq
        %v1548 = vshrl.u32 %v1547, 7
        %v1549 = vsub.s32 1, %v1548
        %v1550 = vrot.slane %v1478, %v1549
        %v1551 = vmul.f32 %v1511, %v1522
        %v1552 = vmul.f32 %v1512, %v1526
        %v1553 = vmul.f32 %v1513, %v1530
        %v1554 = vmul.f32 %v1514, %v1534
        %v1555 = vmul.f32 %v1515, %v1538
        %v1556 = vmul.f32 %v1516, %v1542
        %v1557 = vmul.f32 %v1517, %v1546
        %v1558 = vmul.f32 %v1518, %v1550
        %v1559 = vmul.f32 %v1551, %v555
        %v1560 = vmul.f32 %v1552, %v555
        %v1561 = vmul.f32 %v1553, %v555
        %v1562 = vmul.f32 %v1554, %v555
        %v1563 = vmul.f32 %v1555, %v555
        %v1564 = vmul.f32 %v1556, %v555
        %v1565 = vmul.f32 %v1557, %v555
        %v1566 = vmul.f32 %v1558, %v555
        %v1567 = vadd.f32 %v1559, %v556
        %v1568 = vadd.f32 %v1560, %v556
        %v1569 = vadd.f32 %v1561, %v556
        %v1570 = vadd.f32 %v1562, %v556
        %v1571 = vadd.f32 %v1563, %v556
        %v1572 = vadd.f32 %v1564, %v556
        %v1573 = vadd.f32 %v1565, %v556
        %v1574 = vadd.f32 %v1566, %v556
        %1575 = vrot.lane.b32.xlu0 %v1567, 2
        %v1576 = vpop.permute.xlu0 %1575
        %1577 = vrot.lane.b32.xlu0 %v1568, 2
        %v1578 = vpop.permute.xlu0 %1577
        %1579 = vrot.lane.b32.xlu0 %v1569, 2
        %v1580 = vpop.permute.xlu0 %1579
        %1581 = vrot.lane.b32.xlu0 %v1570, 2
        %v1582 = vpop.permute.xlu0 %1581
        %1583 = vrot.lane.b32.xlu0 %v1571, 2
        %v1584 = vpop.permute.xlu0 %1583
        %1585 = vrot.lane.b32.xlu0 %v1572, 2
        %v1586 = vpop.permute.xlu0 %1585
        %1587 = vrot.lane.b32.xlu0 %v1573, 2
        %v1588 = vpop.permute.xlu0 %1587
        %1589 = vrot.lane.b32.xlu0 %v1574, 2
        %v1590 = vpop.permute.xlu0 %1589
        %vm1591 = vcmp.lt.s32.totalorder %v602, 2
        %v1592 = vsel %vm1591, %v1588, %v1590
        %v1593 = vsel %vm1591, %v1586, %v1588
        %v1594 = vsel %vm1591, %v1584, %v1586
        %v1595 = vsel %vm1591, %v1582, %v1584
        %v1596 = vsel %vm1591, %v1580, %v1582
        %v1597 = vsel %vm1591, %v1578, %v1580
        %v1598 = vsel %vm1591, %v1576, %v1578
        %v1599 = vsel %vm1591, %v1590, %v1576
        %v1600 = vmul.f32 %v1599, %v759
        %v1601 = vmul.f32 %v1598, %v760
        %v1602 = vmul.f32 %v1597, %v761
        %v1603 = vmul.f32 %v1596, %v762
        %v1604 = vmul.f32 %v1595, %v763
        %v1605 = vmul.f32 %v1594, %v764
        %v1606 = vmul.f32 %v1593, %v765
        %v1607 = vmul.f32 %v1592, %v766
        %1608 = vrot.lane.b32.xlu0 %v1567, 1
        %v1609 = vpop.permute.xlu0 %1608
        %1610 = vrot.lane.b32.xlu0 %v1568, 1
        %v1611 = vpop.permute.xlu0 %1610
        %1612 = vrot.lane.b32.xlu0 %v1569, 1
        %v1613 = vpop.permute.xlu0 %1612
        %1614 = vrot.lane.b32.xlu0 %v1570, 1
        %v1615 = vpop.permute.xlu0 %1614
        %1616 = vrot.lane.b32.xlu0 %v1571, 1
        %v1617 = vpop.permute.xlu0 %1616
        %1618 = vrot.lane.b32.xlu0 %v1572, 1
        %v1619 = vpop.permute.xlu0 %1618
        %1620 = vrot.lane.b32.xlu0 %v1573, 1
        %v1621 = vpop.permute.xlu0 %1620
        %1622 = vrot.lane.b32.xlu0 %v1574, 1
        %v1623 = vpop.permute.xlu0 %1622
        %vm1624 = vcmp.lt.s32.totalorder %v602, 1
        %v1625 = vsel %vm1624, %v1621, %v1623
        %v1626 = vsel %vm1624, %v1619, %v1621
        %v1627 = vsel %vm1624, %v1617, %v1619
        %v1628 = vsel %vm1624, %v1615, %v1617
        %v1629 = vsel %vm1624, %v1613, %v1615
        %v1630 = vsel %vm1624, %v1611, %v1613
        %v1631 = vsel %vm1624, %v1609, %v1611
        %v1632 = vsel %vm1624, %v1623, %v1609
        %v1633 = vmul.f32 %v1632, %v799
        %v1634 = vmul.f32 %v1631, %v800
        %v1635 = vmul.f32 %v1630, %v801
        %v1636 = vmul.f32 %v1629, %v802
        %v1637 = vmul.f32 %v1628, %v803
        %v1638 = vmul.f32 %v1627, %v804
        %v1639 = vmul.f32 %v1626, %v805
        %v1640 = vmul.f32 %v1625, %v806
        %1641 = vrot.lane.b32.xlu0 %v1567, 127
        %v1642 = vpop.permute.xlu0 %1641
        %1643 = vrot.lane.b32.xlu0 %v1568, 127
        %v1644 = vpop.permute.xlu0 %1643
        %1645 = vrot.lane.b32.xlu0 %v1569, 127
        %v1646 = vpop.permute.xlu0 %1645
        %1647 = vrot.lane.b32.xlu0 %v1570, 127
        %v1648 = vpop.permute.xlu0 %1647
        %1649 = vrot.lane.b32.xlu0 %v1571, 127
        %v1650 = vpop.permute.xlu0 %1649
        %1651 = vrot.lane.b32.xlu0 %v1572, 127
        %v1652 = vpop.permute.xlu0 %1651
        %1653 = vrot.lane.b32.xlu0 %v1573, 127
        %v1654 = vpop.permute.xlu0 %1653
        %1655 = vrot.lane.b32.xlu0 %v1574, 127
        %v1656 = vpop.permute.xlu0 %1655
        %vm1657 = vcmp.lt.s32.totalorder %v602, 127
        %v1658 = vsel %vm1657, %v1654, %v1656
        %v1659 = vsel %vm1657, %v1652, %v1654
        %v1660 = vsel %vm1657, %v1650, %v1652
        %v1661 = vsel %vm1657, %v1648, %v1650
        %v1662 = vsel %vm1657, %v1646, %v1648
        %v1663 = vsel %vm1657, %v1644, %v1646
        %v1664 = vsel %vm1657, %v1642, %v1644
        %v1665 = vsel %vm1657, %v1656, %v1642
        %v1666 = vmul.f32 %v1664, %v839
        %v1667 = vmul.f32 %v1663, %v840
        %v1668 = vmul.f32 %v1662, %v841
        %v1669 = vmul.f32 %v1661, %v842
        %v1670 = vmul.f32 %v1660, %v843
        %v1671 = vmul.f32 %v1659, %v844
        %v1672 = vmul.f32 %v1658, %v845
        %v1673 = vmul.f32 %v1665, %v846
        %1674 = vrot.lane.b32.xlu0 %v1567, 126
        %v1675 = vpop.permute.xlu0 %1674
        %1676 = vrot.lane.b32.xlu0 %v1568, 126
        %v1677 = vpop.permute.xlu0 %1676
        %1678 = vrot.lane.b32.xlu0 %v1569, 126
        %v1679 = vpop.permute.xlu0 %1678
        %1680 = vrot.lane.b32.xlu0 %v1570, 126
        %v1681 = vpop.permute.xlu0 %1680
        %1682 = vrot.lane.b32.xlu0 %v1571, 126
        %v1683 = vpop.permute.xlu0 %1682
        %1684 = vrot.lane.b32.xlu0 %v1572, 126
        %v1685 = vpop.permute.xlu0 %1684
        %1686 = vrot.lane.b32.xlu0 %v1573, 126
        %v1687 = vpop.permute.xlu0 %1686
        %1688 = vrot.lane.b32.xlu0 %v1574, 126
        %v1689 = vpop.permute.xlu0 %1688
        %vm1690 = vcmp.lt.s32.totalorder %v602, 126
        %v1691 = vsel %vm1690, %v1687, %v1689
        %v1692 = vsel %vm1690, %v1685, %v1687
        %v1693 = vsel %vm1690, %v1683, %v1685
        %v1694 = vsel %vm1690, %v1681, %v1683
        %v1695 = vsel %vm1690, %v1679, %v1681
        %v1696 = vsel %vm1690, %v1677, %v1679
        %v1697 = vsel %vm1690, %v1675, %v1677
        %v1698 = vsel %vm1690, %v1689, %v1675
        %v1699 = vmul.f32 %v1697, %v879
        %v1700 = vmul.f32 %v1696, %v880
        %v1701 = vmul.f32 %v1695, %v881
        %v1702 = vmul.f32 %v1694, %v882
        %v1703 = vmul.f32 %v1693, %v883
        %v1704 = vmul.f32 %v1692, %v884
        %v1705 = vmul.f32 %v1691, %v885
        %v1706 = vmul.f32 %v1698, %v886
        %v1707 = vpack.c.bf16 %v1633, %v1600
        %v1708 = vpack.c.bf16 %v1634, %v1601
        %v1709 = vpack.c.bf16 %v1635, %v1602
        %v1710 = vpack.c.bf16 %v1636, %v1603
        %v1711 = vpack.c.bf16 %v1637, %v1604
        %v1712 = vpack.c.bf16 %v1638, %v1605
        %v1713 = vpack.c.bf16 %v1639, %v1606
        %v1714 = vpack.c.bf16 %v1640, %v1607
        %v1715 = vpack.c.bf16 %v1666, %v1567
        %v1716 = vpack.c.bf16 %v1667, %v1568
        %v1717 = vpack.c.bf16 %v1668, %v1569
        %v1718 = vpack.c.bf16 %v1669, %v1570
        %v1719 = vpack.c.bf16 %v1670, %v1571
        %v1720 = vpack.c.bf16 %v1671, %v1572
        %v1721 = vpack.c.bf16 %v1672, %v1573
        %v1722 = vpack.c.bf16 %v1673, %v1574
        %v1723 = vpack.c.bf16 %v1699, %v1699
        %v1724 = vpack.c.bf16 %v1700, %v1700
        %v1725 = vpack.c.bf16 %v1701, %v1701
        %v1726 = vpack.c.bf16 %v1702, %v1702
        %v1727 = vpack.c.bf16 %v1703, %v1703
        %v1728 = vpack.c.bf16 %v1704, %v1704
        %v1729 = vpack.c.bf16 %v1705, %v1705
        %v1730 = vpack.c.bf16 %v1706, %v1706
        %1732 = vset.pattern.permute.xlu0 0
        %1733 = vperm.xlu0 %1732, %v558
        %v1734 = vpop.permute.xlu0 %1733
        %vm1736 = vcmask 326656
        %v1738 = vsel %vm1736, %v557, 0
        %v1741 = vsel %vm1258, %v1723, 0
        %v1744 = vsel %vm1258, %v1724, 0
        %v1747 = vsel %vm1258, %v1725, 0
        %v1750 = vsel %vm1258, %v1726, 0
        %v1753 = vsel %vm1258, %v1727, 0
        %v1756 = vsel %vm1258, %v1728, 0
        %v1759 = vsel %vm1258, %v1729, 0
        %v1762 = vsel %vm1258, %v1730, 0
        %1764 = vmatprep.subr.bf16.mxu0 0
        %1765 = vmatpush1.bf16.msra.mxu0 0
        %1766 = vmatprep.subr.bf16.mxu0 0
        %1767 = vmatpush1.bf16.msra.mxu0 0
        %1768 = vmatprep.subr.bf16.mxu0 0
        %1769 = vmatpush1.bf16.msra.mxu0 0
        %1770 = vmatprep.subr.bf16.mxu0 0
        %1771 = vmatpush1.bf16.msra.mxu0 0
        %1772 = vmatprep.subr.bf16.mxu0 0
        %1773 = vmatpush1.bf16.msra.mxu0 0
        %1774 = vmatprep.subr.bf16.mxu0 %v1744
        %1775 = vmatpush1.bf16.msra.mxu0 %v1741
        %1776 = vmatprep.subr.bf16.mxu0 %v1716
        %1777 = vmatpush1.bf16.msra.mxu0 %v1715
        %1778 = vmatprep.subr.bf16.mxu0 %v1708
        %1779 = vmatpush1.bf16.msra.mxu0 %v1707
        %1780 = vmatprep.subr.bf16.mxu0 0
        %1781 = vmatpush2.bf16.msra.mxu0 0
        %1782 = vmatprep.subr.bf16.mxu0 0
        %1783 = vmatpush2.bf16.msra.mxu0 0
        %1784 = vmatprep.subr.bf16.mxu0 0
        %1785 = vmatpush2.bf16.msra.mxu0 0
        %1786 = vmatprep.subr.bf16.mxu0 0
        %1787 = vmatpush2.bf16.msra.mxu0 0
        %1788 = vmatprep.subr.bf16.mxu0 0
        %1789 = vmatpush2.bf16.msra.mxu0 0
        %1790 = vmatprep.subr.bf16.mxu0 0
        %1791 = vmatpush2.bf16.msra.mxu0 0
        %1792 = vmatprep.subr.bf16.mxu0 0
        %1793 = vmatpush2.bf16.msra.mxu0 0
        %1794 = vmatprep.subr.bf16.mxu0 0
        %1795 = vmatpush2.bf16.msra.mxu0 0
        %1796 = vmatprep.mubr.bf16.mxu0 0
        %1797 = vmatmul.mubr.bf16.gmra.mxu0 %v1738
        %v1798 = vpop.f32.mrf.mxu0
        %v1799 = vadd.f32 %v1734, %v1798
        %v1800 = vpop.f32.mrf.mxu0
        %v1801 = vadd.f32 %v1734, %v1800
        %v1802 = vpop.f32.mrf.mxu0
        %v1803 = vpop.f32.mrf.mxu0
        %1804 = vdwg.mxu0
        %1805 = vmatprep.subr.bf16.mxu0 0
        %1806 = vmatpush1.bf16.msra.mxu0 0
        %1807 = vmatprep.subr.bf16.mxu0 0
        %1808 = vmatpush1.bf16.msra.mxu0 0
        %1809 = vmatprep.subr.bf16.mxu0 0
        %1810 = vmatpush1.bf16.msra.mxu0 0
        %1811 = vmatprep.subr.bf16.mxu0 0
        %1812 = vmatpush1.bf16.msra.mxu0 0
        %1813 = vmatprep.subr.bf16.mxu0 0
        %1814 = vmatpush1.bf16.msra.mxu0 0
        %1815 = vmatprep.subr.bf16.mxu0 %v1750
        %1816 = vmatpush1.bf16.msra.mxu0 %v1747
        %1817 = vmatprep.subr.bf16.mxu0 %v1718
        %1818 = vmatpush1.bf16.msra.mxu0 %v1717
        %1819 = vmatprep.subr.bf16.mxu0 %v1710
        %1820 = vmatpush1.bf16.msra.mxu0 %v1709
        %1821 = vmatprep.subr.bf16.mxu0 0
        %1822 = vmatpush2.bf16.msra.mxu0 0
        %1823 = vmatprep.subr.bf16.mxu0 0
        %1824 = vmatpush2.bf16.msra.mxu0 0
        %1825 = vmatprep.subr.bf16.mxu0 0
        %1826 = vmatpush2.bf16.msra.mxu0 0
        %1827 = vmatprep.subr.bf16.mxu0 0
        %1828 = vmatpush2.bf16.msra.mxu0 0
        %1829 = vmatprep.subr.bf16.mxu0 0
        %1830 = vmatpush2.bf16.msra.mxu0 0
        %1831 = vmatprep.subr.bf16.mxu0 0
        %1832 = vmatpush2.bf16.msra.mxu0 0
        %1833 = vmatprep.subr.bf16.mxu0 0
        %1834 = vmatpush2.bf16.msra.mxu0 0
        %1835 = vmatprep.subr.bf16.mxu0 0
        %1836 = vmatpush2.bf16.msra.mxu0 0
        %1837 = vmatprep.mubr.bf16.mxu0 0
        %1838 = vmatmul.mubr.bf16.gmra.mxu0 %v1738
        %v1839 = vpop.f32.mrf.mxu0
        %v1840 = vadd.f32 %v1734, %v1839
        %v1841 = vpop.f32.mrf.mxu0
        %v1842 = vadd.f32 %v1734, %v1841
        %v1843 = vpop.f32.mrf.mxu0
        %v1844 = vpop.f32.mrf.mxu0
        %1845 = vdwg.mxu0
        %1846 = vmatprep.subr.bf16.mxu0 0
        %1847 = vmatpush1.bf16.msra.mxu0 0
        %1848 = vmatprep.subr.bf16.mxu0 0
        %1849 = vmatpush1.bf16.msra.mxu0 0
        %1850 = vmatprep.subr.bf16.mxu0 0
        %1851 = vmatpush1.bf16.msra.mxu0 0
        %1852 = vmatprep.subr.bf16.mxu0 0
        %1853 = vmatpush1.bf16.msra.mxu0 0
        %1854 = vmatprep.subr.bf16.mxu0 0
        %1855 = vmatpush1.bf16.msra.mxu0 0
        %1856 = vmatprep.subr.bf16.mxu0 %v1756
        %1857 = vmatpush1.bf16.msra.mxu0 %v1753
        %1858 = vmatprep.subr.bf16.mxu0 %v1720
        %1859 = vmatpush1.bf16.msra.mxu0 %v1719
        %1860 = vmatprep.subr.bf16.mxu0 %v1712
        %1861 = vmatpush1.bf16.msra.mxu0 %v1711
        %1862 = vmatprep.subr.bf16.mxu0 0
        %1863 = vmatpush2.bf16.msra.mxu0 0
        %1864 = vmatprep.subr.bf16.mxu0 0
        %1865 = vmatpush2.bf16.msra.mxu0 0
        %1866 = vmatprep.subr.bf16.mxu0 0
        %1867 = vmatpush2.bf16.msra.mxu0 0
        %1868 = vmatprep.subr.bf16.mxu0 0
        %1869 = vmatpush2.bf16.msra.mxu0 0
        %1870 = vmatprep.subr.bf16.mxu0 0
        %1871 = vmatpush2.bf16.msra.mxu0 0
        %1872 = vmatprep.subr.bf16.mxu0 0
        %1873 = vmatpush2.bf16.msra.mxu0 0
        %1874 = vmatprep.subr.bf16.mxu0 0
        %1875 = vmatpush2.bf16.msra.mxu0 0
        %1876 = vmatprep.subr.bf16.mxu0 0
        %1877 = vmatpush2.bf16.msra.mxu0 0
        %1878 = vmatprep.mubr.bf16.mxu0 0
        %1879 = vmatmul.mubr.bf16.gmra.mxu0 %v1738
        %v1880 = vpop.f32.mrf.mxu0
        %v1881 = vadd.f32 %v1734, %v1880
        %v1882 = vpop.f32.mrf.mxu0
        %v1883 = vadd.f32 %v1734, %v1882
        %v1884 = vpop.f32.mrf.mxu0
        %v1885 = vpop.f32.mrf.mxu0
        %1886 = vdwg.mxu0
        %1887 = vmatprep.subr.bf16.mxu0 0
        %1888 = vmatpush1.bf16.msra.mxu0 0
        %1889 = vmatprep.subr.bf16.mxu0 0
        %1890 = vmatpush1.bf16.msra.mxu0 0
        %1891 = vmatprep.subr.bf16.mxu0 0
        %1892 = vmatpush1.bf16.msra.mxu0 0
        %1893 = vmatprep.subr.bf16.mxu0 0
        %1894 = vmatpush1.bf16.msra.mxu0 0
        %1895 = vmatprep.subr.bf16.mxu0 0
        %1896 = vmatpush1.bf16.msra.mxu0 0
        %1897 = vmatprep.subr.bf16.mxu0 %v1762
        %1898 = vmatpush1.bf16.msra.mxu0 %v1759
        %1899 = vmatprep.subr.bf16.mxu0 %v1722
        %1900 = vmatpush1.bf16.msra.mxu0 %v1721
        %1901 = vmatprep.subr.bf16.mxu0 %v1714
        %1902 = vmatpush1.bf16.msra.mxu0 %v1713
        %1903 = vmatprep.subr.bf16.mxu0 0
        %1904 = vmatpush2.bf16.msra.mxu0 0
        %1905 = vmatprep.subr.bf16.mxu0 0
        %1906 = vmatpush2.bf16.msra.mxu0 0
        %1907 = vmatprep.subr.bf16.mxu0 0
        %1908 = vmatpush2.bf16.msra.mxu0 0
        %1909 = vmatprep.subr.bf16.mxu0 0
        %1910 = vmatpush2.bf16.msra.mxu0 0
        %1911 = vmatprep.subr.bf16.mxu0 0
        %1912 = vmatpush2.bf16.msra.mxu0 0
        %1913 = vmatprep.subr.bf16.mxu0 0
        %1914 = vmatpush2.bf16.msra.mxu0 0
        %1915 = vmatprep.subr.bf16.mxu0 0
        %1916 = vmatpush2.bf16.msra.mxu0 0
        %1917 = vmatprep.subr.bf16.mxu0 0
        %1918 = vmatpush2.bf16.msra.mxu0 0
        %1919 = vmatprep.mubr.bf16.mxu0 0
        %1920 = vmatmul.mubr.bf16.gmra.mxu0 %v1738
        %v1921 = vpop.f32.mrf.mxu0
        %v1922 = vadd.f32 %v1734, %v1921
        %v1923 = vpop.f32.mrf.mxu0
        %v1924 = vadd.f32 %v1734, %v1923
        %v1925 = vpop.f32.mrf.mxu0
        %v1926 = vpop.f32.mrf.mxu0
        %1927 = vdwg.mxu0
        %vm1928 = vcmp.gt.f32.partialorder %v1799, 0.0
        %vm1929 = vcmp.gt.f32.partialorder %v1801, 0.0
        %vm1930 = vcmp.gt.f32.partialorder %v1840, 0.0
        %vm1931 = vcmp.gt.f32.partialorder %v1842, 0.0
        %vm1932 = vcmp.gt.f32.partialorder %v1881, 0.0
        %vm1933 = vcmp.gt.f32.partialorder %v1883, 0.0
        %vm1934 = vcmp.gt.f32.partialorder %v1922, 0.0
        %vm1935 = vcmp.gt.f32.partialorder %v1924, 0.0
        %v1936 = vmul.f32 %v1799, 0.3
        %v1937 = vmul.f32 %v1801, 0.3
        %v1938 = vmul.f32 %v1840, 0.3
        %v1939 = vmul.f32 %v1842, 0.3
        %v1940 = vmul.f32 %v1881, 0.3
        %v1941 = vmul.f32 %v1883, 0.3
        %v1942 = vmul.f32 %v1922, 0.3
        %v1943 = vmul.f32 %v1924, 0.3
        %v1944 = vsel %vm1928, %v1799, %v1936
        %v1945 = vsel %vm1929, %v1801, %v1937
        %v1946 = vsel %vm1930, %v1840, %v1938
        %v1947 = vsel %vm1931, %v1842, %v1939
        %v1948 = vsel %vm1932, %v1881, %v1940
        %v1949 = vsel %vm1933, %v1883, %v1941
        %v1950 = vsel %vm1934, %v1922, %v1942
        %v1951 = vsel %vm1935, %v1924, %v1943
        %1952 = vrot.lane.b32.xlu0 %v1944, 2
        %v1953 = vpop.permute.xlu0 %1952
        %1954 = vrot.lane.b32.xlu0 %v1945, 2
        %v1955 = vpop.permute.xlu0 %1954
        %1956 = vrot.lane.b32.xlu0 %v1946, 2
        %v1957 = vpop.permute.xlu0 %1956
        %1958 = vrot.lane.b32.xlu0 %v1947, 2
        %v1959 = vpop.permute.xlu0 %1958
        %1960 = vrot.lane.b32.xlu0 %v1948, 2
        %v1961 = vpop.permute.xlu0 %1960
        %1962 = vrot.lane.b32.xlu0 %v1949, 2
        %v1963 = vpop.permute.xlu0 %1962
        %1964 = vrot.lane.b32.xlu0 %v1950, 2
        %v1965 = vpop.permute.xlu0 %1964
        %1966 = vrot.lane.b32.xlu0 %v1951, 2
        %v1967 = vpop.permute.xlu0 %1966
        %v1968 = vsel %vm1591, %v1965, %v1967
        %v1969 = vsel %vm1591, %v1963, %v1965
        %v1970 = vsel %vm1591, %v1961, %v1963
        %v1971 = vsel %vm1591, %v1959, %v1961
        %v1972 = vsel %vm1591, %v1957, %v1959
        %v1973 = vsel %vm1591, %v1955, %v1957
        %v1974 = vsel %vm1591, %v1953, %v1955
        %v1975 = vsel %vm1591, %v1967, %v1953
        %v1976 = vmul.f32 %v1975, %v759
        %v1977 = vmul.f32 %v1974, %v760
        %v1978 = vmul.f32 %v1973, %v761
        %v1979 = vmul.f32 %v1972, %v762
        %v1980 = vmul.f32 %v1971, %v763
        %v1981 = vmul.f32 %v1970, %v764
        %v1982 = vmul.f32 %v1969, %v765
        %v1983 = vmul.f32 %v1968, %v766
        %1984 = vrot.lane.b32.xlu0 %v1944, 1
        %v1985 = vpop.permute.xlu0 %1984
        %1986 = vrot.lane.b32.xlu0 %v1945, 1
        %v1987 = vpop.permute.xlu0 %1986
        %1988 = vrot.lane.b32.xlu0 %v1946, 1
        %v1989 = vpop.permute.xlu0 %1988
        %1990 = vrot.lane.b32.xlu0 %v1947, 1
        %v1991 = vpop.permute.xlu0 %1990
        %1992 = vrot.lane.b32.xlu0 %v1948, 1
        %v1993 = vpop.permute.xlu0 %1992
        %1994 = vrot.lane.b32.xlu0 %v1949, 1
        %v1995 = vpop.permute.xlu0 %1994
        %1996 = vrot.lane.b32.xlu0 %v1950, 1
        %v1997 = vpop.permute.xlu0 %1996
        %1998 = vrot.lane.b32.xlu0 %v1951, 1
        %v1999 = vpop.permute.xlu0 %1998
        %v2000 = vsel %vm1624, %v1997, %v1999
        %v2001 = vsel %vm1624, %v1995, %v1997
        %v2002 = vsel %vm1624, %v1993, %v1995
        %v2003 = vsel %vm1624, %v1991, %v1993
        %v2004 = vsel %vm1624, %v1989, %v1991
        %v2005 = vsel %vm1624, %v1987, %v1989
        %v2006 = vsel %vm1624, %v1985, %v1987
        %v2007 = vsel %vm1624, %v1999, %v1985
        %v2008 = vmul.f32 %v2007, %v799
        %v2009 = vmul.f32 %v2006, %v800
        %v2010 = vmul.f32 %v2005, %v801
        %v2011 = vmul.f32 %v2004, %v802
        %v2012 = vmul.f32 %v2003, %v803
        %v2013 = vmul.f32 %v2002, %v804
        %v2014 = vmul.f32 %v2001, %v805
        %v2015 = vmul.f32 %v2000, %v806
        %2016 = vrot.lane.b32.xlu0 %v1944, 127
        %v2017 = vpop.permute.xlu0 %2016
        %2018 = vrot.lane.b32.xlu0 %v1945, 127
        %v2019 = vpop.permute.xlu0 %2018
        %2020 = vrot.lane.b32.xlu0 %v1946, 127
        %v2021 = vpop.permute.xlu0 %2020
        %2022 = vrot.lane.b32.xlu0 %v1947, 127
        %v2023 = vpop.permute.xlu0 %2022
        %2024 = vrot.lane.b32.xlu0 %v1948, 127
        %v2025 = vpop.permute.xlu0 %2024
        %2026 = vrot.lane.b32.xlu0 %v1949, 127
        %v2027 = vpop.permute.xlu0 %2026
        %2028 = vrot.lane.b32.xlu0 %v1950, 127
        %v2029 = vpop.permute.xlu0 %2028
        %2030 = vrot.lane.b32.xlu0 %v1951, 127
        %v2031 = vpop.permute.xlu0 %2030
        %v2032 = vsel %vm1657, %v2029, %v2031
        %v2033 = vsel %vm1657, %v2027, %v2029
        %v2034 = vsel %vm1657, %v2025, %v2027
        %v2035 = vsel %vm1657, %v2023, %v2025
        %v2036 = vsel %vm1657, %v2021, %v2023
        %v2037 = vsel %vm1657, %v2019, %v2021
        %v2038 = vsel %vm1657, %v2017, %v2019
        %v2039 = vsel %vm1657, %v2031, %v2017
        %v2040 = vmul.f32 %v2038, %v839
        %v2041 = vmul.f32 %v2037, %v840
        %v2042 = vmul.f32 %v2036, %v841
        %v2043 = vmul.f32 %v2035, %v842
        %v2044 = vmul.f32 %v2034, %v843
        %v2045 = vmul.f32 %v2033, %v844
        %v2046 = vmul.f32 %v2032, %v845
        %v2047 = vmul.f32 %v2039, %v846
        %2048 = vrot.lane.b32.xlu0 %v1944, 126
        %v2049 = vpop.permute.xlu0 %2048
        %2050 = vrot.lane.b32.xlu0 %v1945, 126
        %v2051 = vpop.permute.xlu0 %2050
        %2052 = vrot.lane.b32.xlu0 %v1946, 126
        %v2053 = vpop.permute.xlu0 %2052
        %2054 = vrot.lane.b32.xlu0 %v1947, 126
        %v2055 = vpop.permute.xlu0 %2054
        %2056 = vrot.lane.b32.xlu0 %v1948, 126
        %v2057 = vpop.permute.xlu0 %2056
        %2058 = vrot.lane.b32.xlu0 %v1949, 126
        %v2059 = vpop.permute.xlu0 %2058
        %2060 = vrot.lane.b32.xlu0 %v1950, 126
        %v2061 = vpop.permute.xlu0 %2060
        %2062 = vrot.lane.b32.xlu0 %v1951, 126
        %v2063 = vpop.permute.xlu0 %2062
        %v2064 = vsel %vm1690, %v2061, %v2063
        %v2065 = vsel %vm1690, %v2059, %v2061
        %v2066 = vsel %vm1690, %v2057, %v2059
        %v2067 = vsel %vm1690, %v2055, %v2057
        %v2068 = vsel %vm1690, %v2053, %v2055
        %v2069 = vsel %vm1690, %v2051, %v2053
        %v2070 = vsel %vm1690, %v2049, %v2051
        %v2071 = vsel %vm1690, %v2063, %v2049
        %v2072 = vmul.f32 %v2070, %v879
        %v2073 = vmul.f32 %v2069, %v880
        %v2074 = vmul.f32 %v2068, %v881
        %v2075 = vmul.f32 %v2067, %v882
        %v2076 = vmul.f32 %v2066, %v883
        %v2077 = vmul.f32 %v2065, %v884
        %v2078 = vmul.f32 %v2064, %v885
        %v2079 = vmul.f32 %v2071, %v886
        %v2080 = vpack.c.bf16 %v2008, %v1976
        %v2081 = vpack.c.bf16 %v2009, %v1977
        %v2082 = vpack.c.bf16 %v2010, %v1978
        %v2083 = vpack.c.bf16 %v2011, %v1979
        %v2084 = vpack.c.bf16 %v2012, %v1980
        %v2085 = vpack.c.bf16 %v2013, %v1981
        %v2086 = vpack.c.bf16 %v2014, %v1982
        %v2087 = vpack.c.bf16 %v2015, %v1983
        %v2088 = vpack.c.bf16 %v2040, %v1944
        %v2089 = vpack.c.bf16 %v2041, %v1945
        %v2090 = vpack.c.bf16 %v2042, %v1946
        %v2091 = vpack.c.bf16 %v2043, %v1947
        %v2092 = vpack.c.bf16 %v2044, %v1948
        %v2093 = vpack.c.bf16 %v2045, %v1949
        %v2094 = vpack.c.bf16 %v2046, %v1950
        %v2095 = vpack.c.bf16 %v2047, %v1951
        %v2096 = vpack.c.bf16 %v2072, %v2072
        %v2097 = vpack.c.bf16 %v2073, %v2073
        %v2098 = vpack.c.bf16 %v2074, %v2074
        %v2099 = vpack.c.bf16 %v2075, %v2075
        %v2100 = vpack.c.bf16 %v2076, %v2076
        %v2101 = vpack.c.bf16 %v2077, %v2077
        %v2102 = vpack.c.bf16 %v2078, %v2078
        %v2103 = vpack.c.bf16 %v2079, %v2079
        %2105 = vset.pattern.permute.xlu0 0
        %2106 = vperm.xlu0 %2105, %v560
        %v2107 = vpop.permute.xlu0 %2106
        %v2110 = vsel %vm1736, %v559, 0
        %v2113 = vsel %vm1258, %v2096, 0
        %v2116 = vsel %vm1258, %v2097, 0
        %v2119 = vsel %vm1258, %v2098, 0
        %v2122 = vsel %vm1258, %v2099, 0
        %v2125 = vsel %vm1258, %v2100, 0
        %v2128 = vsel %vm1258, %v2101, 0
        %v2131 = vsel %vm1258, %v2102, 0
        %v2134 = vsel %vm1258, %v2103, 0
        %2136 = vmatprep.subr.bf16.mxu0 0
        %2137 = vmatpush1.bf16.msra.mxu0 0
        %2138 = vmatprep.subr.bf16.mxu0 0
        %2139 = vmatpush1.bf16.msra.mxu0 0
        %2140 = vmatprep.subr.bf16.mxu0 0
        %2141 = vmatpush1.bf16.msra.mxu0 0
        %2142 = vmatprep.subr.bf16.mxu0 0
        %2143 = vmatpush1.bf16.msra.mxu0 0
        %2144 = vmatprep.subr.bf16.mxu0 0
        %2145 = vmatpush1.bf16.msra.mxu0 0
        %2146 = vmatprep.subr.bf16.mxu0 %v2116
        %2147 = vmatpush1.bf16.msra.mxu0 %v2113
        %2148 = vmatprep.subr.bf16.mxu0 %v2089
        %2149 = vmatpush1.bf16.msra.mxu0 %v2088
        %2150 = vmatprep.subr.bf16.mxu0 %v2081
        %2151 = vmatpush1.bf16.msra.mxu0 %v2080
        %2152 = vmatprep.subr.bf16.mxu0 0
        %2153 = vmatpush2.bf16.msra.mxu0 0
        %2154 = vmatprep.subr.bf16.mxu0 0
        %2155 = vmatpush2.bf16.msra.mxu0 0
        %2156 = vmatprep.subr.bf16.mxu0 0
        %2157 = vmatpush2.bf16.msra.mxu0 0
        %2158 = vmatprep.subr.bf16.mxu0 0
        %2159 = vmatpush2.bf16.msra.mxu0 0
        %2160 = vmatprep.subr.bf16.mxu0 0
        %2161 = vmatpush2.bf16.msra.mxu0 0
        %2162 = vmatprep.subr.bf16.mxu0 0
        %2163 = vmatpush2.bf16.msra.mxu0 0
        %2164 = vmatprep.subr.bf16.mxu0 0
        %2165 = vmatpush2.bf16.msra.mxu0 0
        %2166 = vmatprep.subr.bf16.mxu0 0
        %2167 = vmatpush2.bf16.msra.mxu0 0
        %2168 = vmatprep.mubr.bf16.mxu0 0
        %2169 = vmatmul.mubr.bf16.gmra.mxu0 %v2110
        %v2170 = vpop.f32.mrf.mxu0
        %v2171 = vadd.f32 %v2107, %v2170
        %v2172 = vpop.f32.mrf.mxu0
        %v2173 = vadd.f32 %v2107, %v2172
        %v2174 = vpop.f32.mrf.mxu0
        %v2175 = vpop.f32.mrf.mxu0
        %2176 = vdwg.mxu0
        %2177 = vmatprep.subr.bf16.mxu0 0
        %2178 = vmatpush1.bf16.msra.mxu0 0
        %2179 = vmatprep.subr.bf16.mxu0 0
        %2180 = vmatpush1.bf16.msra.mxu0 0
        %2181 = vmatprep.subr.bf16.mxu0 0
        %2182 = vmatpush1.bf16.msra.mxu0 0
        %2183 = vmatprep.subr.bf16.mxu0 0
        %2184 = vmatpush1.bf16.msra.mxu0 0
        %2185 = vmatprep.subr.bf16.mxu0 0
        %2186 = vmatpush1.bf16.msra.mxu0 0
        %2187 = vmatprep.subr.bf16.mxu0 %v2122
        %2188 = vmatpush1.bf16.msra.mxu0 %v2119
        %2189 = vmatprep.subr.bf16.mxu0 %v2091
        %2190 = vmatpush1.bf16.msra.mxu0 %v2090
        %2191 = vmatprep.subr.bf16.mxu0 %v2083
        %2192 = vmatpush1.bf16.msra.mxu0 %v2082
        %2193 = vmatprep.subr.bf16.mxu0 0
        %2194 = vmatpush2.bf16.msra.mxu0 0
        %2195 = vmatprep.subr.bf16.mxu0 0
        %2196 = vmatpush2.bf16.msra.mxu0 0
        %2197 = vmatprep.subr.bf16.mxu0 0
        %2198 = vmatpush2.bf16.msra.mxu0 0
        %2199 = vmatprep.subr.bf16.mxu0 0
        %2200 = vmatpush2.bf16.msra.mxu0 0
        %2201 = vmatprep.subr.bf16.mxu0 0
        %2202 = vmatpush2.bf16.msra.mxu0 0
        %2203 = vmatprep.subr.bf16.mxu0 0
        %2204 = vmatpush2.bf16.msra.mxu0 0
        %2205 = vmatprep.subr.bf16.mxu0 0
        %2206 = vmatpush2.bf16.msra.mxu0 0
        %2207 = vmatprep.subr.bf16.mxu0 0
        %2208 = vmatpush2.bf16.msra.mxu0 0
        %2209 = vmatprep.mubr.bf16.mxu0 0
        %2210 = vmatmul.mubr.bf16.gmra.mxu0 %v2110
        %v2211 = vpop.f32.mrf.mxu0
        %v2212 = vadd.f32 %v2107, %v2211
        %v2213 = vpop.f32.mrf.mxu0
        %v2214 = vadd.f32 %v2107, %v2213
        %v2215 = vpop.f32.mrf.mxu0
        %v2216 = vpop.f32.mrf.mxu0
        %2217 = vdwg.mxu0
        %2218 = vmatprep.subr.bf16.mxu0 0
        %2219 = vmatpush1.bf16.msra.mxu0 0
        %2220 = vmatprep.subr.bf16.mxu0 0
        %2221 = vmatpush1.bf16.msra.mxu0 0
        %2222 = vmatprep.subr.bf16.mxu0 0
        %2223 = vmatpush1.bf16.msra.mxu0 0
        %2224 = vmatprep.subr.bf16.mxu0 0
        %2225 = vmatpush1.bf16.msra.mxu0 0
        %2226 = vmatprep.subr.bf16.mxu0 0
        %2227 = vmatpush1.bf16.msra.mxu0 0
        %2228 = vmatprep.subr.bf16.mxu0 %v2128
        %2229 = vmatpush1.bf16.msra.mxu0 %v2125
        %2230 = vmatprep.subr.bf16.mxu0 %v2093
        %2231 = vmatpush1.bf16.msra.mxu0 %v2092
        %2232 = vmatprep.subr.bf16.mxu0 %v2085
        %2233 = vmatpush1.bf16.msra.mxu0 %v2084
        %2234 = vmatprep.subr.bf16.mxu0 0
        %2235 = vmatpush2.bf16.msra.mxu0 0
        %2236 = vmatprep.subr.bf16.mxu0 0
        %2237 = vmatpush2.bf16.msra.mxu0 0
        %2238 = vmatprep.subr.bf16.mxu0 0
        %2239 = vmatpush2.bf16.msra.mxu0 0
        %2240 = vmatprep.subr.bf16.mxu0 0
        %2241 = vmatpush2.bf16.msra.mxu0 0
        %2242 = vmatprep.subr.bf16.mxu0 0
        %2243 = vmatpush2.bf16.msra.mxu0 0
        %2244 = vmatprep.subr.bf16.mxu0 0
        %2245 = vmatpush2.bf16.msra.mxu0 0
        %2246 = vmatprep.subr.bf16.mxu0 0
        %2247 = vmatpush2.bf16.msra.mxu0 0
        %2248 = vmatprep.subr.bf16.mxu0 0
        %2249 = vmatpush2.bf16.msra.mxu0 0
        %2250 = vmatprep.mubr.bf16.mxu0 0
        %2251 = vmatmul.mubr.bf16.gmra.mxu0 %v2110
        %v2252 = vpop.f32.mrf.mxu0
        %v2253 = vadd.f32 %v2107, %v2252
        %v2254 = vpop.f32.mrf.mxu0
        %v2255 = vadd.f32 %v2107, %v2254
        %v2256 = vpop.f32.mrf.mxu0
        %v2257 = vpop.f32.mrf.mxu0
        %2258 = vdwg.mxu0
        %2259 = vmatprep.subr.bf16.mxu0 0
        %2260 = vmatpush1.bf16.msra.mxu0 0
        %2261 = vmatprep.subr.bf16.mxu0 0
        %2262 = vmatpush1.bf16.msra.mxu0 0
        %2263 = vmatprep.subr.bf16.mxu0 0
        %2264 = vmatpush1.bf16.msra.mxu0 0
        %2265 = vmatprep.subr.bf16.mxu0 0
        %2266 = vmatpush1.bf16.msra.mxu0 0
        %2267 = vmatprep.subr.bf16.mxu0 0
        %2268 = vmatpush1.bf16.msra.mxu0 0
        %2269 = vmatprep.subr.bf16.mxu0 %v2134
        %2270 = vmatpush1.bf16.msra.mxu0 %v2131
        %2271 = vmatprep.subr.bf16.mxu0 %v2095
        %2272 = vmatpush1.bf16.msra.mxu0 %v2094
        %2273 = vmatprep.subr.bf16.mxu0 %v2087
        %2274 = vmatpush1.bf16.msra.mxu0 %v2086
        %2275 = vmatprep.subr.bf16.mxu0 0
        %2276 = vmatpush2.bf16.msra.mxu0 0
        %2277 = vmatprep.subr.bf16.mxu0 0
        %2278 = vmatpush2.bf16.msra.mxu0 0
        %2279 = vmatprep.subr.bf16.mxu0 0
        %2280 = vmatpush2.bf16.msra.mxu0 0
        %2281 = vmatprep.subr.bf16.mxu0 0
        %2282 = vmatpush2.bf16.msra.mxu0 0
        %2283 = vmatprep.subr.bf16.mxu0 0
        %2284 = vmatpush2.bf16.msra.mxu0 0
        %2285 = vmatprep.subr.bf16.mxu0 0
        %2286 = vmatpush2.bf16.msra.mxu0 0
        %2287 = vmatprep.subr.bf16.mxu0 0
        %2288 = vmatpush2.bf16.msra.mxu0 0
        %2289 = vmatprep.subr.bf16.mxu0 0
        %2290 = vmatpush2.bf16.msra.mxu0 0
        %2291 = vmatprep.mubr.bf16.mxu0 0
        %2292 = vmatmul.mubr.bf16.gmra.mxu0 %v2110
        %v2293 = vpop.f32.mrf.mxu0
        %v2294 = vadd.f32 %v2107, %v2293
        %v2295 = vpop.f32.mrf.mxu0
        %v2296 = vadd.f32 %v2107, %v2295
        %v2297 = vpop.f32.mrf.mxu0
        %v2298 = vpop.f32.mrf.mxu0
        %2299 = vdwg.mxu0
        %vm2300 = vcmp.gt.f32.partialorder %v2171, 0.0
        %vm2301 = vcmp.gt.f32.partialorder %v2173, 0.0
        %vm2302 = vcmp.gt.f32.partialorder %v2212, 0.0
        %vm2303 = vcmp.gt.f32.partialorder %v2214, 0.0
        %vm2304 = vcmp.gt.f32.partialorder %v2253, 0.0
        %vm2305 = vcmp.gt.f32.partialorder %v2255, 0.0
        %vm2306 = vcmp.gt.f32.partialorder %v2294, 0.0
        %vm2307 = vcmp.gt.f32.partialorder %v2296, 0.0
        %v2308 = vmul.f32 %v2171, 0.3
        %v2309 = vmul.f32 %v2173, 0.3
        %v2310 = vmul.f32 %v2212, 0.3
        %v2311 = vmul.f32 %v2214, 0.3
        %v2312 = vmul.f32 %v2253, 0.3
        %v2313 = vmul.f32 %v2255, 0.3
        %v2314 = vmul.f32 %v2294, 0.3
        %v2315 = vmul.f32 %v2296, 0.3
        %v2316 = vsel %vm2300, %v2171, %v2308
        %v2317 = vsel %vm2301, %v2173, %v2309
        %v2318 = vsel %vm2302, %v2212, %v2310
        %v2319 = vsel %vm2303, %v2214, %v2311
        %v2320 = vsel %vm2304, %v2253, %v2312
        %v2321 = vsel %vm2305, %v2255, %v2313
        %v2322 = vsel %vm2306, %v2294, %v2314
        %v2323 = vsel %vm2307, %v2296, %v2315
        %v2324 = vadd.f32 %v2316, %v1944
        %v2325 = vadd.f32 %v2317, %v1945
        %v2326 = vadd.f32 %v2318, %v1946
        %v2327 = vadd.f32 %v2319, %v1947
        %v2328 = vadd.f32 %v2320, %v1948
        %v2329 = vadd.f32 %v2321, %v1949
        %v2330 = vadd.f32 %v2322, %v1950
        %v2331 = vadd.f32 %v2323, %v1951
        %v2332 = vpack.c.bf16 %v2324, %v2324
        %v2333 = vpack.c.bf16 %v2325, %v2325
        %v2334 = vpack.c.bf16 %v2326, %v2326
        %v2335 = vpack.c.bf16 %v2327, %v2327
        %v2336 = vpack.c.bf16 %v2328, %v2328
        %v2337 = vpack.c.bf16 %v2329, %v2329
        %v2338 = vpack.c.bf16 %v2330, %v2330
        %v2339 = vpack.c.bf16 %v2331, %v2331
        %2341 = vset.pattern.permute.xlu0 0
        %2342 = vperm.xlu0 %2341, %v562
        %v2343 = vpop.permute.xlu0 %2342
        %v2346 = vsel %vm1254, %v561, 0
        %v2349 = vsel %vm1258, %v2332, 0
        %v2352 = vsel %vm1258, %v2333, 0
        %v2355 = vsel %vm1258, %v2334, 0
        %v2358 = vsel %vm1258, %v2335, 0
        %v2361 = vsel %vm1258, %v2336, 0
        %v2364 = vsel %vm1258, %v2337, 0
        %v2367 = vsel %vm1258, %v2338, 0
        %v2370 = vsel %vm1258, %v2339, 0
        %2372 = vmatprep.subr.bf16.mxu0 0
        %2373 = vmatpush1.bf16.msra.mxu0 0
        %2374 = vmatprep.subr.bf16.mxu0 0
        %2375 = vmatpush1.bf16.msra.mxu0 0
        %2376 = vmatprep.subr.bf16.mxu0 0
        %2377 = vmatpush1.bf16.msra.mxu0 0
        %2378 = vmatprep.subr.bf16.mxu0 0
        %2379 = vmatpush1.bf16.msra.mxu0 0
        %2380 = vmatprep.subr.bf16.mxu0 0
        %2381 = vmatpush1.bf16.msra.mxu0 0
        %2382 = vmatprep.subr.bf16.mxu0 0
        %2383 = vmatpush1.bf16.msra.mxu0 0
        %2384 = vmatprep.subr.bf16.mxu0 0
        %2385 = vmatpush1.bf16.msra.mxu0 0
        %2386 = vmatprep.subr.bf16.mxu0 %v2352
        %2387 = vmatpush1.bf16.msra.mxu0 %v2349
        %2388 = vmatprep.subr.bf16.mxu0 0
        %2389 = vmatpush2.bf16.msra.mxu0 0
        %2390 = vmatprep.subr.bf16.mxu0 0
        %2391 = vmatpush2.bf16.msra.mxu0 0
        %2392 = vmatprep.subr.bf16.mxu0 0
        %2393 = vmatpush2.bf16.msra.mxu0 0
        %2394 = vmatprep.subr.bf16.mxu0 0
        %2395 = vmatpush2.bf16.msra.mxu0 0
        %2396 = vmatprep.subr.bf16.mxu0 0
        %2397 = vmatpush2.bf16.msra.mxu0 0
        %2398 = vmatprep.subr.bf16.mxu0 0
        %2399 = vmatpush2.bf16.msra.mxu0 0
        %2400 = vmatprep.subr.bf16.mxu0 0
        %2401 = vmatpush2.bf16.msra.mxu0 0
        %2402 = vmatprep.subr.bf16.mxu0 0
        %2403 = vmatpush2.bf16.msra.mxu0 0
        %2404 = vmatprep.mubr.bf16.mxu0 0
        %2405 = vmatmul.mubr.bf16.gmra.mxu0 %v2346
        %v2406 = vpop.f32.mrf.mxu0
        %v2407 = vadd.f32 %v2343, %v2406
        %v2408 = vpop.f32.mrf.mxu0
        %v2409 = vadd.f32 %v2343, %v2408
        %v2410 = vpop.f32.mrf.mxu0
        %v2411 = vpop.f32.mrf.mxu0
        %2412 = vdwg.mxu0
        %2413 = vmatprep.subr.bf16.mxu0 0
        %2414 = vmatpush1.bf16.msra.mxu0 0
        %2415 = vmatprep.subr.bf16.mxu0 0
        %2416 = vmatpush1.bf16.msra.mxu0 0
        %2417 = vmatprep.subr.bf16.mxu0 0
        %2418 = vmatpush1.bf16.msra.mxu0 0
        %2419 = vmatprep.subr.bf16.mxu0 0
        %2420 = vmatpush1.bf16.msra.mxu0 0
        %2421 = vmatprep.subr.bf16.mxu0 0
        %2422 = vmatpush1.bf16.msra.mxu0 0
        %2423 = vmatprep.subr.bf16.mxu0 0
        %2424 = vmatpush1.bf16.msra.mxu0 0
        %2425 = vmatprep.subr.bf16.mxu0 0
        %2426 = vmatpush1.bf16.msra.mxu0 0
        %2427 = vmatprep.subr.bf16.mxu0 %v2358
        %2428 = vmatpush1.bf16.msra.mxu0 %v2355
        %2429 = vmatprep.subr.bf16.mxu0 0
        %2430 = vmatpush2.bf16.msra.mxu0 0
        %2431 = vmatprep.subr.bf16.mxu0 0
        %2432 = vmatpush2.bf16.msra.mxu0 0
        %2433 = vmatprep.subr.bf16.mxu0 0
        %2434 = vmatpush2.bf16.msra.mxu0 0
        %2435 = vmatprep.subr.bf16.mxu0 0
        %2436 = vmatpush2.bf16.msra.mxu0 0
        %2437 = vmatprep.subr.bf16.mxu0 0
        %2438 = vmatpush2.bf16.msra.mxu0 0
        %2439 = vmatprep.subr.bf16.mxu0 0
        %2440 = vmatpush2.bf16.msra.mxu0 0
        %2441 = vmatprep.subr.bf16.mxu0 0
        %2442 = vmatpush2.bf16.msra.mxu0 0
        %2443 = vmatprep.subr.bf16.mxu0 0
        %2444 = vmatpush2.bf16.msra.mxu0 0
        %2445 = vmatprep.mubr.bf16.mxu0 0
        %2446 = vmatmul.mubr.bf16.gmra.mxu0 %v2346
        %v2447 = vpop.f32.mrf.mxu0
        %v2448 = vadd.f32 %v2343, %v2447
        %v2449 = vpop.f32.mrf.mxu0
        %v2450 = vadd.f32 %v2343, %v2449
        %v2451 = vpop.f32.mrf.mxu0
        %v2452 = vpop.f32.mrf.mxu0
        %2453 = vdwg.mxu0
        %2454 = vmatprep.subr.bf16.mxu0 0
        %2455 = vmatpush1.bf16.msra.mxu0 0
        %2456 = vmatprep.subr.bf16.mxu0 0
        %2457 = vmatpush1.bf16.msra.mxu0 0
        %2458 = vmatprep.subr.bf16.mxu0 0
        %2459 = vmatpush1.bf16.msra.mxu0 0
        %2460 = vmatprep.subr.bf16.mxu0 0
        %2461 = vmatpush1.bf16.msra.mxu0 0
        %2462 = vmatprep.subr.bf16.mxu0 0
        %2463 = vmatpush1.bf16.msra.mxu0 0
        %2464 = vmatprep.subr.bf16.mxu0 0
        %2465 = vmatpush1.bf16.msra.mxu0 0
        %2466 = vmatprep.subr.bf16.mxu0 0
        %2467 = vmatpush1.bf16.msra.mxu0 0
        %2468 = vmatprep.subr.bf16.mxu0 %v2364
        %2469 = vmatpush1.bf16.msra.mxu0 %v2361
        %2470 = vmatprep.subr.bf16.mxu0 0
        %2471 = vmatpush2.bf16.msra.mxu0 0
        %2472 = vmatprep.subr.bf16.mxu0 0
        %2473 = vmatpush2.bf16.msra.mxu0 0
        %2474 = vmatprep.subr.bf16.mxu0 0
        %2475 = vmatpush2.bf16.msra.mxu0 0
        %2476 = vmatprep.subr.bf16.mxu0 0
        %2477 = vmatpush2.bf16.msra.mxu0 0
        %2478 = vmatprep.subr.bf16.mxu0 0
        %2479 = vmatpush2.bf16.msra.mxu0 0
        %2480 = vmatprep.subr.bf16.mxu0 0
        %2481 = vmatpush2.bf16.msra.mxu0 0
        %2482 = vmatprep.subr.bf16.mxu0 0
        %2483 = vmatpush2.bf16.msra.mxu0 0
        %2484 = vmatprep.subr.bf16.mxu0 0
        %2485 = vmatpush2.bf16.msra.mxu0 0
        %2486 = vmatprep.mubr.bf16.mxu0 0
        %2487 = vmatmul.mubr.bf16.gmra.mxu0 %v2346
        %v2488 = vpop.f32.mrf.mxu0
        %v2489 = vadd.f32 %v2343, %v2488
        %v2490 = vpop.f32.mrf.mxu0
        %v2491 = vadd.f32 %v2343, %v2490
        %v2492 = vpop.f32.mrf.mxu0
        %v2493 = vpop.f32.mrf.mxu0
        %2494 = vdwg.mxu0
        %2495 = vmatprep.subr.bf16.mxu0 0
        %2496 = vmatpush1.bf16.msra.mxu0 0
        %2497 = vmatprep.subr.bf16.mxu0 0
        %2498 = vmatpush1.bf16.msra.mxu0 0
        %2499 = vmatprep.subr.bf16.mxu0 0
        %2500 = vmatpush1.bf16.msra.mxu0 0
        %2501 = vmatprep.subr.bf16.mxu0 0
        %2502 = vmatpush1.bf16.msra.mxu0 0
        %2503 = vmatprep.subr.bf16.mxu0 0
        %2504 = vmatpush1.bf16.msra.mxu0 0
        %2505 = vmatprep.subr.bf16.mxu0 0
        %2506 = vmatpush1.bf16.msra.mxu0 0
        %2507 = vmatprep.subr.bf16.mxu0 0
        %2508 = vmatpush1.bf16.msra.mxu0 0
        %2509 = vmatprep.subr.bf16.mxu0 %v2370
        %2510 = vmatpush1.bf16.msra.mxu0 %v2367
        %2511 = vmatprep.subr.bf16.mxu0 0
        %2512 = vmatpush2.bf16.msra.mxu0 0
        %2513 = vmatprep.subr.bf16.mxu0 0
        %2514 = vmatpush2.bf16.msra.mxu0 0
        %2515 = vmatprep.subr.bf16.mxu0 0
        %2516 = vmatpush2.bf16.msra.mxu0 0
        %2517 = vmatprep.subr.bf16.mxu0 0
        %2518 = vmatpush2.bf16.msra.mxu0 0
        %2519 = vmatprep.subr.bf16.mxu0 0
        %2520 = vmatpush2.bf16.msra.mxu0 0
        %2521 = vmatprep.subr.bf16.mxu0 0
        %2522 = vmatpush2.bf16.msra.mxu0 0
        %2523 = vmatprep.subr.bf16.mxu0 0
        %2524 = vmatpush2.bf16.msra.mxu0 0
        %2525 = vmatprep.subr.bf16.mxu0 0
        %2526 = vmatpush2.bf16.msra.mxu0 0
        %2527 = vmatprep.mubr.bf16.mxu0 0
        %2528 = vmatmul.mubr.bf16.gmra.mxu0 %v2346
        %v2529 = vpop.f32.mrf.mxu0
        %v2530 = vadd.f32 %v2343, %v2529
        %v2531 = vpop.f32.mrf.mxu0
        %v2532 = vadd.f32 %v2343, %v2531
        %v2533 = vpop.f32.mrf.mxu0
        %v2534 = vpop.f32.mrf.mxu0
        %2535 = vdwg.mxu0
        %vm2536 = vcmp.gt.f32.partialorder %v2407, 0.0
        %vm2537 = vcmp.gt.f32.partialorder %v2409, 0.0
        %vm2538 = vcmp.gt.f32.partialorder %v2448, 0.0
        %vm2539 = vcmp.gt.f32.partialorder %v2450, 0.0
        %vm2540 = vcmp.gt.f32.partialorder %v2489, 0.0
        %vm2541 = vcmp.gt.f32.partialorder %v2491, 0.0
        %vm2542 = vcmp.gt.f32.partialorder %v2530, 0.0
        %vm2543 = vcmp.gt.f32.partialorder %v2532, 0.0
        %v2544 = vmul.f32 %v2407, 0.3
        %v2545 = vmul.f32 %v2409, 0.3
        %v2546 = vmul.f32 %v2448, 0.3
        %v2547 = vmul.f32 %v2450, 0.3
        %v2548 = vmul.f32 %v2489, 0.3
        %v2549 = vmul.f32 %v2491, 0.3
        %v2550 = vmul.f32 %v2530, 0.3
        %v2551 = vmul.f32 %v2532, 0.3
        %v2552 = vsel %vm2536, %v2407, %v2544
        %v2553 = vsel %vm2537, %v2409, %v2545
        %v2554 = vsel %vm2538, %v2448, %v2546
        %v2555 = vsel %vm2539, %v2450, %v2547
        %v2556 = vsel %vm2540, %v2489, %v2548
        %v2557 = vsel %vm2541, %v2491, %v2549
        %v2558 = vsel %vm2542, %v2530, %v2550
        %v2559 = vsel %vm2543, %v2532, %v2551
        %v2560 = vpack.c.bf16 %v2552, %v2552
        %v2561 = vpack.c.bf16 %v2553, %v2553
        %v2562 = vpack.c.bf16 %v2554, %v2554
        %v2563 = vpack.c.bf16 %v2555, %v2555
        %v2564 = vpack.c.bf16 %v2556, %v2556
        %v2565 = vpack.c.bf16 %v2557, %v2557
        %v2566 = vpack.c.bf16 %v2558, %v2558
        %v2567 = vpack.c.bf16 %v2559, %v2559
        %2569 = vset.pattern.permute.xlu0 0
        %2570 = vperm.xlu0 %2569, %v564
        %v2571 = vpop.permute.xlu0 %2570
        %v2574 = vsel %vm1254, %v563, 0
        %v2577 = vsel %vm1258, %v2560, 0
        %v2580 = vsel %vm1258, %v2561, 0
        %v2583 = vsel %vm1258, %v2562, 0
        %v2586 = vsel %vm1258, %v2563, 0
        %v2589 = vsel %vm1258, %v2564, 0
        %v2592 = vsel %vm1258, %v2565, 0
        %v2595 = vsel %vm1258, %v2566, 0
        %v2598 = vsel %vm1258, %v2567, 0
        %2600 = vmatprep.subr.bf16.mxu0 0
        %2601 = vmatpush1.bf16.msra.mxu0 0
        %2602 = vmatprep.subr.bf16.mxu0 0
        %2603 = vmatpush1.bf16.msra.mxu0 0
        %2604 = vmatprep.subr.bf16.mxu0 0
        %2605 = vmatpush1.bf16.msra.mxu0 0
        %2606 = vmatprep.subr.bf16.mxu0 0
        %2607 = vmatpush1.bf16.msra.mxu0 0
        %2608 = vmatprep.subr.bf16.mxu0 0
        %2609 = vmatpush1.bf16.msra.mxu0 0
        %2610 = vmatprep.subr.bf16.mxu0 0
        %2611 = vmatpush1.bf16.msra.mxu0 0
        %2612 = vmatprep.subr.bf16.mxu0 0
        %2613 = vmatpush1.bf16.msra.mxu0 0
        %2614 = vmatprep.subr.bf16.mxu0 %v2580
        %2615 = vmatpush1.bf16.msra.mxu0 %v2577
        %2616 = vmatprep.subr.bf16.mxu0 0
        %2617 = vmatpush2.bf16.msra.mxu0 0
        %2618 = vmatprep.subr.bf16.mxu0 0
        %2619 = vmatpush2.bf16.msra.mxu0 0
        %2620 = vmatprep.subr.bf16.mxu0 0
        %2621 = vmatpush2.bf16.msra.mxu0 0
        %2622 = vmatprep.subr.bf16.mxu0 0
        %2623 = vmatpush2.bf16.msra.mxu0 0
        %2624 = vmatprep.subr.bf16.mxu0 0
        %2625 = vmatpush2.bf16.msra.mxu0 0
        %2626 = vmatprep.subr.bf16.mxu0 0
        %2627 = vmatpush2.bf16.msra.mxu0 0
        %2628 = vmatprep.subr.bf16.mxu0 0
        %2629 = vmatpush2.bf16.msra.mxu0 0
        %2630 = vmatprep.subr.bf16.mxu0 0
        %2631 = vmatpush2.bf16.msra.mxu0 0
        %2632 = vmatprep.mubr.bf16.mxu0 0
        %2633 = vmatmul.mubr.bf16.gmra.mxu0 %v2574
        %v2634 = vpop.f32.mrf.mxu0
        %v2635 = vadd.f32 %v2571, %v2634
        %v2636 = vpop.f32.mrf.mxu0
        %v2637 = vadd.f32 %v2571, %v2636
        %v2638 = vpop.f32.mrf.mxu0
        %v2639 = vpop.f32.mrf.mxu0
        %2640 = vdwg.mxu0
        %2641 = vmatprep.subr.bf16.mxu0 0
        %2642 = vmatpush1.bf16.msra.mxu0 0
        %2643 = vmatprep.subr.bf16.mxu0 0
        %2644 = vmatpush1.bf16.msra.mxu0 0
        %2645 = vmatprep.subr.bf16.mxu0 0
        %2646 = vmatpush1.bf16.msra.mxu0 0
        %2647 = vmatprep.subr.bf16.mxu0 0
        %2648 = vmatpush1.bf16.msra.mxu0 0
        %2649 = vmatprep.subr.bf16.mxu0 0
        %2650 = vmatpush1.bf16.msra.mxu0 0
        %2651 = vmatprep.subr.bf16.mxu0 0
        %2652 = vmatpush1.bf16.msra.mxu0 0
        %2653 = vmatprep.subr.bf16.mxu0 0
        %2654 = vmatpush1.bf16.msra.mxu0 0
        %2655 = vmatprep.subr.bf16.mxu0 %v2586
        %2656 = vmatpush1.bf16.msra.mxu0 %v2583
        %2657 = vmatprep.subr.bf16.mxu0 0
        %2658 = vmatpush2.bf16.msra.mxu0 0
        %2659 = vmatprep.subr.bf16.mxu0 0
        %2660 = vmatpush2.bf16.msra.mxu0 0
        %2661 = vmatprep.subr.bf16.mxu0 0
        %2662 = vmatpush2.bf16.msra.mxu0 0
        %2663 = vmatprep.subr.bf16.mxu0 0
        %2664 = vmatpush2.bf16.msra.mxu0 0
        %2665 = vmatprep.subr.bf16.mxu0 0
        %2666 = vmatpush2.bf16.msra.mxu0 0
        %2667 = vmatprep.subr.bf16.mxu0 0
        %2668 = vmatpush2.bf16.msra.mxu0 0
        %2669 = vmatprep.subr.bf16.mxu0 0
        %2670 = vmatpush2.bf16.msra.mxu0 0
        %2671 = vmatprep.subr.bf16.mxu0 0
        %2672 = vmatpush2.bf16.msra.mxu0 0
        %2673 = vmatprep.mubr.bf16.mxu0 0
        %2674 = vmatmul.mubr.bf16.gmra.mxu0 %v2574
        %v2675 = vpop.f32.mrf.mxu0
        %v2676 = vadd.f32 %v2571, %v2675
        %v2677 = vpop.f32.mrf.mxu0
        %v2678 = vadd.f32 %v2571, %v2677
        %v2679 = vpop.f32.mrf.mxu0
        %v2680 = vpop.f32.mrf.mxu0
        %2681 = vdwg.mxu0
        %2682 = vmatprep.subr.bf16.mxu0 0
        %2683 = vmatpush1.bf16.msra.mxu0 0
        %2684 = vmatprep.subr.bf16.mxu0 0
        %2685 = vmatpush1.bf16.msra.mxu0 0
        %2686 = vmatprep.subr.bf16.mxu0 0
        %2687 = vmatpush1.bf16.msra.mxu0 0
        %2688 = vmatprep.subr.bf16.mxu0 0
        %2689 = vmatpush1.bf16.msra.mxu0 0
        %2690 = vmatprep.subr.bf16.mxu0 0
        %2691 = vmatpush1.bf16.msra.mxu0 0
        %2692 = vmatprep.subr.bf16.mxu0 0
        %2693 = vmatpush1.bf16.msra.mxu0 0
        %2694 = vmatprep.subr.bf16.mxu0 0
        %2695 = vmatpush1.bf16.msra.mxu0 0
        %2696 = vmatprep.subr.bf16.mxu0 %v2592
        %2697 = vmatpush1.bf16.msra.mxu0 %v2589
        %2698 = vmatprep.subr.bf16.mxu0 0
        %2699 = vmatpush2.bf16.msra.mxu0 0
        %2700 = vmatprep.subr.bf16.mxu0 0
        %2701 = vmatpush2.bf16.msra.mxu0 0
        %2702 = vmatprep.subr.bf16.mxu0 0
        %2703 = vmatpush2.bf16.msra.mxu0 0
        %2704 = vmatprep.subr.bf16.mxu0 0
        %2705 = vmatpush2.bf16.msra.mxu0 0
        %2706 = vmatprep.subr.bf16.mxu0 0
        %2707 = vmatpush2.bf16.msra.mxu0 0
        %2708 = vmatprep.subr.bf16.mxu0 0
        %2709 = vmatpush2.bf16.msra.mxu0 0
        %2710 = vmatprep.subr.bf16.mxu0 0
        %2711 = vmatpush2.bf16.msra.mxu0 0
        %2712 = vmatprep.subr.bf16.mxu0 0
        %2713 = vmatpush2.bf16.msra.mxu0 0
        %2714 = vmatprep.mubr.bf16.mxu0 0
        %2715 = vmatmul.mubr.bf16.gmra.mxu0 %v2574
        %v2716 = vpop.f32.mrf.mxu0
        %v2717 = vadd.f32 %v2571, %v2716
        %v2718 = vpop.f32.mrf.mxu0
        %v2719 = vadd.f32 %v2571, %v2718
        %v2720 = vpop.f32.mrf.mxu0
        %v2721 = vpop.f32.mrf.mxu0
        %2722 = vdwg.mxu0
        %2723 = vmatprep.subr.bf16.mxu0 0
        %2724 = vmatpush1.bf16.msra.mxu0 0
        %2725 = vmatprep.subr.bf16.mxu0 0
        %2726 = vmatpush1.bf16.msra.mxu0 0
        %2727 = vmatprep.subr.bf16.mxu0 0
        %2728 = vmatpush1.bf16.msra.mxu0 0
        %2729 = vmatprep.subr.bf16.mxu0 0
        %2730 = vmatpush1.bf16.msra.mxu0 0
        %2731 = vmatprep.subr.bf16.mxu0 0
        %2732 = vmatpush1.bf16.msra.mxu0 0
        %2733 = vmatprep.subr.bf16.mxu0 0
        %2734 = vmatpush1.bf16.msra.mxu0 0
        %2735 = vmatprep.subr.bf16.mxu0 0
        %2736 = vmatpush1.bf16.msra.mxu0 0
        %2737 = vmatprep.subr.bf16.mxu0 %v2598
        %2738 = vmatpush1.bf16.msra.mxu0 %v2595
        %2739 = vmatprep.subr.bf16.mxu0 0
        %2740 = vmatpush2.bf16.msra.mxu0 0
        %2741 = vmatprep.subr.bf16.mxu0 0
        %2742 = vmatpush2.bf16.msra.mxu0 0
        %2743 = vmatprep.subr.bf16.mxu0 0
        %2744 = vmatpush2.bf16.msra.mxu0 0
        %2745 = vmatprep.subr.bf16.mxu0 0
        %2746 = vmatpush2.bf16.msra.mxu0 0
        %2747 = vmatprep.subr.bf16.mxu0 0
        %2748 = vmatpush2.bf16.msra.mxu0 0
        %2749 = vmatprep.subr.bf16.mxu0 0
        %2750 = vmatpush2.bf16.msra.mxu0 0
        %2751 = vmatprep.subr.bf16.mxu0 0
        %2752 = vmatpush2.bf16.msra.mxu0 0
        %2753 = vmatprep.subr.bf16.mxu0 0
        %2754 = vmatpush2.bf16.msra.mxu0 0
        %2755 = vmatprep.mubr.bf16.mxu0 0
        %2756 = vmatmul.mubr.bf16.gmra.mxu0 %v2574
        %v2757 = vpop.f32.mrf.mxu0
        %v2758 = vadd.f32 %v2571, %v2757
        %v2759 = vpop.f32.mrf.mxu0
        %v2760 = vadd.f32 %v2571, %v2759
        %v2761 = vpop.f32.mrf.mxu0
        %v2762 = vpop.f32.mrf.mxu0
        %2763 = vdwg.mxu0
        %vm2764 = vcmp.gt.f32.partialorder %v2635, 0.0
        %vm2765 = vcmp.gt.f32.partialorder %v2637, 0.0
        %vm2766 = vcmp.gt.f32.partialorder %v2676, 0.0
        %vm2767 = vcmp.gt.f32.partialorder %v2678, 0.0
        %vm2768 = vcmp.gt.f32.partialorder %v2717, 0.0
        %vm2769 = vcmp.gt.f32.partialorder %v2719, 0.0
        %vm2770 = vcmp.gt.f32.partialorder %v2758, 0.0
        %vm2771 = vcmp.gt.f32.partialorder %v2760, 0.0
        %v2772 = vmul.f32 %v2635, 0.3
        %v2773 = vmul.f32 %v2637, 0.3
        %v2774 = vmul.f32 %v2676, 0.3
        %v2775 = vmul.f32 %v2678, 0.3
        %v2776 = vmul.f32 %v2717, 0.3
        %v2777 = vmul.f32 %v2719, 0.3
        %v2778 = vmul.f32 %v2758, 0.3
        %v2779 = vmul.f32 %v2760, 0.3
        %v2780 = vsel %vm2764, %v2635, %v2772
        %v2781 = vsel %vm2765, %v2637, %v2773
        %v2782 = vsel %vm2766, %v2676, %v2774
        %v2783 = vsel %vm2767, %v2678, %v2775
        %v2784 = vsel %vm2768, %v2717, %v2776
        %v2785 = vsel %vm2769, %v2719, %v2777
        %v2786 = vsel %vm2770, %v2758, %v2778
        %v2787 = vsel %vm2771, %v2760, %v2779
        %v2788 = vpack.c.bf16 %v2780, %v2780
        %v2789 = vpack.c.bf16 %v2781, %v2781
        %v2790 = vpack.c.bf16 %v2782, %v2782
        %v2791 = vpack.c.bf16 %v2783, %v2783
        %v2792 = vpack.c.bf16 %v2784, %v2784
        %v2793 = vpack.c.bf16 %v2785, %v2785
        %v2794 = vpack.c.bf16 %v2786, %v2786
        %v2795 = vpack.c.bf16 %v2787, %v2787
        %2797 = vset.pattern.permute.xlu0 0
        %2798 = vperm.xlu0 %2797, %v566
        %v2799 = vpop.permute.xlu0 %2798
        %v2802 = vsel %vm1254, %v565, 0
        %v2805 = vsel %vm1258, %v2788, 0
        %v2808 = vsel %vm1258, %v2789, 0
        %v2811 = vsel %vm1258, %v2790, 0
        %v2814 = vsel %vm1258, %v2791, 0
        %v2817 = vsel %vm1258, %v2792, 0
        %v2820 = vsel %vm1258, %v2793, 0
        %v2823 = vsel %vm1258, %v2794, 0
        %v2826 = vsel %vm1258, %v2795, 0
        %2828 = vmatprep.subr.bf16.mxu0 0
        %2829 = vmatpush1.bf16.msra.mxu0 0
        %2830 = vmatprep.subr.bf16.mxu0 0
        %2831 = vmatpush1.bf16.msra.mxu0 0
        %2832 = vmatprep.subr.bf16.mxu0 0
        %2833 = vmatpush1.bf16.msra.mxu0 0
        %2834 = vmatprep.subr.bf16.mxu0 0
        %2835 = vmatpush1.bf16.msra.mxu0 0
        %2836 = vmatprep.subr.bf16.mxu0 0
        %2837 = vmatpush1.bf16.msra.mxu0 0
        %2838 = vmatprep.subr.bf16.mxu0 0
        %2839 = vmatpush1.bf16.msra.mxu0 0
        %2840 = vmatprep.subr.bf16.mxu0 0
        %2841 = vmatpush1.bf16.msra.mxu0 0
        %2842 = vmatprep.subr.bf16.mxu0 %v2808
        %2843 = vmatpush1.bf16.msra.mxu0 %v2805
        %2844 = vmatprep.subr.bf16.mxu0 0
        %2845 = vmatpush2.bf16.msra.mxu0 0
        %2846 = vmatprep.subr.bf16.mxu0 0
        %2847 = vmatpush2.bf16.msra.mxu0 0
        %2848 = vmatprep.subr.bf16.mxu0 0
        %2849 = vmatpush2.bf16.msra.mxu0 0
        %2850 = vmatprep.subr.bf16.mxu0 0
        %2851 = vmatpush2.bf16.msra.mxu0 0
        %2852 = vmatprep.subr.bf16.mxu0 0
        %2853 = vmatpush2.bf16.msra.mxu0 0
        %2854 = vmatprep.subr.bf16.mxu0 0
        %2855 = vmatpush2.bf16.msra.mxu0 0
        %2856 = vmatprep.subr.bf16.mxu0 0
        %2857 = vmatpush2.bf16.msra.mxu0 0
        %2858 = vmatprep.subr.bf16.mxu0 0
        %2859 = vmatpush2.bf16.msra.mxu0 0
        %2860 = vmatprep.mubr.bf16.mxu0 0
        %2861 = vmatmul.mubr.bf16.gmra.mxu0 %v2802
        %v2862 = vpop.f32.mrf.mxu0
        %v2863 = vadd.f32 %v2799, %v2862
        %v2864 = vpop.f32.mrf.mxu0
        %v2865 = vadd.f32 %v2799, %v2864
        %v2866 = vpop.f32.mrf.mxu0
        %v2867 = vpop.f32.mrf.mxu0
        %2868 = vdwg.mxu0
        %2869 = vmatprep.subr.bf16.mxu0 0
        %2870 = vmatpush1.bf16.msra.mxu0 0
        %2871 = vmatprep.subr.bf16.mxu0 0
        %2872 = vmatpush1.bf16.msra.mxu0 0
        %2873 = vmatprep.subr.bf16.mxu0 0
        %2874 = vmatpush1.bf16.msra.mxu0 0
        %2875 = vmatprep.subr.bf16.mxu0 0
        %2876 = vmatpush1.bf16.msra.mxu0 0
        %2877 = vmatprep.subr.bf16.mxu0 0
        %2878 = vmatpush1.bf16.msra.mxu0 0
        %2879 = vmatprep.subr.bf16.mxu0 0
        %2880 = vmatpush1.bf16.msra.mxu0 0
        %2881 = vmatprep.subr.bf16.mxu0 0
        %2882 = vmatpush1.bf16.msra.mxu0 0
        %2883 = vmatprep.subr.bf16.mxu0 %v2814
        %2884 = vmatpush1.bf16.msra.mxu0 %v2811
        %2885 = vmatprep.subr.bf16.mxu0 0
        %2886 = vmatpush2.bf16.msra.mxu0 0
        %2887 = vmatprep.subr.bf16.mxu0 0
        %2888 = vmatpush2.bf16.msra.mxu0 0
        %2889 = vmatprep.subr.bf16.mxu0 0
        %2890 = vmatpush2.bf16.msra.mxu0 0
        %2891 = vmatprep.subr.bf16.mxu0 0
        %2892 = vmatpush2.bf16.msra.mxu0 0
        %2893 = vmatprep.subr.bf16.mxu0 0
        %2894 = vmatpush2.bf16.msra.mxu0 0
        %2895 = vmatprep.subr.bf16.mxu0 0
        %2896 = vmatpush2.bf16.msra.mxu0 0
        %2897 = vmatprep.subr.bf16.mxu0 0
        %2898 = vmatpush2.bf16.msra.mxu0 0
        %2899 = vmatprep.subr.bf16.mxu0 0
        %2900 = vmatpush2.bf16.msra.mxu0 0
        %2901 = vmatprep.mubr.bf16.mxu0 0
        %2902 = vmatmul.mubr.bf16.gmra.mxu0 %v2802
        %v2903 = vpop.f32.mrf.mxu0
        %v2904 = vadd.f32 %v2799, %v2903
        %v2905 = vpop.f32.mrf.mxu0
        %v2906 = vadd.f32 %v2799, %v2905
        %v2907 = vpop.f32.mrf.mxu0
        %v2908 = vpop.f32.mrf.mxu0
        %2909 = vdwg.mxu0
        %2910 = vmatprep.subr.bf16.mxu0 0
        %2911 = vmatpush1.bf16.msra.mxu0 0
        %2912 = vmatprep.subr.bf16.mxu0 0
        %2913 = vmatpush1.bf16.msra.mxu0 0
        %2914 = vmatprep.subr.bf16.mxu0 0
        %2915 = vmatpush1.bf16.msra.mxu0 0
        %2916 = vmatprep.subr.bf16.mxu0 0
        %2917 = vmatpush1.bf16.msra.mxu0 0
        %2918 = vmatprep.subr.bf16.mxu0 0
        %2919 = vmatpush1.bf16.msra.mxu0 0
        %2920 = vmatprep.subr.bf16.mxu0 0
        %2921 = vmatpush1.bf16.msra.mxu0 0
        %2922 = vmatprep.subr.bf16.mxu0 0
        %2923 = vmatpush1.bf16.msra.mxu0 0
        %2924 = vmatprep.subr.bf16.mxu0 %v2820
        %2925 = vmatpush1.bf16.msra.mxu0 %v2817
        %2926 = vmatprep.subr.bf16.mxu0 0
        %2927 = vmatpush2.bf16.msra.mxu0 0
        %2928 = vmatprep.subr.bf16.mxu0 0
        %2929 = vmatpush2.bf16.msra.mxu0 0
        %2930 = vmatprep.subr.bf16.mxu0 0
        %2931 = vmatpush2.bf16.msra.mxu0 0
        %2932 = vmatprep.subr.bf16.mxu0 0
        %2933 = vmatpush2.bf16.msra.mxu0 0
        %2934 = vmatprep.subr.bf16.mxu0 0
        %2935 = vmatpush2.bf16.msra.mxu0 0
        %2936 = vmatprep.subr.bf16.mxu0 0
        %2937 = vmatpush2.bf16.msra.mxu0 0
        %2938 = vmatprep.subr.bf16.mxu0 0
        %2939 = vmatpush2.bf16.msra.mxu0 0
        %2940 = vmatprep.subr.bf16.mxu0 0
        %2941 = vmatpush2.bf16.msra.mxu0 0
        %2942 = vmatprep.mubr.bf16.mxu0 0
        %2943 = vmatmul.mubr.bf16.gmra.mxu0 %v2802
        %v2944 = vpop.f32.mrf.mxu0
        %v2945 = vadd.f32 %v2799, %v2944
        %v2946 = vpop.f32.mrf.mxu0
        %v2947 = vadd.f32 %v2799, %v2946
        %v2948 = vpop.f32.mrf.mxu0
        %v2949 = vpop.f32.mrf.mxu0
        %2950 = vdwg.mxu0
        %2951 = vmatprep.subr.bf16.mxu0 0
        %2952 = vmatpush1.bf16.msra.mxu0 0
        %2953 = vmatprep.subr.bf16.mxu0 0
        %2954 = vmatpush1.bf16.msra.mxu0 0
        %2955 = vmatprep.subr.bf16.mxu0 0
        %2956 = vmatpush1.bf16.msra.mxu0 0
        %2957 = vmatprep.subr.bf16.mxu0 0
        %2958 = vmatpush1.bf16.msra.mxu0 0
        %2959 = vmatprep.subr.bf16.mxu0 0
        %2960 = vmatpush1.bf16.msra.mxu0 0
        %2961 = vmatprep.subr.bf16.mxu0 0
        %2962 = vmatpush1.bf16.msra.mxu0 0
        %2963 = vmatprep.subr.bf16.mxu0 0
        %2964 = vmatpush1.bf16.msra.mxu0 0
        %2965 = vmatprep.subr.bf16.mxu0 %v2826
        %2966 = vmatpush1.bf16.msra.mxu0 %v2823
        %2967 = vmatprep.subr.bf16.mxu0 0
        %2968 = vmatpush2.bf16.msra.mxu0 0
        %2969 = vmatprep.subr.bf16.mxu0 0
        %2970 = vmatpush2.bf16.msra.mxu0 0
        %2971 = vmatprep.subr.bf16.mxu0 0
        %2972 = vmatpush2.bf16.msra.mxu0 0
        %2973 = vmatprep.subr.bf16.mxu0 0
        %2974 = vmatpush2.bf16.msra.mxu0 0
        %2975 = vmatprep.subr.bf16.mxu0 0
        %2976 = vmatpush2.bf16.msra.mxu0 0
        %2977 = vmatprep.subr.bf16.mxu0 0
        %2978 = vmatpush2.bf16.msra.mxu0 0
        %2979 = vmatprep.subr.bf16.mxu0 0
        %2980 = vmatpush2.bf16.msra.mxu0 0
        %2981 = vmatprep.subr.bf16.mxu0 0
        %2982 = vmatpush2.bf16.msra.mxu0 0
        %2983 = vmatprep.mubr.bf16.mxu0 0
        %2984 = vmatmul.mubr.bf16.gmra.mxu0 %v2802
        %v2985 = vpop.f32.mrf.mxu0
        %v2986 = vadd.f32 %v2799, %v2985
        %v2987 = vpop.f32.mrf.mxu0
        %v2988 = vadd.f32 %v2799, %v2987
        %v2989 = vpop.f32.mrf.mxu0
        %v2990 = vpop.f32.mrf.mxu0
        %2991 = vdwg.mxu0
        %vm2992 = vcmp.gt.f32.partialorder %v2863, 0.0
        %vm2993 = vcmp.gt.f32.partialorder %v2865, 0.0
        %vm2994 = vcmp.gt.f32.partialorder %v2904, 0.0
        %vm2995 = vcmp.gt.f32.partialorder %v2906, 0.0
        %vm2996 = vcmp.gt.f32.partialorder %v2945, 0.0
        %vm2997 = vcmp.gt.f32.partialorder %v2947, 0.0
        %vm2998 = vcmp.gt.f32.partialorder %v2986, 0.0
        %vm2999 = vcmp.gt.f32.partialorder %v2988, 0.0
        %v3000 = vmul.f32 %v2863, 0.3
        %v3001 = vmul.f32 %v2865, 0.3
        %v3002 = vmul.f32 %v2904, 0.3
        %v3003 = vmul.f32 %v2906, 0.3
        %v3004 = vmul.f32 %v2945, 0.3
        %v3005 = vmul.f32 %v2947, 0.3
        %v3006 = vmul.f32 %v2986, 0.3
        %v3007 = vmul.f32 %v2988, 0.3
        %v3008 = vsel %vm2992, %v2863, %v3000
        %v3009 = vsel %vm2993, %v2865, %v3001
        %v3010 = vsel %vm2994, %v2904, %v3002
        %v3011 = vsel %vm2995, %v2906, %v3003
        %v3012 = vsel %vm2996, %v2945, %v3004
        %v3013 = vsel %vm2997, %v2947, %v3005
        %v3014 = vsel %vm2998, %v2986, %v3006
        %v3015 = vsel %vm2999, %v2988, %v3007
        %v3016 = vpack.c.bf16 %v3008, %v3008
        %v3017 = vpack.c.bf16 %v3009, %v3009
        %v3018 = vpack.c.bf16 %v3010, %v3010
        %v3019 = vpack.c.bf16 %v3011, %v3011
        %v3020 = vpack.c.bf16 %v3012, %v3012
        %v3021 = vpack.c.bf16 %v3013, %v3013
        %v3022 = vpack.c.bf16 %v3014, %v3014
        %v3023 = vpack.c.bf16 %v3015, %v3015
        %3025 = vset.pattern.permute.xlu0 0
        %3026 = vperm.xlu0 %3025, %v568
        %v3027 = vpop.permute.xlu0 %3026
        %vm3029 = vcmask 31744
        %v3031 = vsel %vm3029, %v567, 0
        %v3034 = vsel %vm1056, %v3016, 0
        %v3037 = vsel %vm1056, %v3017, 0
        %v3040 = vsel %vm1056, %v3018, 0
        %v3043 = vsel %vm1056, %v3019, 0
        %v3046 = vsel %vm1056, %v3020, 0
        %v3049 = vsel %vm1056, %v3021, 0
        %v3052 = vsel %vm1056, %v3022, 0
        %v3055 = vsel %vm1056, %v3023, 0
        %3057 = vmatprep.subr.bf16.mxu0 0
        %3058 = vmatpush1.bf16.msra.mxu0 0
        %3059 = vmatprep.subr.bf16.mxu0 0
        %3060 = vmatpush1.bf16.msra.mxu0 0
        %3061 = vmatprep.subr.bf16.mxu0 0
        %3062 = vmatpush1.bf16.msra.mxu0 0
        %3063 = vmatprep.subr.bf16.mxu0 0
        %3064 = vmatpush1.bf16.msra.mxu0 0
        %3065 = vmatprep.subr.bf16.mxu0 0
        %3066 = vmatpush1.bf16.msra.mxu0 0
        %3067 = vmatprep.subr.bf16.mxu0 0
        %3068 = vmatpush1.bf16.msra.mxu0 0
        %3069 = vmatprep.subr.bf16.mxu0 0
        %3070 = vmatpush1.bf16.msra.mxu0 0
        %3071 = vmatprep.subr.bf16.mxu0 %v3037
        %3072 = vmatpush1.bf16.msra.mxu0 %v3034
        %3073 = vmatprep.subr.bf16.mxu0 0
        %3074 = vmatpush2.bf16.msra.mxu0 0
        %3075 = vmatprep.subr.bf16.mxu0 0
        %3076 = vmatpush2.bf16.msra.mxu0 0
        %3077 = vmatprep.subr.bf16.mxu0 0
        %3078 = vmatpush2.bf16.msra.mxu0 0
        %3079 = vmatprep.subr.bf16.mxu0 0
        %3080 = vmatpush2.bf16.msra.mxu0 0
        %3081 = vmatprep.subr.bf16.mxu0 0
        %3082 = vmatpush2.bf16.msra.mxu0 0
        %3083 = vmatprep.subr.bf16.mxu0 0
        %3084 = vmatpush2.bf16.msra.mxu0 0
        %3085 = vmatprep.subr.bf16.mxu0 0
        %3086 = vmatpush2.bf16.msra.mxu0 0
        %3087 = vmatprep.subr.bf16.mxu0 0
        %3088 = vmatpush2.bf16.msra.mxu0 0
        %3089 = vmatprep.mubr.bf16.mxu0 0
        %3090 = vmatmul.mubr.bf16.gmra.mxu0 %v3031
        %v3091 = vpop.f32.mrf.mxu0
        %v3092 = vadd.f32 %v3027, %v3091
        %v3093 = vpop.f32.mrf.mxu0
        %v3094 = vadd.f32 %v3027, %v3093
        %v3095 = vpop.f32.mrf.mxu0
        %v3096 = vpop.f32.mrf.mxu0
        %3097 = vdwg.mxu0
        %3098 = vmatprep.subr.bf16.mxu0 0
        %3099 = vmatpush1.bf16.msra.mxu0 0
        %3100 = vmatprep.subr.bf16.mxu0 0
        %3101 = vmatpush1.bf16.msra.mxu0 0
        %3102 = vmatprep.subr.bf16.mxu0 0
        %3103 = vmatpush1.bf16.msra.mxu0 0
        %3104 = vmatprep.subr.bf16.mxu0 0
        %3105 = vmatpush1.bf16.msra.mxu0 0
        %3106 = vmatprep.subr.bf16.mxu0 0
        %3107 = vmatpush1.bf16.msra.mxu0 0
        %3108 = vmatprep.subr.bf16.mxu0 0
        %3109 = vmatpush1.bf16.msra.mxu0 0
        %3110 = vmatprep.subr.bf16.mxu0 0
        %3111 = vmatpush1.bf16.msra.mxu0 0
        %3112 = vmatprep.subr.bf16.mxu0 %v3043
        %3113 = vmatpush1.bf16.msra.mxu0 %v3040
        %3114 = vmatprep.subr.bf16.mxu0 0
        %3115 = vmatpush2.bf16.msra.mxu0 0
        %3116 = vmatprep.subr.bf16.mxu0 0
        %3117 = vmatpush2.bf16.msra.mxu0 0
        %3118 = vmatprep.subr.bf16.mxu0 0
        %3119 = vmatpush2.bf16.msra.mxu0 0
        %3120 = vmatprep.subr.bf16.mxu0 0
        %3121 = vmatpush2.bf16.msra.mxu0 0
        %3122 = vmatprep.subr.bf16.mxu0 0
        %3123 = vmatpush2.bf16.msra.mxu0 0
        %3124 = vmatprep.subr.bf16.mxu0 0
        %3125 = vmatpush2.bf16.msra.mxu0 0
        %3126 = vmatprep.subr.bf16.mxu0 0
        %3127 = vmatpush2.bf16.msra.mxu0 0
        %3128 = vmatprep.subr.bf16.mxu0 0
        %3129 = vmatpush2.bf16.msra.mxu0 0
        %3130 = vmatprep.mubr.bf16.mxu0 0
        %3131 = vmatmul.mubr.bf16.gmra.mxu0 %v3031
        %v3132 = vpop.f32.mrf.mxu0
        %v3133 = vadd.f32 %v3027, %v3132
        %v3134 = vpop.f32.mrf.mxu0
        %v3135 = vadd.f32 %v3027, %v3134
        %v3136 = vpop.f32.mrf.mxu0
        %v3137 = vpop.f32.mrf.mxu0
        %3138 = vdwg.mxu0
        %3139 = vmatprep.subr.bf16.mxu0 0
        %3140 = vmatpush1.bf16.msra.mxu0 0
        %3141 = vmatprep.subr.bf16.mxu0 0
        %3142 = vmatpush1.bf16.msra.mxu0 0
        %3143 = vmatprep.subr.bf16.mxu0 0
        %3144 = vmatpush1.bf16.msra.mxu0 0
        %3145 = vmatprep.subr.bf16.mxu0 0
        %3146 = vmatpush1.bf16.msra.mxu0 0
        %3147 = vmatprep.subr.bf16.mxu0 0
        %3148 = vmatpush1.bf16.msra.mxu0 0
        %3149 = vmatprep.subr.bf16.mxu0 0
        %3150 = vmatpush1.bf16.msra.mxu0 0
        %3151 = vmatprep.subr.bf16.mxu0 0
        %3152 = vmatpush1.bf16.msra.mxu0 0
        %3153 = vmatprep.subr.bf16.mxu0 %v3049
        %3154 = vmatpush1.bf16.msra.mxu0 %v3046
        %3155 = vmatprep.subr.bf16.mxu0 0
        %3156 = vmatpush2.bf16.msra.mxu0 0
        %3157 = vmatprep.subr.bf16.mxu0 0
        %3158 = vmatpush2.bf16.msra.mxu0 0
        %3159 = vmatprep.subr.bf16.mxu0 0
        %3160 = vmatpush2.bf16.msra.mxu0 0
        %3161 = vmatprep.subr.bf16.mxu0 0
        %3162 = vmatpush2.bf16.msra.mxu0 0
        %3163 = vmatprep.subr.bf16.mxu0 0
        %3164 = vmatpush2.bf16.msra.mxu0 0
        %3165 = vmatprep.subr.bf16.mxu0 0
        %3166 = vmatpush2.bf16.msra.mxu0 0
        %3167 = vmatprep.subr.bf16.mxu0 0
        %3168 = vmatpush2.bf16.msra.mxu0 0
        %3169 = vmatprep.subr.bf16.mxu0 0
        %3170 = vmatpush2.bf16.msra.mxu0 0
        %3171 = vmatprep.mubr.bf16.mxu0 0
        %3172 = vmatmul.mubr.bf16.gmra.mxu0 %v3031
        %v3173 = vpop.f32.mrf.mxu0
        %v3174 = vadd.f32 %v3027, %v3173
        %v3175 = vpop.f32.mrf.mxu0
        %v3176 = vadd.f32 %v3027, %v3175
        %v3177 = vpop.f32.mrf.mxu0
        %v3178 = vpop.f32.mrf.mxu0
        %3179 = vdwg.mxu0
        %3180 = vmatprep.subr.bf16.mxu0 0
        %3181 = vmatpush1.bf16.msra.mxu0 0
        %3182 = vmatprep.subr.bf16.mxu0 0
        %3183 = vmatpush1.bf16.msra.mxu0 0
        %3184 = vmatprep.subr.bf16.mxu0 0
        %3185 = vmatpush1.bf16.msra.mxu0 0
        %3186 = vmatprep.subr.bf16.mxu0 0
        %3187 = vmatpush1.bf16.msra.mxu0 0
        %3188 = vmatprep.subr.bf16.mxu0 0
        %3189 = vmatpush1.bf16.msra.mxu0 0
        %3190 = vmatprep.subr.bf16.mxu0 0
        %3191 = vmatpush1.bf16.msra.mxu0 0
        %3192 = vmatprep.subr.bf16.mxu0 0
        %3193 = vmatpush1.bf16.msra.mxu0 0
        %3194 = vmatprep.subr.bf16.mxu0 %v3055
        %3195 = vmatpush1.bf16.msra.mxu0 %v3052
        %3196 = vmatprep.subr.bf16.mxu0 0
        %3197 = vmatpush2.bf16.msra.mxu0 0
        %3198 = vmatprep.subr.bf16.mxu0 0
        %3199 = vmatpush2.bf16.msra.mxu0 0
        %3200 = vmatprep.subr.bf16.mxu0 0
        %3201 = vmatpush2.bf16.msra.mxu0 0
        %3202 = vmatprep.subr.bf16.mxu0 0
        %3203 = vmatpush2.bf16.msra.mxu0 0
        %3204 = vmatprep.subr.bf16.mxu0 0
        %3205 = vmatpush2.bf16.msra.mxu0 0
        %3206 = vmatprep.subr.bf16.mxu0 0
        %3207 = vmatpush2.bf16.msra.mxu0 0
        %3208 = vmatprep.subr.bf16.mxu0 0
        %3209 = vmatpush2.bf16.msra.mxu0 0
        %3210 = vmatprep.subr.bf16.mxu0 0
        %3211 = vmatpush2.bf16.msra.mxu0 0
        %3212 = vmatprep.mubr.bf16.mxu0 0
        %3213 = vmatmul.mubr.bf16.gmra.mxu0 %v3031
        %v3214 = vpop.f32.mrf.mxu0
        %v3215 = vadd.f32 %v3027, %v3214
        %v3216 = vpop.f32.mrf.mxu0
        %v3217 = vadd.f32 %v3027, %v3216
        %v3218 = vpop.f32.mrf.mxu0
        %v3219 = vpop.f32.mrf.mxu0
        %3220 = vdwg.mxu0
        %vm3221 = vcmp.gt.f32.partialorder %v3092, 0.0
        %vm3222 = vcmp.gt.f32.partialorder %v3094, 0.0
        %vm3223 = vcmp.gt.f32.partialorder %v3133, 0.0
        %vm3224 = vcmp.gt.f32.partialorder %v3135, 0.0
        %vm3225 = vcmp.gt.f32.partialorder %v3174, 0.0
        %vm3226 = vcmp.gt.f32.partialorder %v3176, 0.0
        %vm3227 = vcmp.gt.f32.partialorder %v3215, 0.0
        %vm3228 = vcmp.gt.f32.partialorder %v3217, 0.0
        %v3229 = vmul.f32 %v3092, 0.3
        %v3230 = vmul.f32 %v3094, 0.3
        %v3231 = vmul.f32 %v3133, 0.3
        %v3232 = vmul.f32 %v3135, 0.3
        %v3233 = vmul.f32 %v3174, 0.3
        %v3234 = vmul.f32 %v3176, 0.3
        %v3235 = vmul.f32 %v3215, 0.3
        %v3236 = vmul.f32 %v3217, 0.3
        %v3237 = vsel %vm3221, %v3092, %v3229
        %v3238 = vsel %vm3222, %v3094, %v3230
        %v3239 = vsel %vm3223, %v3133, %v3231
        %v3240 = vsel %vm3224, %v3135, %v3232
        %v3241 = vsel %vm3225, %v3174, %v3233
        %v3242 = vsel %vm3226, %v3176, %v3234
        %v3243 = vsel %vm3227, %v3215, %v3235
        %v3244 = vsel %vm3228, %v3217, %v3236
        %v3246 = vrot.slane %v3238, 7
        %v3249 = vrot.slane %v3239, 6
        %v3252 = vrot.slane %v3240, 5
        %v3255 = vrot.slane %v3241, 4
        %v3258 = vrot.slane %v3242, 3
        %v3261 = vrot.slane %v3243, 2
        %v3264 = vrot.slane %v3244, 1
        %v3266 = vsel %vm999, %v3237, %v3246
        %v3267 = vsel %vm1056, %v3266, %v3249
        %vm3268 = vcmask 1042432
        %v3269 = vsel %vm3268, %v3267, %v3252
        %v3270 = vsel %vm1258, %v3269, %v3255
        %vm3271 = vcmask 1044480
        %v3272 = vsel %vm3271, %v3270, %v3258
        %vm3273 = vcmask 1045504
        %v3274 = vsel %vm3273, %v3272, %v3261
        %vm3275 = vcmask 1046528
        %v3276 = vsel %vm3275, %v3274, %v3264
        %v3278 = vrot.slane %v3237, 1
        %v3280 = vrot.slane %v3239, 7
        %v3282 = vrot.slane %v3240, 6
        %v3284 = vrot.slane %v3241, 5
        %v3286 = vrot.slane %v3242, 4
        %v3288 = vrot.slane %v3243, 3
        %v3290 = vrot.slane %v3244, 2
        %v3292 = vsel %vm999, %v3278, %v3238
        %v3293 = vsel %vm1056, %v3292, %v3280
        %v3294 = vsel %vm3268, %v3293, %v3282
        %v3295 = vsel %vm1258, %v3294, %v3284
        %v3296 = vsel %vm3271, %v3295, %v3286
        %v3297 = vsel %vm3273, %v3296, %v3288
        %v3298 = vsel %vm3275, %v3297, %v3290
        %v3299 = vpack.c.bf16 %v3276, %v3276
        %v3300 = vpack.c.bf16 %v3298, %v3298
        %v3333 = vunpack.c.l.b16 %v569
        %v3334 = vunpack.c.l.b16 %v570
        %v3335 = vunpack.c.l.b16 %v571
        %v3336 = vunpack.c.l.b16 %v572
        %v3337 = vunpack.c.l.b16 %v573
        %v3338 = vunpack.c.l.b16 %v574
        %v3339 = vunpack.c.l.b16 %v575
        %v3340 = vunpack.c.l.b16 %v576
        %v3341 = vunpack.c.l.b16 %v577
        %v3342 = vunpack.c.l.b16 %v578
        %v3343 = vunpack.c.l.b16 %v579
        %v3344 = vunpack.c.l.b16 %v580
        %v3345 = vunpack.c.l.b16 %v581
        %v3346 = vunpack.c.l.b16 %v582
        %v3347 = vunpack.c.l.b16 %v583
        %v3348 = vunpack.c.l.b16 %v584
        %v3349 = vunpack.c.l.b16 %v585
        %v3350 = vunpack.c.l.b16 %v586
        %v3351 = vunpack.c.l.b16 %v587
        %v3352 = vunpack.c.l.b16 %v588
        %v3353 = vunpack.c.l.b16 %v589
        %v3354 = vunpack.c.l.b16 %v590
        %v3355 = vunpack.c.l.b16 %v591
        %v3356 = vunpack.c.l.b16 %v592
        %v3357 = vunpack.c.l.b16 %v593
        %v3358 = vunpack.c.l.b16 %v594
        %v3359 = vunpack.c.l.b16 %v595
        %v3360 = vunpack.c.l.b16 %v596
        %v3361 = vunpack.c.l.b16 %v597
        %v3362 = vunpack.c.l.b16 %v598
        %v3363 = vunpack.c.l.b16 %v599
        %v3364 = vunpack.c.l.b16 %v600
        %v3365 = vpack.c.b16 %v3334, %v3333
        %v3366 = vpack.c.b16 %v3336, %v3335
        %v3367 = vpack.c.b16 %v3338, %v3337
        %v3368 = vpack.c.b16 %v3340, %v3339
        %v3369 = vpack.c.b16 %v3342, %v3341
        %v3370 = vpack.c.b16 %v3344, %v3343
        %v3371 = vpack.c.b16 %v3346, %v3345
        %v3372 = vpack.c.b16 %v3348, %v3347
        %v3373 = vpack.c.b16 %v3350, %v3349
        %v3374 = vpack.c.b16 %v3352, %v3351
        %v3375 = vpack.c.b16 %v3354, %v3353
        %v3376 = vpack.c.b16 %v3356, %v3355
        %v3377 = vpack.c.b16 %v3358, %v3357
        %v3378 = vpack.c.b16 %v3360, %v3359
        %v3379 = vpack.c.b16 %v3362, %v3361
        %v3380 = vpack.c.b16 %v3364, %v3363
        %3397 = vmatprep.subr.bf16.mxu0 0
        %3398 = vmatpush1.bf16.msra.mxu0 %v3372
        %3399 = vmatprep.subr.bf16.mxu0 0
        %3400 = vmatpush1.bf16.msra.mxu0 %v3371
        %3401 = vmatprep.subr.bf16.mxu0 0
        %3402 = vmatpush1.bf16.msra.mxu0 %v3370
        %3403 = vmatprep.subr.bf16.mxu0 0
        %3404 = vmatpush1.bf16.msra.mxu0 %v3369
        %3405 = vmatprep.subr.bf16.mxu0 0
        %3406 = vmatpush1.bf16.msra.mxu0 %v3368
        %3407 = vmatprep.subr.bf16.mxu0 0
        %3408 = vmatpush1.bf16.msra.mxu0 %v3367
        %3409 = vmatprep.subr.bf16.mxu0 0
        %3410 = vmatpush1.bf16.msra.mxu0 %v3366
        %3411 = vmatprep.subr.bf16.mxu0 0
        %3412 = vmatpush1.bf16.msra.mxu0 %v3365
        %3413 = vmatprep.subr.bf16.mxu0 0
        %3414 = vmatpush2.bf16.msra.mxu0 %v3380
        %3415 = vmatprep.subr.bf16.mxu0 0
        %3416 = vmatpush2.bf16.msra.mxu0 %v3379
        %3417 = vmatprep.subr.bf16.mxu0 0
        %3418 = vmatpush2.bf16.msra.mxu0 %v3378
        %3419 = vmatprep.subr.bf16.mxu0 0
        %3420 = vmatpush2.bf16.msra.mxu0 %v3377
        %3421 = vmatprep.subr.bf16.mxu0 0
        %3422 = vmatpush2.bf16.msra.mxu0 %v3376
        %3423 = vmatprep.subr.bf16.mxu0 0
        %3424 = vmatpush2.bf16.msra.mxu0 %v3375
        %3425 = vmatprep.subr.bf16.mxu0 0
        %3426 = vmatpush2.bf16.msra.mxu0 %v3374
        %3427 = vmatprep.subr.bf16.mxu0 0
        %3428 = vmatpush2.bf16.msra.mxu0 %v3373
        %3429 = vmatprep.mubr.bf16.mxu0 %v3300
        %3430 = vmatmul.mubr.bf16.gmra.mxu0 %v3299
        %v3431 = vpop.f32.mrf.mxu0
        %v3432 = vadd.f32 0.0, %v3431
        %v3433 = vpop.f32.mrf.mxu0
        %v3434 = vpop.f32.mrf.mxu0
        %v3435 = vpop.f32.mrf.mxu0
        %3436 = vdwg.mxu0
        %3437 = vmax.xlane.f32.xlu0 %v3432
        %v3438 = vpop.xlane.xlu0 %3437
        %v3439 = vsub.f32 %v3432, %v3438
        %v3440 = vmul.f32 %v3439, 1.442695
        %v3441 = vpow.pop %v3440
        %3442 = vadd.xlane.f32.xlu0 %v3441
        %v3443 = vpop.xlane.xlu0 %3442
        %v3444 = vrcp.pop %v3443
        %v3445 = vmul.f32 %v3441, %v3444
        %3446 = vst [vmem:[%s552] sm:$0xff] %v3445
        %s3447 = sand.u32 %s383, 1
        %s3448 = scalar_lea.sflag [#allocation4], %s3447
        %s3449 = sand.u32 %s383, 1
        %s3450 = smul.addr %s3449, 8
        %s3451 = scalar_lea.vmem [#allocation7], %s3450
        // Predicated region
        $region93: #{tpu_custom_call.1} parent=83 // pred_check
          %p3452 = pneg %p393
        $region94: #{tpu_custom_call.1} parent=83 // pred_check_branch
          %3454 = sbr.rel (%p3452) target = $region96
        $region95: #{tpu_custom_call.1} parent=83 // pred_region
          %s3456 = ssub.s32 128, 128
          %3457 = vsyncadd %s3448, %s3456
          %s3458 = smul.addr %s34, 128
          %s3459 = scalar_lea.hbm %s16, %s3458
          %s3461 = sshll.u32 %s3451, 4
          %s3462 = int_to_ptr.vmem [resolvable:$true] %s3461
          %3464 = dma.vmem_to_hbm [thread:$0]  %s3462, 128, %s3459, %s3448
        $region96: #{tpu_custom_call.1} parent=83 // pred_fallthru
          _
      $region84: #{tpu_custom_call.1} parent=5 // pred_fallthru
        _
      %p3465 = scmp.le.s32.totalorder 2, %s29
      // Predicated region
      $region97: #{tpu_custom_call.1} parent=5 // pred_check
        %p3466 = pneg %p3465
      $region98: #{tpu_custom_call.1} parent=5 // pred_check_branch
        %3468 = sbr.rel (%p3466) target = $region100
      $region99: #{tpu_custom_call.1} parent=5 // pred_region
        %s3469 = ssub.s32 %s29, 2
        // Predicated region
        $region101: #{tpu_custom_call.1} parent=99 // pred_check
          %p3470 = pneg %p399
        $region102: #{tpu_custom_call.1} parent=99 // pred_check_branch
          %3472 = sbr.rel (%p3470) target = $region104
        $region103: #{tpu_custom_call.1} parent=99 // pred_region
          %s3473 = sand.u32 %s384, 1
          %s3474 = scalar_lea.sflag [#allocation4], %s3473
          %s3475 = sand.u32 %s384, 1
          %s3476 = smul.addr %s3475, 8
          %s3477 = scalar_lea.vmem [#allocation7], %s3476
          %3478 = dma.done %s3474, 128
        $region104: #{tpu_custom_call.1} parent=99 // pred_fallthru
          _
      $region100: #{tpu_custom_call.1} parent=5 // pred_fallthru
        _
    $region6: #{tpu_custom_call.1} parent=1 // loop_footer
      %s33 = sadd.s32 1, %s29
    $region7: #{tpu_custom_call.1} parent=1 // loop_footer_branch
      %28 = sbr.rel target = $region3
    $region8: #{tpu_custom_call.1} parent=1 // loop_exit
      _
    %3479 = vsyncpa [#allocation3], 1
    %s3480 = scalar_lea.sflag [#allocation3], 1
    %3481 = vsyncpa %s3480, 1
    %3482 = vsyncpa [#allocation6], 1
    %3483 = vsyncpa [#allocation4], 1
    %s3484 = scalar_lea.sflag [#allocation4], 1
    %3485 = vsyncpa %s3484, 1

</llo_original>
